<compile_context>
chip_gen: v5e
topology: v5e:2x2
jax: 0.10.0
libtpu: 0.0.40
codegen_flags: <defaults>
</compile_context>

<pallas_src>
import functools

import jax
import jax.numpy as jnp
import numpy as np
from jax import lax
from jax.experimental import pallas as pl
from jax.experimental.pallas import tpu as pltpu

_EPS = 1e-5
_VMEM_LIMIT = 32 * 1024 * 1024


def _shift(a, o, axis):
    """Value-level zero-padded shift: result[..., i, ...] = a[..., i+o, ...]."""
    if o == 0:
        return a
    n = a.shape[axis]
    zshape = list(a.shape)
    zshape[axis] = abs(o)
    z = jnp.zeros(zshape, a.dtype)
    idx = [slice(None)] * a.ndim
    if o > 0:
        idx[axis] = slice(o, None)
        return jnp.concatenate([a[tuple(idx)], z], axis=axis)
    idx[axis] = slice(0, n + o)
    return jnp.concatenate([z, a[tuple(idx)]], axis=axis)


# ---------------------------------------------------------------------------
# Stage 1: all stride-1 convolutions (fused 1x1 pair, (1,7), (7,1)).
# nb images (nb, H, W, Cin) per grid step, NHWC layout, no scratch.
# ---------------------------------------------------------------------------
def _stage1_kernel(
    x_ref,                       # (nb, H, W, Cin)      bf16
    w1_ref,                      # (Cin, c2a + c3a)     bf16  [branch2-1x1 | branch3-1x1]
    s2a_ref, o2a_ref,            # (1, c2a)             f32   folded BN (branch2 1x1)
    s3a_ref, o3a_ref,            # (1, c3a)             f32   folded BN (branch3 1x1)
    w17_ref,                     # (7*c3a, c3b)         bf16  (1,7) conv, taps stacked on K
    s3b_ref, o3b_ref,            # (1, c3b)             f32
    w71_ref,                     # (7*c3b, c3c)         bf16  (7,1) conv, taps stacked on K
    s3c_ref, o3c_ref,            # (1, c3c)             f32
    a2_ref,                      # out (nb, H, W, c2a)  bf16  branch2 pre-3x3 activation
    a3_ref,                      # out (nb, H, W, c3c)  bf16  branch3 pre-3x3 activation
):
    f32 = jnp.float32
    bf16 = jnp.bfloat16
    nb, H, W, Cin = x_ref.shape
    c2a = s2a_ref.shape[1]
    c3a = s3a_ref.shape[1]
    c3b = s3b_ref.shape[1]
    c3c = s3c_ref.shape[1]
    M = nb * H * W

    xf = x_ref[...].reshape(M, Cin)                               # bf16 slab

    # ---- fused 1x1 convs: one wide-N matmul over the shared input slab -----
    y = jnp.dot(xf, w1_ref[...], preferred_element_type=f32)      # (M, c2a+c3a)
    a2 = jnp.maximum(y[:, :c2a] * s2a_ref[...] + o2a_ref[...], 0.0)
    a2_ref[...] = a2.reshape(nb, H, W, c2a).astype(a2_ref.dtype)
    t = jnp.maximum(y[:, c2a:] * s3a_ref[...] + o3a_ref[...], 0.0).astype(bf16)
    t = t.reshape(nb, H, W, c3a)

    # ---- (1,7) conv, padding (0,3): stacked-K over 7 W-shifted bf16 taps ----
    #      (value-level shifts, single wide matmul, no output shifting).
    lhs17 = jnp.concatenate([_shift(t, k - 3, axis=2) for k in range(7)], axis=-1)
    y17 = jnp.dot(lhs17.reshape(M, 7 * c3a), w17_ref[...],
                  preferred_element_type=f32)
    u = jnp.maximum(y17 * s3b_ref[...] + o3b_ref[...], 0.0).astype(bf16)
    u = u.reshape(nb, H, W, c3b)

    # ---- (7,1) conv, padding (3,0): same pattern, shifts along H ------------
    lhs71 = jnp.concatenate([_shift(u, k - 3, axis=1) for k in range(7)], axis=-1)
    y71 = jnp.dot(lhs71.reshape(M, 7 * c3b), w71_ref[...],
                  preferred_element_type=f32)
    v = jnp.maximum(y71 * s3c_ref[...] + o3c_ref[...], 0.0)
    a3_ref[...] = v.reshape(nb, H, W, c3c).astype(a3_ref.dtype)


# ---------------------------------------------------------------------------
# Stage 2: the two stride-2 3x3 valid convs on pre-staggered taps.
# batch*Ho*Wo flattened into one row dimension, tiled by row_tile; each conv
# is ONE stacked-K matmul.  Outputs are split (lane-dense per-branch stores).
# ---------------------------------------------------------------------------
def _stage2_kernel(
    t2_ref,                      # (MT, 9*c2a)    bf16 staggered branch2 activation
    t3_ref,                      # (MT, 9*c3c)    bf16 staggered branch3 activation
    w2_ref, s2_ref, b2_ref,      # (9*c2a, c2b) bf16; (1, c2b) f32 x2
    w3_ref, s3_ref, b3_ref,      # (9*c3c, c3d) bf16; (1, c3d) f32 x2
    o2_ref,                      # out (MT, c2b) f32
    o3_ref,                      # out (MT, c3d) f32
):
    f32 = jnp.float32
    y2 = jnp.dot(t2_ref[...], w2_ref[...], preferred_element_type=f32)
    o2_ref[...] = jnp.maximum(y2 * s2_ref[...] + b2_ref[...], 0.0).astype(o2_ref.dtype)
    y3 = jnp.dot(t3_ref[...], w3_ref[...], preferred_element_type=f32)
    o3_ref[...] = jnp.maximum(y3 * s3_ref[...] + b3_ref[...], 0.0).astype(o3_ref.dtype)


def _full_spec(a):
    nd = a.ndim
    return pl.BlockSpec(a.shape, lambda i, _nd=nd: (0,) * _nd)


def _round_up(a, b):
    return ((a + b - 1) // b) * b


@functools.partial(jax.jit, static_argnames=("row_tile", "batch_block"))
def reduction_b_v4(x_nchw, params, *, row_tile=256, batch_block=4):
    """NCHW in / NCHW out, like the PyTorch module (eval-mode BN folded)."""
    p = params
    bf16 = jnp.bfloat16
    f32 = jnp.float32
    x = jnp.transpose(x_nchw, (0, 2, 3, 1)).astype(f32)              # NHWC
    N, H, W, Cin = x.shape
    Ho = (H - 3) // 2 + 1
    Wo = (W - 3) // 2 + 1

    c2a = p["w2a"].shape[1]      # b2_n1
    c2b = p["w2b"].shape[3]      # b2_n3
    c3c = p["w3c"].shape[3]      # b3_n7x1
    c3d = p["w3d"].shape[3]      # b3_n3

    def row(v):                  # BN vector -> (1, c) f32
        return v.reshape(1, -1).astype(f32)

    # ---- branch1: exact f32 3x3/2 max-pool at the XLA level (review: drop
    #      the 9x-duplicated xpool stream from the stage-2 kernel). -----------
    pool = lax.reduce_window(x, -jnp.inf, lax.max,
                             (1, 3, 3, 1), (1, 2, 2, 1), "VALID")

    # ---- packed / stacked weights (wrapper-side layout plumbing) ------------
    w1 = jnp.concatenate([p["w2a"], p["w3a"]], axis=1).astype(bf16)          # (Cin, c2a+c3a)
    w17k = jnp.concatenate([p["w3b"][0, k] for k in range(7)], axis=0).astype(bf16)  # (7*c3a, c3b)
    w71k = jnp.concatenate([p["w3c"][k, 0] for k in range(7)], axis=0).astype(bf16)  # (7*c3b, c3c)
    w2s = p["w2b"].reshape(9 * c2a, c2b).astype(bf16)
    w3s = p["w3d"].reshape(9 * c3c, c3d).astype(bf16)

    # ---------------------------- stage 1 ------------------------------------
    nb = min(max(batch_block, 1), N)
    while N % nb:
        nb -= 1
    stage1_in = [
        x.astype(bf16), w1,
        row(p["s2a"]), row(p["o2a"]), row(p["s3a"]), row(p["o3a"]),
        w17k, row(p["s3b"]), row(p["o3b"]),
        w71k, row(p["s3c"]), row(p["o3c"]),
    ]
    a2, a3 = pl.pallas_call(
        _stage1_kernel,
        out_shape=(jax.ShapeDtypeStruct((N, H, W, c2a), bf16),
                   jax.ShapeDtypeStruct((N, H, W, c3c), bf16)),
        grid=(N // nb,),
        in_specs=[pl.BlockSpec((nb, H, W, Cin), lambda n: (n, 0, 0, 0))]
                 + [_full_spec(a) for a in stage1_in[1:]],
        out_specs=(pl.BlockSpec((nb, H, W, c2a), lambda n: (n, 0, 0, 0)),
                   pl.BlockSpec((nb, H, W, c3c), lambda n: (n, 0, 0, 0))),
        compiler_params=pltpu.CompilerParams(
            dimension_semantics=("parallel",),
            vmem_limit_bytes=_VMEM_LIMIT),
    )(*stage1_in)

    # ---- wrapper-side stride-2 window staggering of the bf16 activations ----
    def taps(t):
        return [t[:, dh::2, dw::2, :][:, :Ho, :Wo, :]
                for dh in range(3) for dw in range(3)]

    M = N * Ho * Wo
    mt = min(row_tile, _round_up(M, 8))
    Mp = _round_up(M, mt)

    t2 = jnp.concatenate(taps(a2), axis=-1).reshape(M, 9 * c2a)      # bf16
    t3 = jnp.concatenate(taps(a3), axis=-1).reshape(M, 9 * c3c)      # bf16
    if Mp != M:
        t2 = jnp.pad(t2, ((0, Mp - M), (0, 0)))
        t3 = jnp.pad(t3, ((0, Mp - M), (0, 0)))

    # ---------------------------- stage 2 ------------------------------------
    stage2_in = [t2, t3,
                 w2s, row(p["s2b"]), row(p["o2b"]),
                 w3s, row(p["s3d"]), row(p["o3d"])]
    out2, out3 = pl.pallas_call(
        _stage2_kernel,
        out_shape=(jax.ShapeDtypeStruct((Mp, c2b), f32),
                   jax.ShapeDtypeStruct((Mp, c3d), f32)),
        grid=(Mp // mt,),
        in_specs=[pl.BlockSpec((mt, 9 * c2a), lambda i: (i, 0)),
                  pl.BlockSpec((mt, 9 * c3c), lambda i: (i, 0))]
                 + [_full_spec(a) for a in stage2_in[2:]],
        out_specs=(pl.BlockSpec((mt, c2b), lambda i: (i, 0)),
                   pl.BlockSpec((mt, c3d), lambda i: (i, 0))),
        compiler_params=pltpu.CompilerParams(
            dimension_semantics=("parallel",),
            vmem_limit_bytes=_VMEM_LIMIT),
    )(*stage2_in)

    out2 = out2[:M].reshape(N, Ho, Wo, c2b)
    out3 = out3[:M].reshape(N, Ho, Wo, c3d)
    out = jnp.concatenate([pool, out2, out3], axis=-1)
    return jnp.transpose(out, (0, 3, 1, 2))                          # back to NCHW


# ---------------------------------------------------------------------------
# Parameters (HWIO conv weights, folded eval-mode BN) and pure-JAX reference.
# ---------------------------------------------------------------------------
def make_params(key, in_ch, b2_n1, b2_n3, b3_n1, b3_n1x7, b3_n7x1, b3_n3):
    ks = iter(jax.random.split(key, 40))

    def conv_w(shape, fan_in):
        return jax.random.normal(next(ks), shape, jnp.float32) / np.sqrt(fan_in)

    def bn(c):
        gamma = jax.random.uniform(next(ks), (c,), jnp.float32, minval=0.8, maxval=1.2)
        beta = jax.random.normal(next(ks), (c,), jnp.float32) * 0.1
        mean = jax.random.normal(next(ks), (c,), jnp.float32) * 0.1
        var = jax.random.uniform(next(ks), (c,), jnp.float32, minval=0.8, maxval=1.2)
        scale = gamma / jnp.sqrt(var + _EPS)
        return scale, beta - mean * scale

    p = {}
    p["w2a"] = conv_w((in_ch, b2_n1), in_ch);                 p["s2a"], p["o2a"] = bn(b2_n1)
    p["w2b"] = conv_w((3, 3, b2_n1, b2_n3), 9 * b2_n1);       p["s2b"], p["o2b"] = bn(b2_n3)
    p["w3a"] = conv_w((in_ch, b3_n1), in_ch);                 p["s3a"], p["o3a"] = bn(b3_n1)
    p["w3b"] = conv_w((1, 7, b3_n1, b3_n1x7), 7 * b3_n1);     p["s3b"], p["o3b"] = bn(b3_n1x7)
    p["w3c"] = conv_w((7, 1, b3_n1x7, b3_n7x1), 7 * b3_n1x7); p["s3c"], p["o3c"] = bn(b3_n7x1)
    p["w3d"] = conv_w((3, 3, b3_n7x1, b3_n3), 9 * b3_n7x1);   p["s3d"], p["o3d"] = bn(b3_n3)
    return p


def ref_forward(x_nchw, p):
    """Pure-JAX f32 reference (lax.conv / reduce_window), for correctness."""
    x = jnp.transpose(x_nchw, (0, 2, 3, 1)).astype(jnp.float32)
    dn = ("NHWC", "HWIO", "NHWC")
    hi = jax.lax.Precision.HIGHEST

    def conv(inp, w, strides, pad):
        return jax.lax.conv_general_dilated(inp, w, strides, pad,
                                            dimension_numbers=dn, precision=hi)

    def bnr(y, s, o):
        return jnp.maximum(y * s + o, 0.0)

    pool = jax.lax.reduce_window(x, -jnp.inf, jax.lax.max,
                                 (1, 3, 3, 1), (1, 2, 2, 1), "VALID")

    t2 = bnr(conv(x, p["w2a"][None, None], (1, 1), [(0, 0), (0, 0)]), p["s2a"], p["o2a"])
    out2 = bnr(conv(t2, p["w2b"], (2, 2), [(0, 0), (0, 0)]), p["s2b"], p["o2b"])

    t3 = bnr(conv(x, p["w3a"][None, None], (1, 1), [(0, 0), (0, 0)]), p["s3a"], p["o3a"])
    t3 = bnr(conv(t3, p["w3b"], (1, 1), [(0, 0), (3, 3)]), p["s3b"], p["o3b"])
    t3 = bnr(conv(t3, p["w3c"], (1, 1), [(3, 3), (0, 0)]), p["s3c"], p["o3c"])
    out3 = bnr(conv(t3, p["w3d"], (2, 2), [(0, 0), (0, 0)]), p["s3d"], p["o3d"])

    out = jnp.concatenate([pool, out2, out3], axis=-1)
    return jnp.transpose(out, (0, 3, 1, 2))


if __name__ == "__main__":
    key = jax.random.PRNGKey(0)
    kx, kp = jax.random.split(key)

    # Small, module-consistent sizes (Inception-v4 Reduction-B, scaled down).
    N, Cin, H, W = 2, 32, 16, 16
    b2_n1, b2_n3 = 16, 24
    b3_n1, b3_n1x7, b3_n7x1, b3_n3 = 16, 24, 32, 32

    x = jax.random.normal(kx, (N, Cin, H, W), jnp.float32)
    params = make_params(kp, Cin, b2_n1, b2_n3, b3_n1, b3_n1x7, b3_n7x1, b3_n3)

    out = jax.block_until_ready(reduction_b_v4(x, params))
    ref = jax.block_until_ready(ref_forward(x, params))

    assert out.shape == ref.shape == (N, Cin + b2_n3 + b3_n3, 7, 7), (out.shape, ref.shape)

    out_np, ref_np = np.asarray(out), np.asarray(ref)
    # Per-branch checks (review request).  The pool path is f32/exact; branch2
    # is a 2-deep and branch3 a 4-deep chain of bf16-operand matmuls with f32
    # accumulation, so tolerances cover bf16 operand-rounding accumulation while
    # remaining far below the O(1) errors a tap/shift/layout bug would produce.
    np.testing.assert_allclose(out_np[:, :Cin], ref_np[:, :Cin], rtol=1e-5, atol=1e-5)
    np.testing.assert_allclose(out_np[:, Cin:Cin + b2_n3], ref_np[:, Cin:Cin + b2_n3],
                               rtol=3e-2, atol=3e-2)
    np.testing.assert_allclose(out_np[:, Cin + b2_n3:], ref_np[:, Cin + b2_n3:],
                               rtol=5e-2, atol=5e-2)
    np.testing.assert_allclose(out_np, ref_np, rtol=5e-2, atol=5e-2)

    print("KERNEL_OK")
</pallas_src>

<mosaic_0001>
module attributes {stable_mosaic.version = 11 : i64} {
  func.func @_stage1_kernel(%arg0: i32, %arg1: memref<2x16x16x32xbf16, #tpu.memory_space<vmem>>, %arg2: memref<32x32xbf16, #tpu.memory_space<vmem>>, %arg3: memref<1x16xf32, #tpu.memory_space<vmem>>, %arg4: memref<1x16xf32, #tpu.memory_space<vmem>>, %arg5: memref<1x16xf32, #tpu.memory_space<vmem>>, %arg6: memref<1x16xf32, #tpu.memory_space<vmem>>, %arg7: memref<112x24xbf16, #tpu.memory_space<vmem>>, %arg8: memref<1x24xf32, #tpu.memory_space<vmem>>, %arg9: memref<1x24xf32, #tpu.memory_space<vmem>>, %arg10: memref<168x32xbf16, #tpu.memory_space<vmem>>, %arg11: memref<1x32xf32, #tpu.memory_space<vmem>>, %arg12: memref<1x32xf32, #tpu.memory_space<vmem>>, %arg13: memref<2x16x16x16xbf16, #tpu.memory_space<vmem>>, %arg14: memref<2x16x16x32xbf16, #tpu.memory_space<vmem>>) attributes {dimension_semantics = [#tpu.dimension_semantics<parallel>], iteration_bounds = array<i64: 1>, scalar_prefetch = 0 : i64, scratch_operands = 0 : i64, tpu.core_type = #tpu.core_type<tc>, window_params = [{transform_indices = @transform_0, window_bounds = array<i64: 2, 16, 16, 32>}, {pipeline_mode = #tpu.pipeline_mode<synchronous>, transform_indices = @transform_1, window_bounds = array<i64: 32, 32>}, {pipeline_mode = #tpu.pipeline_mode<synchronous>, transform_indices = @transform_2, window_bounds = array<i64: 1, 16>}, {pipeline_mode = #tpu.pipeline_mode<synchronous>, transform_indices = @transform_3, window_bounds = array<i64: 1, 16>}, {pipeline_mode = #tpu.pipeline_mode<synchronous>, transform_indices = @transform_4, window_bounds = array<i64: 1, 16>}, {pipeline_mode = #tpu.pipeline_mode<synchronous>, transform_indices = @transform_5, window_bounds = array<i64: 1, 16>}, {pipeline_mode = #tpu.pipeline_mode<synchronous>, transform_indices = @transform_6, window_bounds = array<i64: 112, 24>}, {pipeline_mode = #tpu.pipeline_mode<synchronous>, transform_indices = @transform_7, window_bounds = array<i64: 1, 24>}, {pipeline_mode = #tpu.pipeline_mode<synchronous>, transform_indices = @transform_8, window_bounds = array<i64: 1, 24>}, {pipeline_mode = #tpu.pipeline_mode<synchronous>, transform_indices = @transform_9, window_bounds = array<i64: 168, 32>}, {pipeline_mode = #tpu.pipeline_mode<synchronous>, transform_indices = @transform_10, window_bounds = array<i64: 1, 32>}, {pipeline_mode = #tpu.pipeline_mode<synchronous>, transform_indices = @transform_11, window_bounds = array<i64: 1, 32>}, {transform_indices = @transform_12, window_bounds = array<i64: 2, 16, 16, 16>}, {transform_indices = @transform_13, window_bounds = array<i64: 2, 16, 16, 32>}]} {
    %c0 = arith.constant 0 : index
    %c0_0 = arith.constant 0 : index
    %c0_1 = arith.constant 0 : index
    %c0_2 = arith.constant 0 : index
    %0 = vector.load %arg1[%c0, %c0_0, %c0_1, %c0_2] : memref<2x16x16x32xbf16, #tpu.memory_space<vmem>>, vector<2x16x16x32xbf16>
    %1 = vector.shape_cast %0 : vector<2x16x16x32xbf16> to vector<512x32xbf16>
    %c0_3 = arith.constant 0 : index
    %c0_4 = arith.constant 0 : index
    %2 = vector.load %arg2[%c0_3, %c0_4] : memref<32x32xbf16, #tpu.memory_space<vmem>>, vector<32x32xbf16>
    %cst = arith.constant dense<0.000000e+00> : vector<512x32xf32>
    %3 = tpu.matmul %1, %2, %cst {dimension_numbers = #tpu.dot_dimension_numbers<[1], [0], [0], [1], [0, 0, 1, 1], [], []>} : vector<512x32xbf16>, vector<32x32xbf16>, vector<512x32xf32> -> vector<512x32xf32>
    %4 = vector.extract_strided_slice %3 {offsets = [0, 0], sizes = [512, 16], strides = [1, 1]} : vector<512x32xf32> to vector<512x16xf32>
    %c0_5 = arith.constant 0 : index
    %c0_6 = arith.constant 0 : index
    %5 = vector.load %arg3[%c0_5, %c0_6] : memref<1x16xf32, #tpu.memory_space<vmem>>, vector<1x16xf32>
    %6 = vector.broadcast %5 : vector<1x16xf32> to vector<512x16xf32>
    %7 = arith.mulf %4, %6 : vector<512x16xf32>
    %c0_7 = arith.constant 0 : index
    %c0_8 = arith.constant 0 : index
    %8 = vector.load %arg4[%c0_7, %c0_8] : memref<1x16xf32, #tpu.memory_space<vmem>>, vector<1x16xf32>
    %9 = vector.broadcast %8 : vector<1x16xf32> to vector<512x16xf32>
    %10 = arith.addf %7, %9 : vector<512x16xf32>
    %cst_9 = arith.constant 0.000000e+00 : f32
    %11 = vector.broadcast %cst_9 : f32 to vector<512x16xf32>
    %12 = arith.maximumf %10, %11 : vector<512x16xf32>
    %13 = vector.shape_cast %12 : vector<512x16xf32> to vector<2x16x16x16xf32>
    %14 = arith.truncf %13 : vector<2x16x16x16xf32> to vector<2x16x16x16xbf16>
    %c0_10 = arith.constant 0 : index
    %c0_11 = arith.constant 0 : index
    %c0_12 = arith.constant 0 : index
    %c0_13 = arith.constant 0 : index
    %15 = vector.load %arg13[%c0_10, %c0_11, %c0_12, %c0_13] : memref<2x16x16x16xbf16, #tpu.memory_space<vmem>>, vector<2x16x16x16xbf16>
    tpu.vector_store %arg13[%c0_10, %c0_11, %c0_12, %c0_13], %14 {strides = array<i32>} : memref<2x16x16x16xbf16, #tpu.memory_space<vmem>>, vector<2x16x16x16xbf16>,
    %16 = vector.extract_strided_slice %3 {offsets = [0, 16], sizes = [512, 16], strides = [1, 1]} : vector<512x32xf32> to vector<512x16xf32>
    %c0_14 = arith.constant 0 : index
    %c0_15 = arith.constant 0 : index
    %17 = vector.load %arg5[%c0_14, %c0_15] : memref<1x16xf32, #tpu.memory_space<vmem>>, vector<1x16xf32>
    %18 = vector.broadcast %17 : vector<1x16xf32> to vector<512x16xf32>
    %19 = arith.mulf %16, %18 : vector<512x16xf32>
    %c0_16 = arith.constant 0 : index
    %c0_17 = arith.constant 0 : index
    %20 = vector.load %arg6[%c0_16, %c0_17] : memref<1x16xf32, #tpu.memory_space<vmem>>, vector<1x16xf32>
    %21 = vector.broadcast %20 : vector<1x16xf32> to vector<512x16xf32>
    %22 = arith.addf %19, %21 : vector<512x16xf32>
    %cst_18 = arith.constant 0.000000e+00 : f32
    %23 = vector.broadcast %cst_18 : f32 to vector<512x16xf32>
    %24 = arith.maximumf %22, %23 : vector<512x16xf32>
    %25 = arith.truncf %24 : vector<512x16xf32> to vector<512x16xbf16>
    %26 = vector.shape_cast %25 : vector<512x16xbf16> to vector<2x16x16x16xbf16>
    %cst_19 = arith.constant 0.000000e+00 : bf16
    %27 = vector.broadcast %cst_19 : bf16 to vector<2x16x3x16xbf16>
    %28 = vector.extract_strided_slice %26 {offsets = [0, 0, 0, 0], sizes = [2, 16, 13, 16], strides = [1, 1, 1, 1]} : vector<2x16x16x16xbf16> to vector<2x16x13x16xbf16>
    %29 = tpu.concatenate %27, %28 in 2 : vector<2x16x3x16xbf16>, vector<2x16x13x16xbf16> -> vector<2x16x16x16xbf16>
    %cst_20 = arith.constant 0.000000e+00 : bf16
    %30 = vector.broadcast %cst_20 : bf16 to vector<2x16x2x16xbf16>
    %31 = vector.extract_strided_slice %26 {offsets = [0, 0, 0, 0], sizes = [2, 16, 14, 16], strides = [1, 1, 1, 1]} : vector<2x16x16x16xbf16> to vector<2x16x14x16xbf16>
    %32 = tpu.concatenate %30, %31 in 2 : vector<2x16x2x16xbf16>, vector<2x16x14x16xbf16> -> vector<2x16x16x16xbf16>
    %cst_21 = arith.constant 0.000000e+00 : bf16
    %33 = vector.broadcast %cst_21 : bf16 to vector<2x16x1x16xbf16>
    %34 = vector.extract_strided_slice %26 {offsets = [0, 0, 0, 0], sizes = [2, 16, 15, 16], strides = [1, 1, 1, 1]} : vector<2x16x16x16xbf16> to vector<2x16x15x16xbf16>
    %35 = tpu.concatenate %33, %34 in 2 : vector<2x16x1x16xbf16>, vector<2x16x15x16xbf16> -> vector<2x16x16x16xbf16>
    %cst_22 = arith.constant 0.000000e+00 : bf16
    %36 = vector.broadcast %cst_22 : bf16 to vector<2x16x1x16xbf16>
    %37 = vector.extract_strided_slice %26 {offsets = [0, 0, 1, 0], sizes = [2, 16, 15, 16], strides = [1, 1, 1, 1]} : vector<2x16x16x16xbf16> to vector<2x16x15x16xbf16>
    %38 = tpu.concatenate %37, %36 in 2 : vector<2x16x15x16xbf16>, vector<2x16x1x16xbf16> -> vector<2x16x16x16xbf16>
    %cst_23 = arith.constant 0.000000e+00 : bf16
    %39 = vector.broadcast %cst_23 : bf16 to vector<2x16x2x16xbf16>
    %40 = vector.extract_strided_slice %26 {offsets = [0, 0, 2, 0], sizes = [2, 16, 14, 16], strides = [1, 1, 1, 1]} : vector<2x16x16x16xbf16> to vector<2x16x14x16xbf16>
    %41 = tpu.concatenate %40, %39 in 2 : vector<2x16x14x16xbf16>, vector<2x16x2x16xbf16> -> vector<2x16x16x16xbf16>
    %cst_24 = arith.constant 0.000000e+00 : bf16
    %42 = vector.broadcast %cst_24 : bf16 to vector<2x16x3x16xbf16>
    %43 = vector.extract_strided_slice %26 {offsets = [0, 0, 3, 0], sizes = [2, 16, 13, 16], strides = [1, 1, 1, 1]} : vector<2x16x16x16xbf16> to vector<2x16x13x16xbf16>
    %44 = tpu.concatenate %43, %42 in 2 : vector<2x16x13x16xbf16>, vector<2x16x3x16xbf16> -> vector<2x16x16x16xbf16>
    %45 = tpu.concatenate %29, %32, %35, %26, %38, %41, %44 in 3 : vector<2x16x16x16xbf16>, vector<2x16x16x16xbf16>, vector<2x16x16x16xbf16>, vector<2x16x16x16xbf16>, vector<2x16x16x16xbf16>, vector<2x16x16x16xbf16>, vector<2x16x16x16xbf16> -> vector<2x16x16x112xbf16>
    %46 = vector.shape_cast %45 : vector<2x16x16x112xbf16> to vector<512x112xbf16>
    %c0_25 = arith.constant 0 : index
    %c0_26 = arith.constant 0 : index
    %47 = vector.load %arg7[%c0_25, %c0_26] : memref<112x24xbf16, #tpu.memory_space<vmem>>, vector<112x24xbf16>
    %cst_27 = arith.constant dense<0.000000e+00> : vector<512x24xf32>
    %48 = tpu.matmul %46, %47, %cst_27 {dimension_numbers = #tpu.dot_dimension_numbers<[1], [0], [0], [1], [0, 0, 1, 1], [], []>} : vector<512x112xbf16>, vector<112x24xbf16>, vector<512x24xf32> -> vector<512x24xf32>
    %c0_28 = arith.constant 0 : index
    %c0_29 = arith.constant 0 : index
    %49 = vector.load %arg8[%c0_28, %c0_29] : memref<1x24xf32, #tpu.memory_space<vmem>>, vector<1x24xf32>
    %50 = vector.broadcast %49 : vector<1x24xf32> to vector<512x24xf32>
    %51 = arith.mulf %48, %50 : vector<512x24xf32>
    %c0_30 = arith.constant 0 : index
    %c0_31 = arith.constant 0 : index
    %52 = vector.load %arg9[%c0_30, %c0_31] : memref<1x24xf32, #tpu.memory_space<vmem>>, vector<1x24xf32>
    %53 = vector.broadcast %52 : vector<1x24xf32> to vector<512x24xf32>
    %54 = arith.addf %51, %53 : vector<512x24xf32>
    %cst_32 = arith.constant 0.000000e+00 : f32
    %55 = vector.broadcast %cst_32 : f32 to vector<512x24xf32>
    %56 = arith.maximumf %54, %55 : vector<512x24xf32>
    %57 = arith.truncf %56 : vector<512x24xf32> to vector<512x24xbf16>
    %58 = vector.shape_cast %57 : vector<512x24xbf16> to vector<2x16x16x24xbf16>
    %cst_33 = arith.constant 0.000000e+00 : bf16
    %59 = vector.broadcast %cst_33 : bf16 to vector<2x3x16x24xbf16>
    %60 = vector.extract_strided_slice %58 {offsets = [0, 0, 0, 0], sizes = [2, 13, 16, 24], strides = [1, 1, 1, 1]} : vector<2x16x16x24xbf16> to vector<2x13x16x24xbf16>
    %61 = tpu.concatenate %59, %60 in 1 : vector<2x3x16x24xbf16>, vector<2x13x16x24xbf16> -> vector<2x16x16x24xbf16>
    %cst_34 = arith.constant 0.000000e+00 : bf16
    %62 = vector.broadcast %cst_34 : bf16 to vector<2x2x16x24xbf16>
    %63 = vector.extract_strided_slice %58 {offsets = [0, 0, 0, 0], sizes = [2, 14, 16, 24], strides = [1, 1, 1, 1]} : vector<2x16x16x24xbf16> to vector<2x14x16x24xbf16>
    %64 = tpu.concatenate %62, %63 in 1 : vector<2x2x16x24xbf16>, vector<2x14x16x24xbf16> -> vector<2x16x16x24xbf16>
    %cst_35 = arith.constant 0.000000e+00 : bf16
    %65 = vector.broadcast %cst_35 : bf16 to vector<2x1x16x24xbf16>
    %66 = vector.extract_strided_slice %58 {offsets = [0, 0, 0, 0], sizes = [2, 15, 16, 24], strides = [1, 1, 1, 1]} : vector<2x16x16x24xbf16> to vector<2x15x16x24xbf16>
    %67 = tpu.concatenate %65, %66 in 1 : vector<2x1x16x24xbf16>, vector<2x15x16x24xbf16> -> vector<2x16x16x24xbf16>
    %cst_36 = arith.constant 0.000000e+00 : bf16
    %68 = vector.broadcast %cst_36 : bf16 to vector<2x1x16x24xbf16>
    %69 = vector.extract_strided_slice %58 {offsets = [0, 1, 0, 0], sizes = [2, 15, 16, 24], strides = [1, 1, 1, 1]} : vector<2x16x16x24xbf16> to vector<2x15x16x24xbf16>
    %70 = tpu.concatenate %69, %68 in 1 : vector<2x15x16x24xbf16>, vector<2x1x16x24xbf16> -> vector<2x16x16x24xbf16>
    %cst_37 = arith.constant 0.000000e+00 : bf16
    %71 = vector.broadcast %cst_37 : bf16 to vector<2x2x16x24xbf16>
    %72 = vector.extract_strided_slice %58 {offsets = [0, 2, 0, 0], sizes = [2, 14, 16, 24], strides = [1, 1, 1, 1]} : vector<2x16x16x24xbf16> to vector<2x14x16x24xbf16>
    %73 = tpu.concatenate %72, %71 in 1 : vector<2x14x16x24xbf16>, vector<2x2x16x24xbf16> -> vector<2x16x16x24xbf16>
    %cst_38 = arith.constant 0.000000e+00 : bf16
    %74 = vector.broadcast %cst_38 : bf16 to vector<2x3x16x24xbf16>
    %75 = vector.extract_strided_slice %58 {offsets = [0, 3, 0, 0], sizes = [2, 13, 16, 24], strides = [1, 1, 1, 1]} : vector<2x16x16x24xbf16> to vector<2x13x16x24xbf16>
    %76 = tpu.concatenate %75, %74 in 1 : vector<2x13x16x24xbf16>, vector<2x3x16x24xbf16> -> vector<2x16x16x24xbf16>
    %77 = tpu.concatenate %61, %64, %67, %58, %70, %73, %76 in 3 : vector<2x16x16x24xbf16>, vector<2x16x16x24xbf16>, vector<2x16x16x24xbf16>, vector<2x16x16x24xbf16>, vector<2x16x16x24xbf16>, vector<2x16x16x24xbf16>, vector<2x16x16x24xbf16> -> vector<2x16x16x168xbf16>
    %78 = vector.shape_cast %77 : vector<2x16x16x168xbf16> to vector<512x168xbf16>
    %c0_39 = arith.constant 0 : index
    %c0_40 = arith.constant 0 : index
    %79 = vector.load %arg10[%c0_39, %c0_40] : memref<168x32xbf16, #tpu.memory_space<vmem>>, vector<168x32xbf16>
    %cst_41 = arith.constant dense<0.000000e+00> : vector<512x32xf32>
    %80 = tpu.matmul %78, %79, %cst_41 {dimension_numbers = #tpu.dot_dimension_numbers<[1], [0], [0], [1], [0, 0, 1, 1], [], []>} : vector<512x168xbf16>, vector<168x32xbf16>, vector<512x32xf32> -> vector<512x32xf32>
    %c0_42 = arith.constant 0 : index
    %c0_43 = arith.constant 0 : index
    %81 = vector.load %arg11[%c0_42, %c0_43] : memref<1x32xf32, #tpu.memory_space<vmem>>, vector<1x32xf32>
    %82 = vector.broadcast %81 : vector<1x32xf32> to vector<512x32xf32>
    %83 = arith.mulf %80, %82 : vector<512x32xf32>
    %c0_44 = arith.constant 0 : index
    %c0_45 = arith.constant 0 : index
    %84 = vector.load %arg12[%c0_44, %c0_45] : memref<1x32xf32, #tpu.memory_space<vmem>>, vector<1x32xf32>
    %85 = vector.broadcast %84 : vector<1x32xf32> to vector<512x32xf32>
    %86 = arith.addf %83, %85 : vector<512x32xf32>
    %cst_46 = arith.constant 0.000000e+00 : f32
    %87 = vector.broadcast %cst_46 : f32 to vector<512x32xf32>
    %88 = arith.maximumf %86, %87 : vector<512x32xf32>
    %89 = vector.shape_cast %88 : vector<512x32xf32> to vector<2x16x16x32xf32>
    %90 = arith.truncf %89 : vector<2x16x16x32xf32> to vector<2x16x16x32xbf16>
    %c0_47 = arith.constant 0 : index
    %c0_48 = arith.constant 0 : index
    %c0_49 = arith.constant 0 : index
    %c0_50 = arith.constant 0 : index
    %91 = vector.load %arg14[%c0_47, %c0_48, %c0_49, %c0_50] : memref<2x16x16x32xbf16, #tpu.memory_space<vmem>>, vector<2x16x16x32xbf16>
    tpu.vector_store %arg14[%c0_47, %c0_48, %c0_49, %c0_50], %90 {strides = array<i32>} : memref<2x16x16x32xbf16, #tpu.memory_space<vmem>>, vector<2x16x16x32xbf16>,
    return
  }
  func.func @transform_0(%arg0: i32) -> (i32, i32, i32, i32) {
    %c0_i32 = arith.constant 0 : i32
    %c0_i32_0 = arith.constant 0 : i32
    %c0_i32_1 = arith.constant 0 : i32
    %c0_i32_2 = arith.constant 0 : i32
    return %arg0, %c0_i32, %c0_i32_0, %c0_i32_1 : i32, i32, i32, i32
  }
  func.func @transform_1(%arg0: i32) -> (i32, i32) {
    %c0_i32 = arith.constant 0 : i32
    %c0_i32_0 = arith.constant 0 : i32
    %c0_i32_1 = arith.constant 0 : i32
    return %c0_i32, %c0_i32_0 : i32, i32
  }
  func.func @transform_2(%arg0: i32) -> (i32, i32) {
    %c0_i32 = arith.constant 0 : i32
    %c0_i32_0 = arith.constant 0 : i32
    %c0_i32_1 = arith.constant 0 : i32
    return %c0_i32, %c0_i32_0 : i32, i32
  }
  func.func @transform_3(%arg0: i32) -> (i32, i32) {
    %c0_i32 = arith.constant 0 : i32
    %c0_i32_0 = arith.constant 0 : i32
    %c0_i32_1 = arith.constant 0 : i32
    return %c0_i32, %c0_i32_0 : i32, i32
  }
  func.func @transform_4(%arg0: i32) -> (i32, i32) {
    %c0_i32 = arith.constant 0 : i32
    %c0_i32_0 = arith.constant 0 : i32
    %c0_i32_1 = arith.constant 0 : i32
    return %c0_i32, %c0_i32_0 : i32, i32
  }
  func.func @transform_5(%arg0: i32) -> (i32, i32) {
    %c0_i32 = arith.constant 0 : i32
    %c0_i32_0 = arith.constant 0 : i32
    %c0_i32_1 = arith.constant 0 : i32
    return %c0_i32, %c0_i32_0 : i32, i32
  }
  func.func @transform_6(%arg0: i32) -> (i32, i32) {
    %c0_i32 = arith.constant 0 : i32
    %c0_i32_0 = arith.constant 0 : i32
    %c0_i32_1 = arith.constant 0 : i32
    return %c0_i32, %c0_i32_0 : i32, i32
  }
  func.func @transform_7(%arg0: i32) -> (i32, i32) {
    %c0_i32 = arith.constant 0 : i32
    %c0_i32_0 = arith.constant 0 : i32
    %c0_i32_1 = arith.constant 0 : i32
    return %c0_i32, %c0_i32_0 : i32, i32
  }
  func.func @transform_8(%arg0: i32) -> (i32, i32) {
    %c0_i32 = arith.constant 0 : i32
    %c0_i32_0 = arith.constant 0 : i32
    %c0_i32_1 = arith.constant 0 : i32
    return %c0_i32, %c0_i32_0 : i32, i32
  }
  func.func @transform_9(%arg0: i32) -> (i32, i32) {
    %c0_i32 = arith.constant 0 : i32
    %c0_i32_0 = arith.constant 0 : i32
    %c0_i32_1 = arith.constant 0 : i32
    return %c0_i32, %c0_i32_0 : i32, i32
  }
  func.func @transform_10(%arg0: i32) -> (i32, i32) {
    %c0_i32 = arith.constant 0 : i32
    %c0_i32_0 = arith.constant 0 : i32
    %c0_i32_1 = arith.constant 0 : i32
    return %c0_i32, %c0_i32_0 : i32, i32
  }
  func.func @transform_11(%arg0: i32) -> (i32, i32) {
    %c0_i32 = arith.constant 0 : i32
    %c0_i32_0 = arith.constant 0 : i32
    %c0_i32_1 = arith.constant 0 : i32
    return %c0_i32, %c0_i32_0 : i32, i32
  }
  func.func @transform_12(%arg0: i32) -> (i32, i32, i32, i32) {
    %c0_i32 = arith.constant 0 : i32
    %c0_i32_0 = arith.constant 0 : i32
    %c0_i32_1 = arith.constant 0 : i32
    %c0_i32_2 = arith.constant 0 : i32
    return %arg0, %c0_i32, %c0_i32_0, %c0_i32_1 : i32, i32, i32, i32
  }
  func.func @transform_13(%arg0: i32) -> (i32, i32, i32, i32) {
    %c0_i32 = arith.constant 0 : i32
    %c0_i32_0 = arith.constant 0 : i32
    %c0_i32_1 = arith.constant 0 : i32
    %c0_i32_2 = arith.constant 0 : i32
    return %arg0, %c0_i32, %c0_i32_0, %c0_i32_1 : i32, i32, i32, i32
  }
}

module attributes {stable_mosaic.version = 11 : i64} {
  func.func @_stage2_kernel(%arg0: i32, %arg1: memref<104x144xbf16, #tpu.memory_space<vmem>>, %arg2: memref<104x288xbf16, #tpu.memory_space<vmem>>, %arg3: memref<144x24xbf16, #tpu.memory_space<vmem>>, %arg4: memref<1x24xf32, #tpu.memory_space<vmem>>, %arg5: memref<1x24xf32, #tpu.memory_space<vmem>>, %arg6: memref<288x32xbf16, #tpu.memory_space<vmem>>, %arg7: memref<1x32xf32, #tpu.memory_space<vmem>>, %arg8: memref<1x32xf32, #tpu.memory_space<vmem>>, %arg9: memref<104x24xf32, #tpu.memory_space<vmem>>, %arg10: memref<104x32xf32, #tpu.memory_space<vmem>>) attributes {dimension_semantics = [#tpu.dimension_semantics<parallel>], iteration_bounds = array<i64: 1>, scalar_prefetch = 0 : i64, scratch_operands = 0 : i64, tpu.core_type = #tpu.core_type<tc>, window_params = [{transform_indices = @transform_0, window_bounds = array<i64: 104, 144>}, {transform_indices = @transform_1, window_bounds = array<i64: 104, 288>}, {pipeline_mode = #tpu.pipeline_mode<synchronous>, transform_indices = @transform_2, window_bounds = array<i64: 144, 24>}, {pipeline_mode = #tpu.pipeline_mode<synchronous>, transform_indices = @transform_3, window_bounds = array<i64: 1, 24>}, {pipeline_mode = #tpu.pipeline_mode<synchronous>, transform_indices = @transform_4, window_bounds = array<i64: 1, 24>}, {pipeline_mode = #tpu.pipeline_mode<synchronous>, transform_indices = @transform_5, window_bounds = array<i64: 288, 32>}, {pipeline_mode = #tpu.pipeline_mode<synchronous>, transform_indices = @transform_6, window_bounds = array<i64: 1, 32>}, {pipeline_mode = #tpu.pipeline_mode<synchronous>, transform_indices = @transform_7, window_bounds = array<i64: 1, 32>}, {transform_indices = @transform_8, window_bounds = array<i64: 104, 24>}, {transform_indices = @transform_9, window_bounds = array<i64: 104, 32>}]} {
    %c0 = arith.constant 0 : index
    %c0_0 = arith.constant 0 : index
    %0 = vector.load %arg1[%c0, %c0_0] : memref<104x144xbf16, #tpu.memory_space<vmem>>, vector<104x144xbf16>
    %c0_1 = arith.constant 0 : index
    %c0_2 = arith.constant 0 : index
    %1 = vector.load %arg3[%c0_1, %c0_2] : memref<144x24xbf16, #tpu.memory_space<vmem>>, vector<144x24xbf16>
    %cst = arith.constant dense<0.000000e+00> : vector<104x24xf32>
    %2 = tpu.matmul %0, %1, %cst {dimension_numbers = #tpu.dot_dimension_numbers<[1], [0], [0], [1], [0, 0, 1, 1], [], []>} : vector<104x144xbf16>, vector<144x24xbf16>, vector<104x24xf32> -> vector<104x24xf32>
    %c0_3 = arith.constant 0 : index
    %c0_4 = arith.constant 0 : index
    %3 = vector.load %arg4[%c0_3, %c0_4] : memref<1x24xf32, #tpu.memory_space<vmem>>, vector<1x24xf32>
    %4 = vector.broadcast %3 : vector<1x24xf32> to vector<104x24xf32>
    %5 = arith.mulf %2, %4 : vector<104x24xf32>
    %c0_5 = arith.constant 0 : index
    %c0_6 = arith.constant 0 : index
    %6 = vector.load %arg5[%c0_5, %c0_6] : memref<1x24xf32, #tpu.memory_space<vmem>>, vector<1x24xf32>
    %7 = vector.broadcast %6 : vector<1x24xf32> to vector<104x24xf32>
    %8 = arith.addf %5, %7 : vector<104x24xf32>
    %cst_7 = arith.constant 0.000000e+00 : f32
    %9 = vector.broadcast %cst_7 : f32 to vector<104x24xf32>
    %10 = arith.maximumf %8, %9 : vector<104x24xf32>
    %c0_8 = arith.constant 0 : index
    %c0_9 = arith.constant 0 : index
    %11 = vector.load %arg9[%c0_8, %c0_9] : memref<104x24xf32, #tpu.memory_space<vmem>>, vector<104x24xf32>
    tpu.vector_store %arg9[%c0_8, %c0_9], %10 {strides = array<i32>} : memref<104x24xf32, #tpu.memory_space<vmem>>, vector<104x24xf32>,
    %c0_10 = arith.constant 0 : index
    %c0_11 = arith.constant 0 : index
    %12 = vector.load %arg2[%c0_10, %c0_11] : memref<104x288xbf16, #tpu.memory_space<vmem>>, vector<104x288xbf16>
    %c0_12 = arith.constant 0 : index
    %c0_13 = arith.constant 0 : index
    %13 = vector.load %arg6[%c0_12, %c0_13] : memref<288x32xbf16, #tpu.memory_space<vmem>>, vector<288x32xbf16>
    %cst_14 = arith.constant dense<0.000000e+00> : vector<104x32xf32>
    %14 = tpu.matmul %12, %13, %cst_14 {dimension_numbers = #tpu.dot_dimension_numbers<[1], [0], [0], [1], [0, 0, 1, 1], [], []>} : vector<104x288xbf16>, vector<288x32xbf16>, vector<104x32xf32> -> vector<104x32xf32>
    %c0_15 = arith.constant 0 : index
    %c0_16 = arith.constant 0 : index
    %15 = vector.load %arg7[%c0_15, %c0_16] : memref<1x32xf32, #tpu.memory_space<vmem>>, vector<1x32xf32>
    %16 = vector.broadcast %15 : vector<1x32xf32> to vector<104x32xf32>
    %17 = arith.mulf %14, %16 : vector<104x32xf32>
    %c0_17 = arith.constant 0 : index
    %c0_18 = arith.constant 0 : index
    %18 = vector.load %arg8[%c0_17, %c0_18] : memref<1x32xf32, #tpu.memory_space<vmem>>, vector<1x32xf32>
    %19 = vector.broadcast %18 : vector<1x32xf32> to vector<104x32xf32>
    %20 = arith.addf %17, %19 : vector<104x32xf32>
    %cst_19 = arith.constant 0.000000e+00 : f32
    %21 = vector.broadcast %cst_19 : f32 to vector<104x32xf32>
    %22 = arith.maximumf %20, %21 : vector<104x32xf32>
    %c0_20 = arith.constant 0 : index
    %c0_21 = arith.constant 0 : index
    %23 = vector.load %arg10[%c0_20, %c0_21] : memref<104x32xf32, #tpu.memory_space<vmem>>, vector<104x32xf32>
    tpu.vector_store %arg10[%c0_20, %c0_21], %22 {strides = array<i32>} : memref<104x32xf32, #tpu.memory_space<vmem>>, vector<104x32xf32>,
    return
  }
  func.func @transform_0(%arg0: i32) -> (i32, i32) {
    %c0_i32 = arith.constant 0 : i32
    %c0_i32_0 = arith.constant 0 : i32
    return %arg0, %c0_i32 : i32, i32
  }
  func.func @transform_1(%arg0: i32) -> (i32, i32) {
    %c0_i32 = arith.constant 0 : i32
    %c0_i32_0 = arith.constant 0 : i32
    return %arg0, %c0_i32 : i32, i32
  }
  func.func @transform_2(%arg0: i32) -> (i32, i32) {
    %c0_i32 = arith.constant 0 : i32
    %c0_i32_0 = arith.constant 0 : i32
    %c0_i32_1 = arith.constant 0 : i32
    return %c0_i32, %c0_i32_0 : i32, i32
  }
  func.func @transform_3(%arg0: i32) -> (i32, i32) {
    %c0_i32 = arith.constant 0 : i32
    %c0_i32_0 = arith.constant 0 : i32
    %c0_i32_1 = arith.constant 0 : i32
    return %c0_i32, %c0_i32_0 : i32, i32
  }
  func.func @transform_4(%arg0: i32) -> (i32, i32) {
    %c0_i32 = arith.constant 0 : i32
    %c0_i32_0 = arith.constant 0 : i32
    %c0_i32_1 = arith.constant 0 : i32
    return %c0_i32, %c0_i32_0 : i32, i32
  }
  func.func @transform_5(%arg0: i32) -> (i32, i32) {
    %c0_i32 = arith.constant 0 : i32
    %c0_i32_0 = arith.constant 0 : i32
    %c0_i32_1 = arith.constant 0 : i32
    return %c0_i32, %c0_i32_0 : i32, i32
  }
  func.func @transform_6(%arg0: i32) -> (i32, i32) {
    %c0_i32 = arith.constant 0 : i32
    %c0_i32_0 = arith.constant 0 : i32
    %c0_i32_1 = arith.constant 0 : i32
    return %c0_i32, %c0_i32_0 : i32, i32
  }
  func.func @transform_7(%arg0: i32) -> (i32, i32) {
    %c0_i32 = arith.constant 0 : i32
    %c0_i32_0 = arith.constant 0 : i32
    %c0_i32_1 = arith.constant 0 : i32
    return %c0_i32, %c0_i32_0 : i32, i32
  }
  func.func @transform_8(%arg0: i32) -> (i32, i32) {
    %c0_i32 = arith.constant 0 : i32
    %c0_i32_0 = arith.constant 0 : i32
    return %arg0, %c0_i32 : i32, i32
  }
  func.func @transform_9(%arg0: i32) -> (i32, i32) {
    %c0_i32 = arith.constant 0 : i32
    %c0_i32_0 = arith.constant 0 : i32
    return %arg0, %c0_i32 : i32, i32
  }
}

</mosaic_0001>

<llo_original>
// kernel: reduction_b_v4.3
$region0: #{reduction_b_v4.3}
  #allocation0 [shape = 'u32[]', space=smem, size = 0x4, offset = 0x4, fixed_abs, tag = 'smem constant byte address 0x4 - core index']
  #allocation1 [shape = 'u32[72,128]{1,0:T(1,128)}', space=vmem, size = 0x9000, scoped, tag = 'internal scratch']
  %s0 = inlined_call_operand.vmem [shape: bf16[104,144], index: 0, kind: input, shape index: {}]
  %s1 = inlined_call_operand.vmem [shape: bf16[104,288], index: 1, kind: input, shape index: {}]
  %s2 = inlined_call_operand.vmem [shape: bf16[144,24], index: 2, kind: input, shape index: {}]
  %s3 = inlined_call_operand.vmem [shape: f32[1,24], index: 3, kind: input, shape index: {}]
  %s4 = inlined_call_operand.vmem [shape: f32[1,24], index: 4, kind: input, shape index: {}]
  %s5 = inlined_call_operand.vmem [shape: bf16[288,32], index: 5, kind: input, shape index: {}]
  %s6 = inlined_call_operand.vmem [shape: f32[1,32], index: 6, kind: input, shape index: {}]
  %s7 = inlined_call_operand.vmem [shape: f32[1,32], index: 7, kind: input, shape index: {}]
  %s8 = inlined_call_operand.vmem [shape: f32[104,24], index: 8, kind: output, shape index: {0}]
  %s9 = inlined_call_operand.vmem [shape: f32[104,32], index: 9, kind: output, shape index: {1}]
  %10 = xla_tuple %s8, %s9
  %s11 = sld [smem:[#allocation0]]
  $region50: #{reduction_b_v4.3} parent=0
    _
  %s13 = ssub.s32 1, %s11
  %s14 = scalar_select 0, %s13, %s11
  // Predicated region
  $region2: #{reduction_b_v4.3} parent=0 // pred_check
    _
  $region3: #{reduction_b_v4.3} parent=0 // pred_check_branch
    %16 = sbr.rel (0) target = $region5
  $region4: #{reduction_b_v4.3} parent=0 // pred_region
    _
  $region5: #{reduction_b_v4.3} parent=0 // pred_fallthru
    _
  // Predicated region
  $region6: #{reduction_b_v4.3} parent=0 // pred_check
    _
  $region7: #{reduction_b_v4.3} parent=0 // pred_check_branch
    %18 = sbr.rel (0) target = $region9
  $region8: #{reduction_b_v4.3} parent=0 // pred_region
    _
  $region9: #{reduction_b_v4.3} parent=0 // pred_fallthru
    _
  // Predicated region
  $region10: #{reduction_b_v4.3} parent=0 // pred_check
    _
  $region11: #{reduction_b_v4.3} parent=0 // pred_check_branch
    %20 = sbr.rel (0) target = $region13
  $region12: #{reduction_b_v4.3} parent=0 // pred_region
    _
  $region13: #{reduction_b_v4.3} parent=0 // pred_fallthru
    _
  // Predicated region
  $region14: #{reduction_b_v4.3} parent=0 // pred_check
    _
  $region15: #{reduction_b_v4.3} parent=0 // pred_check_branch
    %22 = sbr.rel (0) target = $region17
  $region16: #{reduction_b_v4.3} parent=0 // pred_region
    _
  $region17: #{reduction_b_v4.3} parent=0 // pred_fallthru
    _
  // Predicated region
  $region18: #{reduction_b_v4.3} parent=0 // pred_check
    _
  $region19: #{reduction_b_v4.3} parent=0 // pred_check_branch
    %24 = sbr.rel (0) target = $region21
  $region20: #{reduction_b_v4.3} parent=0 // pred_region
    _
  $region21: #{reduction_b_v4.3} parent=0 // pred_fallthru
    _
  // Predicated region
  $region22: #{reduction_b_v4.3} parent=0 // pred_check
    _
  $region23: #{reduction_b_v4.3} parent=0 // pred_check_branch
    %26 = sbr.rel (0) target = $region25
  $region24: #{reduction_b_v4.3} parent=0 // pred_region
    _
  $region25: #{reduction_b_v4.3} parent=0 // pred_fallthru
    _
  // Predicated region
  $region26: #{reduction_b_v4.3} parent=0 // pred_check
    _
  $region27: #{reduction_b_v4.3} parent=0 // pred_check_branch
    %28 = sbr.rel (0) target = $region29
  $region28: #{reduction_b_v4.3} parent=0 // pred_region
    _
  $region29: #{reduction_b_v4.3} parent=0 // pred_fallthru
    _
  // Predicated region
  $region30: #{reduction_b_v4.3} parent=0 // pred_check
    _
  $region31: #{reduction_b_v4.3} parent=0 // pred_check_branch
    %30 = sbr.rel (0) target = $region33
  $region32: #{reduction_b_v4.3} parent=0 // pred_region
    _
  $region33: #{reduction_b_v4.3} parent=0 // pred_fallthru
    _
  %v32 = vld [vmem:[%s0] sm:$0xff]
  %v33 = vld [vmem:[%s0 + $0x8] sm:$0xff]
  %v34 = vld [vmem:[%s0 + $0x10] sm:$0xff]
  %v35 = vld [vmem:[%s0 + $0x18] sm:$0xff]
  %v36 = vld [vmem:[%s0 + $0x20] sm:$0xff]
  %v37 = vld [vmem:[%s0 + $0x28] sm:$0xff]
  %v38 = vld [vmem:[%s0 + $0x30] sm:$0xff]
  %v39 = vld [vmem:[%s0 + $0x38] sm:$0xff]
  %v40 = vld [vmem:[%s0 + $0x40] sm:$0xff]
  %v41 = vld [vmem:[%s0 + $0x48] sm:$0xff]
  %v42 = vld [vmem:[%s0 + $0x50] sm:$0xff]
  %v43 = vld [vmem:[%s0 + $0x58] sm:$0xff]
  %v44 = vld [vmem:[%s0 + $0x60] sm:$0xff]
  %v45 = vld [vmem:[%s2] sm:$0xf]
  %v46 = vld [vmem:[%s2 + $0x4] sm:$0xf]
  %v47 = vld [vmem:[%s2 + $0x8] sm:$0xf]
  %v48 = vld [vmem:[%s2 + $0xc] sm:$0xf]
  %v49 = vld [vmem:[%s2 + $0x10] sm:$0xf]
  %v50 = vld [vmem:[%s2 + $0x14] sm:$0xf]
  %v51 = vld [vmem:[%s2 + $0x18] sm:$0xf]
  %v52 = vld [vmem:[%s2 + $0x1c] sm:$0xf]
  %v53 = vld [vmem:[%s2 + $0x20] sm:$0xf]
  %v54 = vld [vmem:[%s2 + $0x24] sm:$0xf]
  %v55 = vld [vmem:[%s2 + $0x28] sm:$0xf]
  %v56 = vld [vmem:[%s2 + $0x2c] sm:$0xf]
  %v57 = vld [vmem:[%s2 + $0x30] sm:$0xf]
  %v58 = vld [vmem:[%s2 + $0x34] sm:$0xf]
  %v59 = vld [vmem:[%s2 + $0x38] sm:$0xf]
  %v60 = vld [vmem:[%s2 + $0x3c] sm:$0xf]
  %v61 = vld [vmem:[%s2 + $0x40] sm:$0xf]
  %v62 = vld [vmem:[%s2 + $0x44] sm:$0xf]
  %v76 = vunpack.c.l.b16 %v32
  %v77 = vunpack.c.h.b16 %v32
  %v78 = vunpack.c.l.b16 %v33
  %v79 = vunpack.c.h.b16 %v33
  %v80 = vunpack.c.l.b16 %v34
  %v81 = vunpack.c.h.b16 %v34
  %v82 = vunpack.c.l.b16 %v35
  %v83 = vunpack.c.h.b16 %v35
  %v84 = vunpack.c.l.b16 %v36
  %v85 = vunpack.c.h.b16 %v36
  %v86 = vunpack.c.l.b16 %v37
  %v87 = vunpack.c.h.b16 %v37
  %v88 = vunpack.c.l.b16 %v38
  %v89 = vunpack.c.h.b16 %v38
  %v90 = vunpack.c.l.b16 %v39
  %v91 = vunpack.c.h.b16 %v39
  %v92 = vunpack.c.l.b16 %v40
  %v93 = vunpack.c.h.b16 %v40
  %v94 = vunpack.c.l.b16 %v41
  %v95 = vunpack.c.h.b16 %v41
  %v96 = vunpack.c.l.b16 %v42
  %v97 = vunpack.c.h.b16 %v42
  %v98 = vunpack.c.l.b16 %v43
  %v99 = vunpack.c.h.b16 %v43
  %v100 = vunpack.c.l.b16 %v44
  %v101 = vunpack.c.h.b16 %v44
  %v102 = vpack.c.b16 %v78, %v76
  %v103 = vpack.c.b16 %v79, %v77
  %v104 = vpack.c.b16 %v82, %v80
  %v105 = vpack.c.b16 %v83, %v81
  %v106 = vpack.c.b16 %v86, %v84
  %v107 = vpack.c.b16 %v87, %v85
  %v108 = vpack.c.b16 %v90, %v88
  %v109 = vpack.c.b16 %v91, %v89
  %v110 = vpack.c.b16 %v94, %v92
  %v111 = vpack.c.b16 %v95, %v93
  %v112 = vpack.c.b16 %v98, %v96
  %v113 = vpack.c.b16 %v99, %v97
  %v114 = vpack.c.b16 %v100, %v100
  %v115 = vpack.c.b16 %v101, %v101
  %v141 = vunpack.c.l.b16 %v45
  %v142 = vunpack.c.l.b16 %v46
  %v143 = vunpack.c.l.b16 %v47
  %v144 = vunpack.c.l.b16 %v48
  %v145 = vunpack.c.l.b16 %v49
  %v146 = vunpack.c.l.b16 %v50
  %v147 = vunpack.c.l.b16 %v51
  %v148 = vunpack.c.l.b16 %v52
  %v149 = vunpack.c.l.b16 %v53
  %v150 = vunpack.c.l.b16 %v54
  %v151 = vunpack.c.l.b16 %v55
  %v152 = vunpack.c.l.b16 %v56
  %v153 = vunpack.c.l.b16 %v57
  %v154 = vunpack.c.l.b16 %v58
  %v155 = vunpack.c.l.b16 %v59
  %v156 = vunpack.c.l.b16 %v60
  %v157 = vunpack.c.l.b16 %v61
  %v158 = vunpack.c.l.b16 %v62
  %v159 = vpack.c.b16 %v142, %v141
  %v160 = vpack.c.b16 %v144, %v143
  %v161 = vpack.c.b16 %v146, %v145
  %v162 = vpack.c.b16 %v148, %v147
  %v163 = vpack.c.b16 %v150, %v149
  %v164 = vpack.c.b16 %v152, %v151
  %v165 = vpack.c.b16 %v154, %v153
  %v166 = vpack.c.b16 %v156, %v155
  %v167 = vpack.c.b16 %v158, %v157
  %vm177 = vcmask 130048
  %v179 = vsel %vm177, %v103, 0
  %v182 = vsel %vm177, %v105, 0
  %v185 = vsel %vm177, %v107, 0
  %v188 = vsel %vm177, %v109, 0
  %v191 = vsel %vm177, %v111, 0
  %v194 = vsel %vm177, %v113, 0
  %v197 = vsel %vm177, %v115, 0
  %199 = vmatpush.bf16.msra.mxu0 %v166
  %200 = vmatpush.bf16.msra.mxu0 %v165
  %201 = vmatpush.bf16.msra.mxu0 %v164
  %202 = vmatpush.bf16.msra.mxu0 %v163
  %203 = vmatpush.bf16.msra.mxu0 %v162
  %204 = vmatpush.bf16.msra.mxu0 %v161
  %205 = vmatpush.bf16.msra.mxu0 %v160
  %206 = vmatpush.bf16.msra.mxu0 %v159
  %207 = vmatmul.bf16.gmra.mxu0 %v102
  %v208 = vpop.f32.mrf.mxu0
  %v209 = vadd.f32 0.0, %v208
  %v210 = vpop.f32.mrf.mxu0
  %v211 = vadd.f32 0.0, %v210
  %212 = vmatmul.bf16.gmra.mxu0 %v104
  %v213 = vpop.f32.mrf.mxu0
  %v214 = vadd.f32 0.0, %v213
  %v215 = vpop.f32.mrf.mxu0
  %v216 = vadd.f32 0.0, %v215
  %217 = vmatmul.bf16.gmra.mxu0 %v106
  %v218 = vpop.f32.mrf.mxu0
  %v219 = vadd.f32 0.0, %v218
  %v220 = vpop.f32.mrf.mxu0
  %v221 = vadd.f32 0.0, %v220
  %222 = vmatmul.bf16.gmra.mxu0 %v108
  %v223 = vpop.f32.mrf.mxu0
  %v224 = vadd.f32 0.0, %v223
  %v225 = vpop.f32.mrf.mxu0
  %v226 = vadd.f32 0.0, %v225
  %227 = vmatmul.bf16.gmra.mxu0 %v110
  %v228 = vpop.f32.mrf.mxu0
  %v229 = vadd.f32 0.0, %v228
  %v230 = vpop.f32.mrf.mxu0
  %v231 = vadd.f32 0.0, %v230
  %232 = vmatmul.bf16.gmra.mxu0 %v112
  %v233 = vpop.f32.mrf.mxu0
  %v234 = vadd.f32 0.0, %v233
  %v235 = vpop.f32.mrf.mxu0
  %v236 = vadd.f32 0.0, %v235
  %237 = vmatmul.bf16.gmra.mxu0 %v114
  %v238 = vpop.f32.mrf.mxu0
  %v239 = vadd.f32 0.0, %v238
  %v240 = vpop.f32.mrf.mxu0
  %241 = vdwg.mxu0
  %242 = vmatpush.bf16.msra.mxu0 0
  %243 = vmatpush.bf16.msra.mxu0 0
  %244 = vmatpush.bf16.msra.mxu0 0
  %245 = vmatpush.bf16.msra.mxu0 0
  %246 = vmatpush.bf16.msra.mxu0 0
  %247 = vmatpush.bf16.msra.mxu0 0
  %248 = vmatpush.bf16.msra.mxu0 0
  %249 = vmatpush.bf16.msra.mxu0 %v167
  %250 = vmatmul.bf16.gmra.mxu0 %v179
  %v251 = vpop.f32.mrf.mxu0
  %v252 = vadd.f32 %v209, %v251
  %v253 = vpop.f32.mrf.mxu0
  %v254 = vadd.f32 %v211, %v253
  %255 = vmatmul.bf16.gmra.mxu0 %v182
  %v256 = vpop.f32.mrf.mxu0
  %v257 = vadd.f32 %v214, %v256
  %v258 = vpop.f32.mrf.mxu0
  %v259 = vadd.f32 %v216, %v258
  %260 = vmatmul.bf16.gmra.mxu0 %v185
  %v261 = vpop.f32.mrf.mxu0
  %v262 = vadd.f32 %v219, %v261
  %v263 = vpop.f32.mrf.mxu0
  %v264 = vadd.f32 %v221, %v263
  %265 = vmatmul.bf16.gmra.mxu0 %v188
  %v266 = vpop.f32.mrf.mxu0
  %v267 = vadd.f32 %v224, %v266
  %v268 = vpop.f32.mrf.mxu0
  %v269 = vadd.f32 %v226, %v268
  %270 = vmatmul.bf16.gmra.mxu0 %v191
  %v271 = vpop.f32.mrf.mxu0
  %v272 = vadd.f32 %v229, %v271
  %v273 = vpop.f32.mrf.mxu0
  %v274 = vadd.f32 %v231, %v273
  %275 = vmatmul.bf16.gmra.mxu0 %v194
  %v276 = vpop.f32.mrf.mxu0
  %v277 = vadd.f32 %v234, %v276
  %v278 = vpop.f32.mrf.mxu0
  %v279 = vadd.f32 %v236, %v278
  %280 = vmatmul.bf16.gmra.mxu0 %v197
  %v281 = vpop.f32.mrf.mxu0
  %v282 = vadd.f32 %v239, %v281
  %v283 = vpop.f32.mrf.mxu0
  %284 = vdwg.mxu0
  %v285 = vld [vmem:[%s3] sm:$0x1]
  %v287 = vperm.slane %v285, 0
  %v289 = vmul.f32 %v252, %v287
  %v290 = vmul.f32 %v254, %v287
  %v291 = vmul.f32 %v257, %v287
  %v292 = vmul.f32 %v259, %v287
  %v293 = vmul.f32 %v262, %v287
  %v294 = vmul.f32 %v264, %v287
  %v295 = vmul.f32 %v267, %v287
  %v296 = vmul.f32 %v269, %v287
  %v297 = vmul.f32 %v272, %v287
  %v298 = vmul.f32 %v274, %v287
  %v299 = vmul.f32 %v277, %v287
  %v300 = vmul.f32 %v279, %v287
  %v301 = vmul.f32 %v282, %v287
  %v302 = vld [vmem:[%s4] sm:$0x1]
  %v304 = vperm.slane %v302, 0
  %v306 = vadd.f32 %v289, %v304
  %v307 = vadd.f32 %v290, %v304
  %v308 = vadd.f32 %v291, %v304
  %v309 = vadd.f32 %v292, %v304
  %v310 = vadd.f32 %v293, %v304
  %v311 = vadd.f32 %v294, %v304
  %v312 = vadd.f32 %v295, %v304
  %v313 = vadd.f32 %v296, %v304
  %v314 = vadd.f32 %v297, %v304
  %v315 = vadd.f32 %v298, %v304
  %v316 = vadd.f32 %v299, %v304
  %v317 = vadd.f32 %v300, %v304
  %v318 = vadd.f32 %v301, %v304
  %v319 = vmax.f32 %v306, 0.0
  %v320 = vmax.f32 %v307, 0.0
  %v321 = vmax.f32 %v308, 0.0
  %v322 = vmax.f32 %v309, 0.0
  %v323 = vmax.f32 %v310, 0.0
  %v324 = vmax.f32 %v311, 0.0
  %v325 = vmax.f32 %v312, 0.0
  %v326 = vmax.f32 %v313, 0.0
  %v327 = vmax.f32 %v314, 0.0
  %v328 = vmax.f32 %v315, 0.0
  %v329 = vmax.f32 %v316, 0.0
  %v330 = vmax.f32 %v317, 0.0
  %v331 = vmax.f32 %v318, 0.0
  %vm332 = vcmask 195584
  %333 = vst.msk [vmem:[%s8] sm:$0xff] %vm332, %v319
  %334 = vst.msk [vmem:[%s8 + $0x8] sm:$0xff] %vm332, %v320
  %335 = vst.msk [vmem:[%s8 + $0x10] sm:$0xff] %vm332, %v321
  %336 = vst.msk [vmem:[%s8 + $0x18] sm:$0xff] %vm332, %v322
  %337 = vst.msk [vmem:[%s8 + $0x20] sm:$0xff] %vm332, %v323
  %338 = vst.msk [vmem:[%s8 + $0x28] sm:$0xff] %vm332, %v324
  %339 = vst.msk [vmem:[%s8 + $0x30] sm:$0xff] %vm332, %v325
  %340 = vst.msk [vmem:[%s8 + $0x38] sm:$0xff] %vm332, %v326
  %341 = vst.msk [vmem:[%s8 + $0x40] sm:$0xff] %vm332, %v327
  %342 = vst.msk [vmem:[%s8 + $0x48] sm:$0xff] %vm332, %v328
  %343 = vst.msk [vmem:[%s8 + $0x50] sm:$0xff] %vm332, %v329
  %344 = vst.msk [vmem:[%s8 + $0x58] sm:$0xff] %vm332, %v330
  %345 = vst.msk [vmem:[%s8 + $0x60] sm:$0xff] %vm332, %v331
  %v346 = vld [vmem:[%s1] sm:$0xff]
  %v347 = vld [vmem:[%s1 + $0x8] sm:$0xf]
  %v348 = vld [vmem:[%s1 + $0xc] sm:$0xff]
  %v349 = vld [vmem:[%s1 + $0x14] sm:$0xf]
  %v350 = vld [vmem:[%s1 + $0x18] sm:$0xff]
  %v351 = vld [vmem:[%s1 + $0x20] sm:$0xf]
  %v352 = vld [vmem:[%s1 + $0x24] sm:$0xff]
  %v353 = vld [vmem:[%s1 + $0x2c] sm:$0xf]
  %v354 = vld [vmem:[%s1 + $0x30] sm:$0xff]
  %v355 = vld [vmem:[%s1 + $0x38] sm:$0xf]
  %v356 = vld [vmem:[%s1 + $0x3c] sm:$0xff]
  %v357 = vld [vmem:[%s1 + $0x44] sm:$0xf]
  %v358 = vld [vmem:[%s1 + $0x48] sm:$0xff]
  %v359 = vld [vmem:[%s1 + $0x50] sm:$0xf]
  %v360 = vld [vmem:[%s1 + $0x54] sm:$0xff]
  %v361 = vld [vmem:[%s1 + $0x5c] sm:$0xf]
  %v362 = vld [vmem:[%s1 + $0x60] sm:$0xff]
  %v363 = vld [vmem:[%s1 + $0x68] sm:$0xf]
  %v364 = vld [vmem:[%s1 + $0x6c] sm:$0xff]
  %v365 = vld [vmem:[%s1 + $0x74] sm:$0xf]
  %v366 = vld [vmem:[%s1 + $0x78] sm:$0xff]
  %v367 = vld [vmem:[%s1 + $0x80] sm:$0xf]
  %v368 = vld [vmem:[%s1 + $0x84] sm:$0xff]
  %v369 = vld [vmem:[%s1 + $0x8c] sm:$0xf]
  %v370 = vld [vmem:[%s1 + $0x90] sm:$0xff]
  %v371 = vld [vmem:[%s1 + $0x98] sm:$0xf]
  %v372 = vld [vmem:[%s5] sm:$0xf]
  %v373 = vld [vmem:[%s5 + $0x4] sm:$0xf]
  %v374 = vld [vmem:[%s5 + $0x8] sm:$0xf]
  %v375 = vld [vmem:[%s5 + $0xc] sm:$0xf]
  %v376 = vld [vmem:[%s5 + $0x10] sm:$0xf]
  %v377 = vld [vmem:[%s5 + $0x14] sm:$0xf]
  %v378 = vld [vmem:[%s5 + $0x18] sm:$0xf]
  %v379 = vld [vmem:[%s5 + $0x1c] sm:$0xf]
  %v380 = vld [vmem:[%s5 + $0x20] sm:$0xf]
  %v381 = vld [vmem:[%s5 + $0x24] sm:$0xf]
  %v382 = vld [vmem:[%s5 + $0x28] sm:$0xf]
  %v383 = vld [vmem:[%s5 + $0x2c] sm:$0xf]
  %v384 = vld [vmem:[%s5 + $0x30] sm:$0xf]
  %v385 = vld [vmem:[%s5 + $0x34] sm:$0xf]
  %v386 = vld [vmem:[%s5 + $0x38] sm:$0xf]
  %v387 = vld [vmem:[%s5 + $0x3c] sm:$0xf]
  %v388 = vld [vmem:[%s5 + $0x40] sm:$0xf]
  %v389 = vld [vmem:[%s5 + $0x44] sm:$0xf]
  %v390 = vld [vmem:[%s5 + $0x48] sm:$0xf]
  %v391 = vld [vmem:[%s5 + $0x4c] sm:$0xf]
  %v392 = vld [vmem:[%s5 + $0x50] sm:$0xf]
  %v393 = vld [vmem:[%s5 + $0x54] sm:$0xf]
  %v394 = vld [vmem:[%s5 + $0x58] sm:$0xf]
  %v395 = vld [vmem:[%s5 + $0x5c] sm:$0xf]
  %v396 = vld [vmem:[%s5 + $0x60] sm:$0xf]
  %v397 = vld [vmem:[%s5 + $0x64] sm:$0xf]
  %v398 = vld [vmem:[%s5 + $0x68] sm:$0xf]
  %v399 = vld [vmem:[%s5 + $0x6c] sm:$0xf]
  %v400 = vld [vmem:[%s5 + $0x70] sm:$0xf]
  %v401 = vld [vmem:[%s5 + $0x74] sm:$0xf]
  %v402 = vld [vmem:[%s5 + $0x78] sm:$0xf]
  %v403 = vld [vmem:[%s5 + $0x7c] sm:$0xf]
  %v404 = vld [vmem:[%s5 + $0x80] sm:$0xf]
  %v405 = vld [vmem:[%s5 + $0x84] sm:$0xf]
  %v406 = vld [vmem:[%s5 + $0x88] sm:$0xf]
  %v407 = vld [vmem:[%s5 + $0x8c] sm:$0xf]
  %v434 = vunpack.c.l.b16 %v346
  %v435 = vunpack.c.h.b16 %v346
  %v436 = vunpack.c.l.b16 %v347
  %v437 = vunpack.c.l.b16 %v348
  %v438 = vunpack.c.h.b16 %v348
  %v439 = vunpack.c.l.b16 %v349
  %v440 = vunpack.c.l.b16 %v350
  %v441 = vunpack.c.h.b16 %v350
  %v442 = vunpack.c.l.b16 %v351
  %v443 = vunpack.c.l.b16 %v352
  %v444 = vunpack.c.h.b16 %v352
  %v445 = vunpack.c.l.b16 %v353
  %v446 = vunpack.c.l.b16 %v354
  %v447 = vunpack.c.h.b16 %v354
  %v448 = vunpack.c.l.b16 %v355
  %v449 = vunpack.c.l.b16 %v356
  %v450 = vunpack.c.h.b16 %v356
  %v451 = vunpack.c.l.b16 %v357
  %v452 = vunpack.c.l.b16 %v358
  %v453 = vunpack.c.h.b16 %v358
  %v454 = vunpack.c.l.b16 %v359
  %v455 = vunpack.c.l.b16 %v360
  %v456 = vunpack.c.h.b16 %v360
  %v457 = vunpack.c.l.b16 %v361
  %v458 = vunpack.c.l.b16 %v362
  %v459 = vunpack.c.h.b16 %v362
  %v460 = vunpack.c.l.b16 %v363
  %v461 = vunpack.c.l.b16 %v364
  %v462 = vunpack.c.h.b16 %v364
  %v463 = vunpack.c.l.b16 %v365
  %v464 = vunpack.c.l.b16 %v366
  %v465 = vunpack.c.h.b16 %v366
  %v466 = vunpack.c.l.b16 %v367
  %v467 = vunpack.c.l.b16 %v368
  %v468 = vunpack.c.h.b16 %v368
  %v469 = vunpack.c.l.b16 %v369
  %v470 = vunpack.c.l.b16 %v370
  %v471 = vunpack.c.h.b16 %v370
  %v472 = vunpack.c.l.b16 %v371
  %v473 = vpack.c.b16 %v437, %v434
  %v474 = vpack.c.b16 %v438, %v435
  %v475 = vpack.c.b16 %v439, %v436
  %v476 = vpack.c.b16 %v443, %v440
  %v477 = vpack.c.b16 %v444, %v441
  %v478 = vpack.c.b16 %v445, %v442
  %v479 = vpack.c.b16 %v449, %v446
  %v480 = vpack.c.b16 %v450, %v447
  %v481 = vpack.c.b16 %v451, %v448
  %v482 = vpack.c.b16 %v455, %v452
  %v483 = vpack.c.b16 %v456, %v453
  %v484 = vpack.c.b16 %v457, %v454
  %v485 = vpack.c.b16 %v461, %v458
  %v486 = vpack.c.b16 %v462, %v459
  %v487 = vpack.c.b16 %v463, %v460
  %v488 = vpack.c.b16 %v467, %v464
  %v489 = vpack.c.b16 %v468, %v465
  %v490 = vpack.c.b16 %v469, %v466
  %v491 = vpack.c.b16 %v470, %v470
  %v492 = vpack.c.b16 %v471, %v471
  %v493 = vpack.c.b16 %v472, %v472
  %v544 = vunpack.c.l.b16 %v372
  %v545 = vunpack.c.l.b16 %v373
  %v546 = vunpack.c.l.b16 %v374
  %v547 = vunpack.c.l.b16 %v375
  %v548 = vunpack.c.l.b16 %v376
  %v549 = vunpack.c.l.b16 %v377
  %v550 = vunpack.c.l.b16 %v378
  %v551 = vunpack.c.l.b16 %v379
  %v552 = vunpack.c.l.b16 %v380
  %v553 = vunpack.c.l.b16 %v381
  %v554 = vunpack.c.l.b16 %v382
  %v555 = vunpack.c.l.b16 %v383
  %v556 = vunpack.c.l.b16 %v384
  %v557 = vunpack.c.l.b16 %v385
  %v558 = vunpack.c.l.b16 %v386
  %v559 = vunpack.c.l.b16 %v387
  %v560 = vunpack.c.l.b16 %v388
  %v561 = vunpack.c.l.b16 %v389
  %v562 = vunpack.c.l.b16 %v390
  %v563 = vunpack.c.l.b16 %v391
  %v564 = vunpack.c.l.b16 %v392
  %v565 = vunpack.c.l.b16 %v393
  %v566 = vunpack.c.l.b16 %v394
  %v567 = vunpack.c.l.b16 %v395
  %v568 = vunpack.c.l.b16 %v396
  %v569 = vunpack.c.l.b16 %v397
  %v570 = vunpack.c.l.b16 %v398
  %v571 = vunpack.c.l.b16 %v399
  %v572 = vunpack.c.l.b16 %v400
  %v573 = vunpack.c.l.b16 %v401
  %v574 = vunpack.c.l.b16 %v402
  %v575 = vunpack.c.l.b16 %v403
  %v576 = vunpack.c.l.b16 %v404
  %v577 = vunpack.c.l.b16 %v405
  %v578 = vunpack.c.l.b16 %v406
  %v579 = vunpack.c.l.b16 %v407
  %v580 = vpack.c.b16 %v545, %v544
  %v581 = vpack.c.b16 %v547, %v546
  %v582 = vpack.c.b16 %v549, %v548
  %v583 = vpack.c.b16 %v551, %v550
  %v584 = vpack.c.b16 %v553, %v552
  %v585 = vpack.c.b16 %v555, %v554
  %v586 = vpack.c.b16 %v557, %v556
  %v587 = vpack.c.b16 %v559, %v558
  %v588 = vpack.c.b16 %v561, %v560
  %v589 = vpack.c.b16 %v563, %v562
  %v590 = vpack.c.b16 %v565, %v564
  %v591 = vpack.c.b16 %v567, %v566
  %v592 = vpack.c.b16 %v569, %v568
  %v593 = vpack.c.b16 %v571, %v570
  %v594 = vpack.c.b16 %v573, %v572
  %v595 = vpack.c.b16 %v575, %v574
  %v596 = vpack.c.b16 %v577, %v576
  %v597 = vpack.c.b16 %v579, %v578
  %vm616 = vcmask 261120
  %v618 = vsel %vm616, %v475, 0
  %v621 = vsel %vm616, %v478, 0
  %v624 = vsel %vm616, %v481, 0
  %v627 = vsel %vm616, %v484, 0
  %v630 = vsel %vm616, %v487, 0
  %v633 = vsel %vm616, %v490, 0
  %v636 = vsel %vm616, %v493, 0
  %638 = vmatpush.bf16.msra.mxu0 %v587
  %639 = vmatpush.bf16.msra.mxu0 %v586
  %640 = vmatpush.bf16.msra.mxu0 %v585
  %641 = vmatpush.bf16.msra.mxu0 %v584
  %642 = vmatpush.bf16.msra.mxu0 %v583
  %643 = vmatpush.bf16.msra.mxu0 %v582
  %644 = vmatpush.bf16.msra.mxu0 %v581
  %645 = vmatpush.bf16.msra.mxu0 %v580
  %646 = vmatmul.bf16.gmra.mxu0 %v473
  %v647 = vpop.f32.mrf.mxu0
  %v648 = vadd.f32 0.0, %v647
  %v649 = vpop.f32.mrf.mxu0
  %v650 = vadd.f32 0.0, %v649
  %651 = vmatmul.bf16.gmra.mxu0 %v476
  %v652 = vpop.f32.mrf.mxu0
  %v653 = vadd.f32 0.0, %v652
  %v654 = vpop.f32.mrf.mxu0
  %v655 = vadd.f32 0.0, %v654
  %656 = vmatmul.bf16.gmra.mxu0 %v479
  %v657 = vpop.f32.mrf.mxu0
  %v658 = vadd.f32 0.0, %v657
  %v659 = vpop.f32.mrf.mxu0
  %v660 = vadd.f32 0.0, %v659
  %661 = vmatmul.bf16.gmra.mxu0 %v482
  %v662 = vpop.f32.mrf.mxu0
  %v663 = vadd.f32 0.0, %v662
  %v664 = vpop.f32.mrf.mxu0
  %v665 = vadd.f32 0.0, %v664
  %666 = vmatmul.bf16.gmra.mxu0 %v485
  %v667 = vpop.f32.mrf.mxu0
  %v668 = vadd.f32 0.0, %v667
  %v669 = vpop.f32.mrf.mxu0
  %v670 = vadd.f32 0.0, %v669
  %671 = vmatmul.bf16.gmra.mxu0 %v488
  %v672 = vpop.f32.mrf.mxu0
  %v673 = vadd.f32 0.0, %v672
  %v674 = vpop.f32.mrf.mxu0
  %v675 = vadd.f32 0.0, %v674
  %676 = vmatmul.bf16.gmra.mxu0 %v491
  %v677 = vpop.f32.mrf.mxu0
  %v678 = vadd.f32 0.0, %v677
  %v679 = vpop.f32.mrf.mxu0
  %680 = vdwg.mxu0
  %681 = vmatpush.bf16.msra.mxu0 %v595
  %682 = vmatpush.bf16.msra.mxu0 %v594
  %683 = vmatpush.bf16.msra.mxu0 %v593
  %684 = vmatpush.bf16.msra.mxu0 %v592
  %685 = vmatpush.bf16.msra.mxu0 %v591
  %686 = vmatpush.bf16.msra.mxu0 %v590
  %687 = vmatpush.bf16.msra.mxu0 %v589
  %688 = vmatpush.bf16.msra.mxu0 %v588
  %689 = vmatmul.bf16.gmra.mxu0 %v474
  %v690 = vpop.f32.mrf.mxu0
  %v691 = vadd.f32 %v648, %v690
  %v692 = vpop.f32.mrf.mxu0
  %v693 = vadd.f32 %v650, %v692
  %694 = vmatmul.bf16.gmra.mxu0 %v477
  %v695 = vpop.f32.mrf.mxu0
  %v696 = vadd.f32 %v653, %v695
  %v697 = vpop.f32.mrf.mxu0
  %v698 = vadd.f32 %v655, %v697
  %699 = vmatmul.bf16.gmra.mxu0 %v480
  %v700 = vpop.f32.mrf.mxu0
  %v701 = vadd.f32 %v658, %v700
  %v702 = vpop.f32.mrf.mxu0
  %v703 = vadd.f32 %v660, %v702
  %704 = vmatmul.bf16.gmra.mxu0 %v483
  %v705 = vpop.f32.mrf.mxu0
  %v706 = vadd.f32 %v663, %v705
  %v707 = vpop.f32.mrf.mxu0
  %v708 = vadd.f32 %v665, %v707
  %709 = vmatmul.bf16.gmra.mxu0 %v486
  %v710 = vpop.f32.mrf.mxu0
  %v711 = vadd.f32 %v668, %v710
  %v712 = vpop.f32.mrf.mxu0
  %v713 = vadd.f32 %v670, %v712
  %714 = vmatmul.bf16.gmra.mxu0 %v489
  %v715 = vpop.f32.mrf.mxu0
  %v716 = vadd.f32 %v673, %v715
  %v717 = vpop.f32.mrf.mxu0
  %v718 = vadd.f32 %v675, %v717
  %719 = vmatmul.bf16.gmra.mxu0 %v492
  %v720 = vpop.f32.mrf.mxu0
  %v721 = vadd.f32 %v678, %v720
  %v722 = vpop.f32.mrf.mxu0
  %723 = vdwg.mxu0
  %724 = vmatpush.bf16.msra.mxu0 0
  %725 = vmatpush.bf16.msra.mxu0 0
  %726 = vmatpush.bf16.msra.mxu0 0
  %727 = vmatpush.bf16.msra.mxu0 0
  %728 = vmatpush.bf16.msra.mxu0 0
  %729 = vmatpush.bf16.msra.mxu0 0
  %730 = vmatpush.bf16.msra.mxu0 %v597
  %731 = vmatpush.bf16.msra.mxu0 %v596
  %732 = vmatmul.bf16.gmra.mxu0 %v618
  %v733 = vpop.f32.mrf.mxu0
  %v734 = vadd.f32 %v691, %v733
  %v735 = vpop.f32.mrf.mxu0
  %v736 = vadd.f32 %v693, %v735
  %737 = vmatmul.bf16.gmra.mxu0 %v621
  %v738 = vpop.f32.mrf.mxu0
  %v739 = vadd.f32 %v696, %v738
  %v740 = vpop.f32.mrf.mxu0
  %v741 = vadd.f32 %v698, %v740
  %742 = vmatmul.bf16.gmra.mxu0 %v624
  %v743 = vpop.f32.mrf.mxu0
  %v744 = vadd.f32 %v701, %v743
  %v745 = vpop.f32.mrf.mxu0
  %v746 = vadd.f32 %v703, %v745
  %747 = vmatmul.bf16.gmra.mxu0 %v627
  %v748 = vpop.f32.mrf.mxu0
  %v749 = vadd.f32 %v706, %v748
  %v750 = vpop.f32.mrf.mxu0
  %v751 = vadd.f32 %v708, %v750
  %752 = vmatmul.bf16.gmra.mxu0 %v630
  %v753 = vpop.f32.mrf.mxu0
  %v754 = vadd.f32 %v711, %v753
  %v755 = vpop.f32.mrf.mxu0
  %v756 = vadd.f32 %v713, %v755
  %757 = vmatmul.bf16.gmra.mxu0 %v633
  %v758 = vpop.f32.mrf.mxu0
  %v759 = vadd.f32 %v716, %v758
  %v760 = vpop.f32.mrf.mxu0
  %v761 = vadd.f32 %v718, %v760
  %762 = vmatmul.bf16.gmra.mxu0 %v636
  %v763 = vpop.f32.mrf.mxu0
  %v764 = vadd.f32 %v721, %v763
  %v765 = vpop.f32.mrf.mxu0
  %766 = vdwg.mxu0
  %v767 = vld [vmem:[%s6] sm:$0x1]
  %v769 = vperm.slane %v767, 0
  %v771 = vmul.f32 %v734, %v769
  %v772 = vmul.f32 %v736, %v769
  %v773 = vmul.f32 %v739, %v769
  %v774 = vmul.f32 %v741, %v769
  %v775 = vmul.f32 %v744, %v769
  %v776 = vmul.f32 %v746, %v769
  %v777 = vmul.f32 %v749, %v769
  %v778 = vmul.f32 %v751, %v769
  %v779 = vmul.f32 %v754, %v769
  %v780 = vmul.f32 %v756, %v769
  %v781 = vmul.f32 %v759, %v769
  %v782 = vmul.f32 %v761, %v769
  %v783 = vmul.f32 %v764, %v769
  %v784 = vld [vmem:[%s7] sm:$0x1]
  %v786 = vperm.slane %v784, 0
  %v788 = vadd.f32 %v771, %v786
  %v789 = vadd.f32 %v772, %v786
  %v790 = vadd.f32 %v773, %v786
  %v791 = vadd.f32 %v774, %v786
  %v792 = vadd.f32 %v775, %v786
  %v793 = vadd.f32 %v776, %v786
  %v794 = vadd.f32 %v777, %v786
  %v795 = vadd.f32 %v778, %v786
  %v796 = vadd.f32 %v779, %v786
  %v797 = vadd.f32 %v780, %v786
  %v798 = vadd.f32 %v781, %v786
  %v799 = vadd.f32 %v782, %v786
  %v800 = vadd.f32 %v783, %v786
  %v801 = vmax.f32 %v788, 0.0
  %v802 = vmax.f32 %v789, 0.0
  %v803 = vmax.f32 %v790, 0.0
  %v804 = vmax.f32 %v791, 0.0
  %v805 = vmax.f32 %v792, 0.0
  %v806 = vmax.f32 %v793, 0.0
  %v807 = vmax.f32 %v794, 0.0
  %v808 = vmax.f32 %v795, 0.0
  %v809 = vmax.f32 %v796, 0.0
  %v810 = vmax.f32 %v797, 0.0
  %v811 = vmax.f32 %v798, 0.0
  %v812 = vmax.f32 %v799, 0.0
  %v813 = vmax.f32 %v800, 0.0
  %814 = vst.msk [vmem:[%s9] sm:$0xff] %vm616, %v801
  %815 = vst.msk [vmem:[%s9 + $0x8] sm:$0xff] %vm616, %v802
  %816 = vst.msk [vmem:[%s9 + $0x10] sm:$0xff] %vm616, %v803
  %817 = vst.msk [vmem:[%s9 + $0x18] sm:$0xff] %vm616, %v804
  %818 = vst.msk [vmem:[%s9 + $0x20] sm:$0xff] %vm616, %v805
  %819 = vst.msk [vmem:[%s9 + $0x28] sm:$0xff] %vm616, %v806
  %820 = vst.msk [vmem:[%s9 + $0x30] sm:$0xff] %vm616, %v807
  %821 = vst.msk [vmem:[%s9 + $0x38] sm:$0xff] %vm616, %v808
  %822 = vst.msk [vmem:[%s9 + $0x40] sm:$0xff] %vm616, %v809
  %823 = vst.msk [vmem:[%s9 + $0x48] sm:$0xff] %vm616, %v810
  %824 = vst.msk [vmem:[%s9 + $0x50] sm:$0xff] %vm616, %v811
  %825 = vst.msk [vmem:[%s9 + $0x58] sm:$0xff] %vm616, %v812
  %826 = vst.msk [vmem:[%s9 + $0x60] sm:$0xff] %vm616, %v813
  // Predicated region
  $region34: #{reduction_b_v4.3} parent=0 // pred_check
    _
  $region35: #{reduction_b_v4.3} parent=0 // pred_check_branch
    %828 = sbr.rel (0) target = $region37
  $region36: #{reduction_b_v4.3} parent=0 // pred_region
    _
  $region37: #{reduction_b_v4.3} parent=0 // pred_fallthru
    _
  // Predicated region
  $region38: #{reduction_b_v4.3} parent=0 // pred_check
    _
  $region39: #{reduction_b_v4.3} parent=0 // pred_check_branch
    %830 = sbr.rel (0) target = $region41
  $region40: #{reduction_b_v4.3} parent=0 // pred_region
    _
  $region41: #{reduction_b_v4.3} parent=0 // pred_fallthru
    _
  // Predicated region
  $region42: #{reduction_b_v4.3} parent=0 // pred_check
    _
  $region43: #{reduction_b_v4.3} parent=0 // pred_check_branch
    %832 = sbr.rel (0) target = $region45
  $region44: #{reduction_b_v4.3} parent=0 // pred_region
    _
  $region45: #{reduction_b_v4.3} parent=0 // pred_fallthru
    _
  // Predicated region
  $region46: #{reduction_b_v4.3} parent=0 // pred_check
    _
  $region47: #{reduction_b_v4.3} parent=0 // pred_check_branch
    %834 = sbr.rel (0) target = $region49
  $region48: #{reduction_b_v4.3} parent=0 // pred_region
    _
  $region49: #{reduction_b_v4.3} parent=0 // pred_fallthru
    _

// kernel: reduction_b_v4.2
$region0: #{reduction_b_v4.2}
  #allocation0 [shape = 'u32[]', space=smem, size = 0x4, offset = 0x4, fixed_abs, tag = 'smem constant byte address 0x4 - core index']
  #allocation1 [shape = 'u32[72,128]{1,0:T(1,128)}', space=vmem, size = 0x9000, scoped, tag = 'internal scratch']
  %s0 = inlined_call_operand.vmem [shape: bf16[2,16,16,32], index: 0, kind: input, shape index: {}]
  %s1 = inlined_call_operand.vmem [shape: bf16[32,32], index: 1, kind: input, shape index: {}]
  %s2 = inlined_call_operand.vmem [shape: f32[1,16], index: 2, kind: input, shape index: {}]
  %s3 = inlined_call_operand.vmem [shape: f32[1,16], index: 3, kind: input, shape index: {}]
  %s4 = inlined_call_operand.vmem [shape: f32[1,16], index: 4, kind: input, shape index: {}]
  %s5 = inlined_call_operand.vmem [shape: f32[1,16], index: 5, kind: input, shape index: {}]
  %s6 = inlined_call_operand.vmem [shape: bf16[112,24], index: 6, kind: input, shape index: {}]
  %s7 = inlined_call_operand.vmem [shape: f32[1,24], index: 7, kind: input, shape index: {}]
  %s8 = inlined_call_operand.vmem [shape: f32[1,24], index: 8, kind: input, shape index: {}]
  %s9 = inlined_call_operand.vmem [shape: bf16[168,32], index: 9, kind: input, shape index: {}]
  %s10 = inlined_call_operand.vmem [shape: f32[1,32], index: 10, kind: input, shape index: {}]
  %s11 = inlined_call_operand.vmem [shape: f32[1,32], index: 11, kind: input, shape index: {}]
  %s12 = inlined_call_operand.vmem [shape: bf16[2,16,16,16], index: 12, kind: output, shape index: {0}]
  %s13 = inlined_call_operand.vmem [shape: bf16[2,16,16,32], index: 13, kind: output, shape index: {1}]
  %14 = xla_tuple %s12, %s13
  %s15 = sld [smem:[#allocation0]]
  $region66: #{reduction_b_v4.2} parent=0
    _
  %s17 = ssub.s32 1, %s15
  %s18 = scalar_select 0, %s17, %s15
  // Predicated region
  $region2: #{reduction_b_v4.2} parent=0 // pred_check
    _
  $region3: #{reduction_b_v4.2} parent=0 // pred_check_branch
    %20 = sbr.rel (0) target = $region5
  $region4: #{reduction_b_v4.2} parent=0 // pred_region
    _
  $region5: #{reduction_b_v4.2} parent=0 // pred_fallthru
    _
  // Predicated region
  $region6: #{reduction_b_v4.2} parent=0 // pred_check
    _
  $region7: #{reduction_b_v4.2} parent=0 // pred_check_branch
    %22 = sbr.rel (0) target = $region9
  $region8: #{reduction_b_v4.2} parent=0 // pred_region
    _
  $region9: #{reduction_b_v4.2} parent=0 // pred_fallthru
    _
  // Predicated region
  $region10: #{reduction_b_v4.2} parent=0 // pred_check
    _
  $region11: #{reduction_b_v4.2} parent=0 // pred_check_branch
    %24 = sbr.rel (0) target = $region13
  $region12: #{reduction_b_v4.2} parent=0 // pred_region
    _
  $region13: #{reduction_b_v4.2} parent=0 // pred_fallthru
    _
  // Predicated region
  $region14: #{reduction_b_v4.2} parent=0 // pred_check
    _
  $region15: #{reduction_b_v4.2} parent=0 // pred_check_branch
    %26 = sbr.rel (0) target = $region17
  $region16: #{reduction_b_v4.2} parent=0 // pred_region
    _
  $region17: #{reduction_b_v4.2} parent=0 // pred_fallthru
    _
  // Predicated region
  $region18: #{reduction_b_v4.2} parent=0 // pred_check
    _
  $region19: #{reduction_b_v4.2} parent=0 // pred_check_branch
    %28 = sbr.rel (0) target = $region21
  $region20: #{reduction_b_v4.2} parent=0 // pred_region
    _
  $region21: #{reduction_b_v4.2} parent=0 // pred_fallthru
    _
  // Predicated region
  $region22: #{reduction_b_v4.2} parent=0 // pred_check
    _
  $region23: #{reduction_b_v4.2} parent=0 // pred_check_branch
    %30 = sbr.rel (0) target = $region25
  $region24: #{reduction_b_v4.2} parent=0 // pred_region
    _
  $region25: #{reduction_b_v4.2} parent=0 // pred_fallthru
    _
  // Predicated region
  $region26: #{reduction_b_v4.2} parent=0 // pred_check
    _
  $region27: #{reduction_b_v4.2} parent=0 // pred_check_branch
    %32 = sbr.rel (0) target = $region29
  $region28: #{reduction_b_v4.2} parent=0 // pred_region
    _
  $region29: #{reduction_b_v4.2} parent=0 // pred_fallthru
    _
  // Predicated region
  $region30: #{reduction_b_v4.2} parent=0 // pred_check
    _
  $region31: #{reduction_b_v4.2} parent=0 // pred_check_branch
    %34 = sbr.rel (0) target = $region33
  $region32: #{reduction_b_v4.2} parent=0 // pred_region
    _
  $region33: #{reduction_b_v4.2} parent=0 // pred_fallthru
    _
  // Predicated region
  $region34: #{reduction_b_v4.2} parent=0 // pred_check
    _
  $region35: #{reduction_b_v4.2} parent=0 // pred_check_branch
    %36 = sbr.rel (0) target = $region37
  $region36: #{reduction_b_v4.2} parent=0 // pred_region
    _
  $region37: #{reduction_b_v4.2} parent=0 // pred_fallthru
    _
  // Predicated region
  $region38: #{reduction_b_v4.2} parent=0 // pred_check
    _
  $region39: #{reduction_b_v4.2} parent=0 // pred_check_branch
    %38 = sbr.rel (0) target = $region41
  $region40: #{reduction_b_v4.2} parent=0 // pred_region
    _
  $region41: #{reduction_b_v4.2} parent=0 // pred_fallthru
    _
  // Predicated region
  $region42: #{reduction_b_v4.2} parent=0 // pred_check
    _
  $region43: #{reduction_b_v4.2} parent=0 // pred_check_branch
    %40 = sbr.rel (0) target = $region45
  $region44: #{reduction_b_v4.2} parent=0 // pred_region
    _
  $region45: #{reduction_b_v4.2} parent=0 // pred_fallthru
    _
  // Predicated region
  $region46: #{reduction_b_v4.2} parent=0 // pred_check
    _
  $region47: #{reduction_b_v4.2} parent=0 // pred_check_branch
    %42 = sbr.rel (0) target = $region49
  $region48: #{reduction_b_v4.2} parent=0 // pred_region
    _
  $region49: #{reduction_b_v4.2} parent=0 // pred_fallthru
    _
  %v44 = vld [vmem:[%s0] sm:$0xf]
  %v45 = vld [vmem:[%s0 + $0x4] sm:$0xf]
  %v46 = vld [vmem:[%s0 + $0x8] sm:$0xf]
  %v47 = vld [vmem:[%s0 + $0xc] sm:$0xf]
  %v48 = vld [vmem:[%s0 + $0x10] sm:$0xf]
  %v49 = vld [vmem:[%s0 + $0x14] sm:$0xf]
  %v50 = vld [vmem:[%s0 + $0x18] sm:$0xf]
  %v51 = vld [vmem:[%s0 + $0x1c] sm:$0xf]
  %v52 = vld [vmem:[%s0 + $0x20] sm:$0xf]
  %v53 = vld [vmem:[%s0 + $0x24] sm:$0xf]
  %v54 = vld [vmem:[%s0 + $0x28] sm:$0xf]
  %v55 = vld [vmem:[%s0 + $0x2c] sm:$0xf]
  %v56 = vld [vmem:[%s0 + $0x30] sm:$0xf]
  %v57 = vld [vmem:[%s0 + $0x34] sm:$0xf]
  %v58 = vld [vmem:[%s0 + $0x38] sm:$0xf]
  %v59 = vld [vmem:[%s0 + $0x3c] sm:$0xf]
  %v60 = vld [vmem:[%s0 + $0x40] sm:$0xf]
  %v61 = vld [vmem:[%s0 + $0x44] sm:$0xf]
  %v62 = vld [vmem:[%s0 + $0x48] sm:$0xf]
  %v63 = vld [vmem:[%s0 + $0x4c] sm:$0xf]
  %v64 = vld [vmem:[%s0 + $0x50] sm:$0xf]
  %v65 = vld [vmem:[%s0 + $0x54] sm:$0xf]
  %v66 = vld [vmem:[%s0 + $0x58] sm:$0xf]
  %v67 = vld [vmem:[%s0 + $0x5c] sm:$0xf]
  %v68 = vld [vmem:[%s0 + $0x60] sm:$0xf]
  %v69 = vld [vmem:[%s0 + $0x64] sm:$0xf]
  %v70 = vld [vmem:[%s0 + $0x68] sm:$0xf]
  %v71 = vld [vmem:[%s0 + $0x6c] sm:$0xf]
  %v72 = vld [vmem:[%s0 + $0x70] sm:$0xf]
  %v73 = vld [vmem:[%s0 + $0x74] sm:$0xf]
  %v74 = vld [vmem:[%s0 + $0x78] sm:$0xf]
  %v75 = vld [vmem:[%s0 + $0x7c] sm:$0xf]
  %v76 = vld [vmem:[%s0 + $0x80] sm:$0xf]
  %v77 = vld [vmem:[%s0 + $0x84] sm:$0xf]
  %v78 = vld [vmem:[%s0 + $0x88] sm:$0xf]
  %v79 = vld [vmem:[%s0 + $0x8c] sm:$0xf]
  %v80 = vld [vmem:[%s0 + $0x90] sm:$0xf]
  %v81 = vld [vmem:[%s0 + $0x94] sm:$0xf]
  %v82 = vld [vmem:[%s0 + $0x98] sm:$0xf]
  %v83 = vld [vmem:[%s0 + $0x9c] sm:$0xf]
  %v84 = vld [vmem:[%s0 + $0xa0] sm:$0xf]
  %v85 = vld [vmem:[%s0 + $0xa4] sm:$0xf]
  %v86 = vld [vmem:[%s0 + $0xa8] sm:$0xf]
  %v87 = vld [vmem:[%s0 + $0xac] sm:$0xf]
  %v88 = vld [vmem:[%s0 + $0xb0] sm:$0xf]
  %v89 = vld [vmem:[%s0 + $0xb4] sm:$0xf]
  %v90 = vld [vmem:[%s0 + $0xb8] sm:$0xf]
  %v91 = vld [vmem:[%s0 + $0xbc] sm:$0xf]
  %v92 = vld [vmem:[%s0 + $0xc0] sm:$0xf]
  %v93 = vld [vmem:[%s0 + $0xc4] sm:$0xf]
  %v94 = vld [vmem:[%s0 + $0xc8] sm:$0xf]
  %v95 = vld [vmem:[%s0 + $0xcc] sm:$0xf]
  %v96 = vld [vmem:[%s0 + $0xd0] sm:$0xf]
  %v97 = vld [vmem:[%s0 + $0xd4] sm:$0xf]
  %v98 = vld [vmem:[%s0 + $0xd8] sm:$0xf]
  %v99 = vld [vmem:[%s0 + $0xdc] sm:$0xf]
  %v100 = vld [vmem:[%s0 + $0xe0] sm:$0xf]
  %v101 = vld [vmem:[%s0 + $0xe4] sm:$0xf]
  %v102 = vld [vmem:[%s0 + $0xe8] sm:$0xf]
  %v103 = vld [vmem:[%s0 + $0xec] sm:$0xf]
  %v104 = vld [vmem:[%s0 + $0xf0] sm:$0xf]
  %v105 = vld [vmem:[%s0 + $0xf4] sm:$0xf]
  %v106 = vld [vmem:[%s0 + $0xf8] sm:$0xf]
  %v107 = vld [vmem:[%s0 + $0xfc] sm:$0xf]
  %v108 = vld [vmem:[%s1] sm:$0xf]
  %v109 = vld [vmem:[%s1 + $0x4] sm:$0xf]
  %v110 = vld [vmem:[%s1 + $0x8] sm:$0xf]
  %v111 = vld [vmem:[%s1 + $0xc] sm:$0xf]
  %v176 = vunpack.c.l.b16 %v44
  %v177 = vunpack.c.l.b16 %v45
  %v178 = vunpack.c.l.b16 %v46
  %v179 = vunpack.c.l.b16 %v47
  %v180 = vunpack.c.l.b16 %v48
  %v181 = vunpack.c.l.b16 %v49
  %v182 = vunpack.c.l.b16 %v50
  %v183 = vunpack.c.l.b16 %v51
  %v184 = vunpack.c.l.b16 %v52
  %v185 = vunpack.c.l.b16 %v53
  %v186 = vunpack.c.l.b16 %v54
  %v187 = vunpack.c.l.b16 %v55
  %v188 = vunpack.c.l.b16 %v56
  %v189 = vunpack.c.l.b16 %v57
  %v190 = vunpack.c.l.b16 %v58
  %v191 = vunpack.c.l.b16 %v59
  %v192 = vunpack.c.l.b16 %v60
  %v193 = vunpack.c.l.b16 %v61
  %v194 = vunpack.c.l.b16 %v62
  %v195 = vunpack.c.l.b16 %v63
  %v196 = vunpack.c.l.b16 %v64
  %v197 = vunpack.c.l.b16 %v65
  %v198 = vunpack.c.l.b16 %v66
  %v199 = vunpack.c.l.b16 %v67
  %v200 = vunpack.c.l.b16 %v68
  %v201 = vunpack.c.l.b16 %v69
  %v202 = vunpack.c.l.b16 %v70
  %v203 = vunpack.c.l.b16 %v71
  %v204 = vunpack.c.l.b16 %v72
  %v205 = vunpack.c.l.b16 %v73
  %v206 = vunpack.c.l.b16 %v74
  %v207 = vunpack.c.l.b16 %v75
  %v208 = vunpack.c.l.b16 %v76
  %v209 = vunpack.c.l.b16 %v77
  %v210 = vunpack.c.l.b16 %v78
  %v211 = vunpack.c.l.b16 %v79
  %v212 = vunpack.c.l.b16 %v80
  %v213 = vunpack.c.l.b16 %v81
  %v214 = vunpack.c.l.b16 %v82
  %v215 = vunpack.c.l.b16 %v83
  %v216 = vunpack.c.l.b16 %v84
  %v217 = vunpack.c.l.b16 %v85
  %v218 = vunpack.c.l.b16 %v86
  %v219 = vunpack.c.l.b16 %v87
  %v220 = vunpack.c.l.b16 %v88
  %v221 = vunpack.c.l.b16 %v89
  %v222 = vunpack.c.l.b16 %v90
  %v223 = vunpack.c.l.b16 %v91
  %v224 = vunpack.c.l.b16 %v92
  %v225 = vunpack.c.l.b16 %v93
  %v226 = vunpack.c.l.b16 %v94
  %v227 = vunpack.c.l.b16 %v95
  %v228 = vunpack.c.l.b16 %v96
  %v229 = vunpack.c.l.b16 %v97
  %v230 = vunpack.c.l.b16 %v98
  %v231 = vunpack.c.l.b16 %v99
  %v232 = vunpack.c.l.b16 %v100
  %v233 = vunpack.c.l.b16 %v101
  %v234 = vunpack.c.l.b16 %v102
  %v235 = vunpack.c.l.b16 %v103
  %v236 = vunpack.c.l.b16 %v104
  %v237 = vunpack.c.l.b16 %v105
  %v238 = vunpack.c.l.b16 %v106
  %v239 = vunpack.c.l.b16 %v107
  %v240 = vpack.c.b16 %v177, %v176
  %v241 = vpack.c.b16 %v179, %v178
  %v242 = vpack.c.b16 %v181, %v180
  %v243 = vpack.c.b16 %v183, %v182
  %v244 = vpack.c.b16 %v185, %v184
  %v245 = vpack.c.b16 %v187, %v186
  %v246 = vpack.c.b16 %v189, %v188
  %v247 = vpack.c.b16 %v191, %v190
  %v248 = vpack.c.b16 %v193, %v192
  %v249 = vpack.c.b16 %v195, %v194
  %v250 = vpack.c.b16 %v197, %v196
  %v251 = vpack.c.b16 %v199, %v198
  %v252 = vpack.c.b16 %v201, %v200
  %v253 = vpack.c.b16 %v203, %v202
  %v254 = vpack.c.b16 %v205, %v204
  %v255 = vpack.c.b16 %v207, %v206
  %v256 = vpack.c.b16 %v209, %v208
  %v257 = vpack.c.b16 %v211, %v210
  %v258 = vpack.c.b16 %v213, %v212
  %v259 = vpack.c.b16 %v215, %v214
  %v260 = vpack.c.b16 %v217, %v216
  %v261 = vpack.c.b16 %v219, %v218
  %v262 = vpack.c.b16 %v221, %v220
  %v263 = vpack.c.b16 %v223, %v222
  %v264 = vpack.c.b16 %v225, %v224
  %v265 = vpack.c.b16 %v227, %v226
  %v266 = vpack.c.b16 %v229, %v228
  %v267 = vpack.c.b16 %v231, %v230
  %v268 = vpack.c.b16 %v233, %v232
  %v269 = vpack.c.b16 %v235, %v234
  %v270 = vpack.c.b16 %v237, %v236
  %v271 = vpack.c.b16 %v239, %v238
  %v276 = vunpack.c.l.b16 %v108
  %v277 = vunpack.c.l.b16 %v109
  %v278 = vunpack.c.l.b16 %v110
  %v279 = vunpack.c.l.b16 %v111
  %v280 = vpack.c.b16 %v277, %v276
  %v281 = vpack.c.b16 %v279, %v278
  %vm284 = vcmask 261120
  %v286 = vsel %vm284, %v240, 0
  %v289 = vsel %vm284, %v241, 0
  %v292 = vsel %vm284, %v242, 0
  %v295 = vsel %vm284, %v243, 0
  %v298 = vsel %vm284, %v244, 0
  %v301 = vsel %vm284, %v245, 0
  %v304 = vsel %vm284, %v246, 0
  %v307 = vsel %vm284, %v247, 0
  %v310 = vsel %vm284, %v248, 0
  %v313 = vsel %vm284, %v249, 0
  %v316 = vsel %vm284, %v250, 0
  %v319 = vsel %vm284, %v251, 0
  %v322 = vsel %vm284, %v252, 0
  %v325 = vsel %vm284, %v253, 0
  %v328 = vsel %vm284, %v254, 0
  %v331 = vsel %vm284, %v255, 0
  %v334 = vsel %vm284, %v256, 0
  %v337 = vsel %vm284, %v257, 0
  %v340 = vsel %vm284, %v258, 0
  %v343 = vsel %vm284, %v259, 0
  %v346 = vsel %vm284, %v260, 0
  %v349 = vsel %vm284, %v261, 0
  %v352 = vsel %vm284, %v262, 0
  %v355 = vsel %vm284, %v263, 0
  %v358 = vsel %vm284, %v264, 0
  %v361 = vsel %vm284, %v265, 0
  %v364 = vsel %vm284, %v266, 0
  %v367 = vsel %vm284, %v267, 0
  %v370 = vsel %vm284, %v268, 0
  %v373 = vsel %vm284, %v269, 0
  %v376 = vsel %vm284, %v270, 0
  %v379 = vsel %vm284, %v271, 0
  %381 = vmatpush.bf16.msra.mxu0 0
  %382 = vmatpush.bf16.msra.mxu0 0
  %383 = vmatpush.bf16.msra.mxu0 0
  %384 = vmatpush.bf16.msra.mxu0 0
  %385 = vmatpush.bf16.msra.mxu0 0
  %386 = vmatpush.bf16.msra.mxu0 0
  %387 = vmatpush.bf16.msra.mxu0 %v281
  %388 = vmatpush.bf16.msra.mxu0 %v280
  %389 = vmatmul.bf16.gmra.mxu0 %v286
  %v390 = vpop.f32.mrf.mxu0
  %v391 = vadd.f32 0.0, %v390
  %v392 = vpop.f32.mrf.mxu0
  %v393 = vadd.f32 0.0, %v392
  %394 = vmatmul.bf16.gmra.mxu0 %v289
  %v395 = vpop.f32.mrf.mxu0
  %v396 = vadd.f32 0.0, %v395
  %v397 = vpop.f32.mrf.mxu0
  %v398 = vadd.f32 0.0, %v397
  %399 = vmatmul.bf16.gmra.mxu0 %v292
  %v400 = vpop.f32.mrf.mxu0
  %v401 = vadd.f32 0.0, %v400
  %v402 = vpop.f32.mrf.mxu0
  %v403 = vadd.f32 0.0, %v402
  %404 = vmatmul.bf16.gmra.mxu0 %v295
  %v405 = vpop.f32.mrf.mxu0
  %v406 = vadd.f32 0.0, %v405
  %v407 = vpop.f32.mrf.mxu0
  %v408 = vadd.f32 0.0, %v407
  %409 = vmatmul.bf16.gmra.mxu0 %v298
  %v410 = vpop.f32.mrf.mxu0
  %v411 = vadd.f32 0.0, %v410
  %v412 = vpop.f32.mrf.mxu0
  %v413 = vadd.f32 0.0, %v412
  %414 = vmatmul.bf16.gmra.mxu0 %v301
  %v415 = vpop.f32.mrf.mxu0
  %v416 = vadd.f32 0.0, %v415
  %v417 = vpop.f32.mrf.mxu0
  %v418 = vadd.f32 0.0, %v417
  %419 = vmatmul.bf16.gmra.mxu0 %v304
  %v420 = vpop.f32.mrf.mxu0
  %v421 = vadd.f32 0.0, %v420
  %v422 = vpop.f32.mrf.mxu0
  %v423 = vadd.f32 0.0, %v422
  %424 = vmatmul.bf16.gmra.mxu0 %v307
  %v425 = vpop.f32.mrf.mxu0
  %v426 = vadd.f32 0.0, %v425
  %v427 = vpop.f32.mrf.mxu0
  %v428 = vadd.f32 0.0, %v427
  %429 = vmatmul.bf16.gmra.mxu0 %v310
  %v430 = vpop.f32.mrf.mxu0
  %v431 = vadd.f32 0.0, %v430
  %v432 = vpop.f32.mrf.mxu0
  %v433 = vadd.f32 0.0, %v432
  %434 = vmatmul.bf16.gmra.mxu0 %v313
  %v435 = vpop.f32.mrf.mxu0
  %v436 = vadd.f32 0.0, %v435
  %v437 = vpop.f32.mrf.mxu0
  %v438 = vadd.f32 0.0, %v437
  %439 = vmatmul.bf16.gmra.mxu0 %v316
  %v440 = vpop.f32.mrf.mxu0
  %v441 = vadd.f32 0.0, %v440
  %v442 = vpop.f32.mrf.mxu0
  %v443 = vadd.f32 0.0, %v442
  %444 = vmatmul.bf16.gmra.mxu0 %v319
  %v445 = vpop.f32.mrf.mxu0
  %v446 = vadd.f32 0.0, %v445
  %v447 = vpop.f32.mrf.mxu0
  %v448 = vadd.f32 0.0, %v447
  %449 = vmatmul.bf16.gmra.mxu0 %v322
  %v450 = vpop.f32.mrf.mxu0
  %v451 = vadd.f32 0.0, %v450
  %v452 = vpop.f32.mrf.mxu0
  %v453 = vadd.f32 0.0, %v452
  %454 = vmatmul.bf16.gmra.mxu0 %v325
  %v455 = vpop.f32.mrf.mxu0
  %v456 = vadd.f32 0.0, %v455
  %v457 = vpop.f32.mrf.mxu0
  %v458 = vadd.f32 0.0, %v457
  %459 = vmatmul.bf16.gmra.mxu0 %v328
  %v460 = vpop.f32.mrf.mxu0
  %v461 = vadd.f32 0.0, %v460
  %v462 = vpop.f32.mrf.mxu0
  %v463 = vadd.f32 0.0, %v462
  %464 = vmatmul.bf16.gmra.mxu0 %v331
  %v465 = vpop.f32.mrf.mxu0
  %v466 = vadd.f32 0.0, %v465
  %v467 = vpop.f32.mrf.mxu0
  %v468 = vadd.f32 0.0, %v467
  %469 = vmatmul.bf16.gmra.mxu0 %v334
  %v470 = vpop.f32.mrf.mxu0
  %v471 = vadd.f32 0.0, %v470
  %v472 = vpop.f32.mrf.mxu0
  %v473 = vadd.f32 0.0, %v472
  %474 = vmatmul.bf16.gmra.mxu0 %v337
  %v475 = vpop.f32.mrf.mxu0
  %v476 = vadd.f32 0.0, %v475
  %v477 = vpop.f32.mrf.mxu0
  %v478 = vadd.f32 0.0, %v477
  %479 = vmatmul.bf16.gmra.mxu0 %v340
  %v480 = vpop.f32.mrf.mxu0
  %v481 = vadd.f32 0.0, %v480
  %v482 = vpop.f32.mrf.mxu0
  %v483 = vadd.f32 0.0, %v482
  %484 = vmatmul.bf16.gmra.mxu0 %v343
  %v485 = vpop.f32.mrf.mxu0
  %v486 = vadd.f32 0.0, %v485
  %v487 = vpop.f32.mrf.mxu0
  %v488 = vadd.f32 0.0, %v487
  %489 = vmatmul.bf16.gmra.mxu0 %v346
  %v490 = vpop.f32.mrf.mxu0
  %v491 = vadd.f32 0.0, %v490
  %v492 = vpop.f32.mrf.mxu0
  %v493 = vadd.f32 0.0, %v492
  %494 = vmatmul.bf16.gmra.mxu0 %v349
  %v495 = vpop.f32.mrf.mxu0
  %v496 = vadd.f32 0.0, %v495
  %v497 = vpop.f32.mrf.mxu0
  %v498 = vadd.f32 0.0, %v497
  %499 = vmatmul.bf16.gmra.mxu0 %v352
  %v500 = vpop.f32.mrf.mxu0
  %v501 = vadd.f32 0.0, %v500
  %v502 = vpop.f32.mrf.mxu0
  %v503 = vadd.f32 0.0, %v502
  %504 = vmatmul.bf16.gmra.mxu0 %v355
  %v505 = vpop.f32.mrf.mxu0
  %v506 = vadd.f32 0.0, %v505
  %v507 = vpop.f32.mrf.mxu0
  %v508 = vadd.f32 0.0, %v507
  %509 = vmatmul.bf16.gmra.mxu0 %v358
  %v510 = vpop.f32.mrf.mxu0
  %v511 = vadd.f32 0.0, %v510
  %v512 = vpop.f32.mrf.mxu0
  %v513 = vadd.f32 0.0, %v512
  %514 = vmatmul.bf16.gmra.mxu0 %v361
  %v515 = vpop.f32.mrf.mxu0
  %v516 = vadd.f32 0.0, %v515
  %v517 = vpop.f32.mrf.mxu0
  %v518 = vadd.f32 0.0, %v517
  %519 = vmatmul.bf16.gmra.mxu0 %v364
  %v520 = vpop.f32.mrf.mxu0
  %v521 = vadd.f32 0.0, %v520
  %v522 = vpop.f32.mrf.mxu0
  %v523 = vadd.f32 0.0, %v522
  %524 = vmatmul.bf16.gmra.mxu0 %v367
  %v525 = vpop.f32.mrf.mxu0
  %v526 = vadd.f32 0.0, %v525
  %v527 = vpop.f32.mrf.mxu0
  %v528 = vadd.f32 0.0, %v527
  %529 = vmatmul.bf16.gmra.mxu0 %v370
  %v530 = vpop.f32.mrf.mxu0
  %v531 = vadd.f32 0.0, %v530
  %v532 = vpop.f32.mrf.mxu0
  %v533 = vadd.f32 0.0, %v532
  %534 = vmatmul.bf16.gmra.mxu0 %v373
  %v535 = vpop.f32.mrf.mxu0
  %v536 = vadd.f32 0.0, %v535
  %v537 = vpop.f32.mrf.mxu0
  %v538 = vadd.f32 0.0, %v537
  %539 = vmatmul.bf16.gmra.mxu0 %v376
  %v540 = vpop.f32.mrf.mxu0
  %v541 = vadd.f32 0.0, %v540
  %v542 = vpop.f32.mrf.mxu0
  %v543 = vadd.f32 0.0, %v542
  %544 = vmatmul.bf16.gmra.mxu0 %v379
  %v545 = vpop.f32.mrf.mxu0
  %v546 = vadd.f32 0.0, %v545
  %v547 = vpop.f32.mrf.mxu0
  %v548 = vadd.f32 0.0, %v547
  %549 = vdwg.mxu0
  %v550 = vld [vmem:[%s2] sm:$0x1]
  %v552 = vperm.slane %v550, 0
  %v554 = vmul.f32 %v391, %v552
  %v555 = vmul.f32 %v393, %v552
  %v556 = vmul.f32 %v396, %v552
  %v557 = vmul.f32 %v398, %v552
  %v558 = vmul.f32 %v401, %v552
  %v559 = vmul.f32 %v403, %v552
  %v560 = vmul.f32 %v406, %v552
  %v561 = vmul.f32 %v408, %v552
  %v562 = vmul.f32 %v411, %v552
  %v563 = vmul.f32 %v413, %v552
  %v564 = vmul.f32 %v416, %v552
  %v565 = vmul.f32 %v418, %v552
  %v566 = vmul.f32 %v421, %v552
  %v567 = vmul.f32 %v423, %v552
  %v568 = vmul.f32 %v426, %v552
  %v569 = vmul.f32 %v428, %v552
  %v570 = vmul.f32 %v431, %v552
  %v571 = vmul.f32 %v433, %v552
  %v572 = vmul.f32 %v436, %v552
  %v573 = vmul.f32 %v438, %v552
  %v574 = vmul.f32 %v441, %v552
  %v575 = vmul.f32 %v443, %v552
  %v576 = vmul.f32 %v446, %v552
  %v577 = vmul.f32 %v448, %v552
  %v578 = vmul.f32 %v451, %v552
  %v579 = vmul.f32 %v453, %v552
  %v580 = vmul.f32 %v456, %v552
  %v581 = vmul.f32 %v458, %v552
  %v582 = vmul.f32 %v461, %v552
  %v583 = vmul.f32 %v463, %v552
  %v584 = vmul.f32 %v466, %v552
  %v585 = vmul.f32 %v468, %v552
  %v586 = vmul.f32 %v471, %v552
  %v587 = vmul.f32 %v473, %v552
  %v588 = vmul.f32 %v476, %v552
  %v589 = vmul.f32 %v478, %v552
  %v590 = vmul.f32 %v481, %v552
  %v591 = vmul.f32 %v483, %v552
  %v592 = vmul.f32 %v486, %v552
  %v593 = vmul.f32 %v488, %v552
  %v594 = vmul.f32 %v491, %v552
  %v595 = vmul.f32 %v493, %v552
  %v596 = vmul.f32 %v496, %v552
  %v597 = vmul.f32 %v498, %v552
  %v598 = vmul.f32 %v501, %v552
  %v599 = vmul.f32 %v503, %v552
  %v600 = vmul.f32 %v506, %v552
  %v601 = vmul.f32 %v508, %v552
  %v602 = vmul.f32 %v511, %v552
  %v603 = vmul.f32 %v513, %v552
  %v604 = vmul.f32 %v516, %v552
  %v605 = vmul.f32 %v518, %v552
  %v606 = vmul.f32 %v521, %v552
  %v607 = vmul.f32 %v523, %v552
  %v608 = vmul.f32 %v526, %v552
  %v609 = vmul.f32 %v528, %v552
  %v610 = vmul.f32 %v531, %v552
  %v611 = vmul.f32 %v533, %v552
  %v612 = vmul.f32 %v536, %v552
  %v613 = vmul.f32 %v538, %v552
  %v614 = vmul.f32 %v541, %v552
  %v615 = vmul.f32 %v543, %v552
  %v616 = vmul.f32 %v546, %v552
  %v617 = vmul.f32 %v548, %v552
  %v618 = vld [vmem:[%s3] sm:$0x1]
  %v620 = vperm.slane %v618, 0
  %v622 = vadd.f32 %v554, %v620
  %v623 = vadd.f32 %v555, %v620
  %v624 = vadd.f32 %v556, %v620
  %v625 = vadd.f32 %v557, %v620
  %v626 = vadd.f32 %v558, %v620
  %v627 = vadd.f32 %v559, %v620
  %v628 = vadd.f32 %v560, %v620
  %v629 = vadd.f32 %v561, %v620
  %v630 = vadd.f32 %v562, %v620
  %v631 = vadd.f32 %v563, %v620
  %v632 = vadd.f32 %v564, %v620
  %v633 = vadd.f32 %v565, %v620
  %v634 = vadd.f32 %v566, %v620
  %v635 = vadd.f32 %v567, %v620
  %v636 = vadd.f32 %v568, %v620
  %v637 = vadd.f32 %v569, %v620
  %v638 = vadd.f32 %v570, %v620
  %v639 = vadd.f32 %v571, %v620
  %v640 = vadd.f32 %v572, %v620
  %v641 = vadd.f32 %v573, %v620
  %v642 = vadd.f32 %v574, %v620
  %v643 = vadd.f32 %v575, %v620
  %v644 = vadd.f32 %v576, %v620
  %v645 = vadd.f32 %v577, %v620
  %v646 = vadd.f32 %v578, %v620
  %v647 = vadd.f32 %v579, %v620
  %v648 = vadd.f32 %v580, %v620
  %v649 = vadd.f32 %v581, %v620
  %v650 = vadd.f32 %v582, %v620
  %v651 = vadd.f32 %v583, %v620
  %v652 = vadd.f32 %v584, %v620
  %v653 = vadd.f32 %v585, %v620
  %v654 = vadd.f32 %v586, %v620
  %v655 = vadd.f32 %v587, %v620
  %v656 = vadd.f32 %v588, %v620
  %v657 = vadd.f32 %v589, %v620
  %v658 = vadd.f32 %v590, %v620
  %v659 = vadd.f32 %v591, %v620
  %v660 = vadd.f32 %v592, %v620
  %v661 = vadd.f32 %v593, %v620
  %v662 = vadd.f32 %v594, %v620
  %v663 = vadd.f32 %v595, %v620
  %v664 = vadd.f32 %v596, %v620
  %v665 = vadd.f32 %v597, %v620
  %v666 = vadd.f32 %v598, %v620
  %v667 = vadd.f32 %v599, %v620
  %v668 = vadd.f32 %v600, %v620
  %v669 = vadd.f32 %v601, %v620
  %v670 = vadd.f32 %v602, %v620
  %v671 = vadd.f32 %v603, %v620
  %v672 = vadd.f32 %v604, %v620
  %v673 = vadd.f32 %v605, %v620
  %v674 = vadd.f32 %v606, %v620
  %v675 = vadd.f32 %v607, %v620
  %v676 = vadd.f32 %v608, %v620
  %v677 = vadd.f32 %v609, %v620
  %v678 = vadd.f32 %v610, %v620
  %v679 = vadd.f32 %v611, %v620
  %v680 = vadd.f32 %v612, %v620
  %v681 = vadd.f32 %v613, %v620
  %v682 = vadd.f32 %v614, %v620
  %v683 = vadd.f32 %v615, %v620
  %v684 = vadd.f32 %v616, %v620
  %v685 = vadd.f32 %v617, %v620
  %v686 = vmax.f32 %v622, 0.0
  %v687 = vmax.f32 %v623, 0.0
  %v688 = vmax.f32 %v624, 0.0
  %v689 = vmax.f32 %v625, 0.0
  %v690 = vmax.f32 %v626, 0.0
  %v691 = vmax.f32 %v627, 0.0
  %v692 = vmax.f32 %v628, 0.0
  %v693 = vmax.f32 %v629, 0.0
  %v694 = vmax.f32 %v630, 0.0
  %v695 = vmax.f32 %v631, 0.0
  %v696 = vmax.f32 %v632, 0.0
  %v697 = vmax.f32 %v633, 0.0
  %v698 = vmax.f32 %v634, 0.0
  %v699 = vmax.f32 %v635, 0.0
  %v700 = vmax.f32 %v636, 0.0
  %v701 = vmax.f32 %v637, 0.0
  %v702 = vmax.f32 %v638, 0.0
  %v703 = vmax.f32 %v639, 0.0
  %v704 = vmax.f32 %v640, 0.0
  %v705 = vmax.f32 %v641, 0.0
  %v706 = vmax.f32 %v642, 0.0
  %v707 = vmax.f32 %v643, 0.0
  %v708 = vmax.f32 %v644, 0.0
  %v709 = vmax.f32 %v645, 0.0
  %v710 = vmax.f32 %v646, 0.0
  %v711 = vmax.f32 %v647, 0.0
  %v712 = vmax.f32 %v648, 0.0
  %v713 = vmax.f32 %v649, 0.0
  %v714 = vmax.f32 %v650, 0.0
  %v715 = vmax.f32 %v651, 0.0
  %v716 = vmax.f32 %v652, 0.0
  %v717 = vmax.f32 %v653, 0.0
  %v718 = vmax.f32 %v654, 0.0
  %v719 = vmax.f32 %v655, 0.0
  %v720 = vmax.f32 %v656, 0.0
  %v721 = vmax.f32 %v657, 0.0
  %v722 = vmax.f32 %v658, 0.0
  %v723 = vmax.f32 %v659, 0.0
  %v724 = vmax.f32 %v660, 0.0
  %v725 = vmax.f32 %v661, 0.0
  %v726 = vmax.f32 %v662, 0.0
  %v727 = vmax.f32 %v663, 0.0
  %v728 = vmax.f32 %v664, 0.0
  %v729 = vmax.f32 %v665, 0.0
  %v730 = vmax.f32 %v666, 0.0
  %v731 = vmax.f32 %v667, 0.0
  %v732 = vmax.f32 %v668, 0.0
  %v733 = vmax.f32 %v669, 0.0
  %v734 = vmax.f32 %v670, 0.0
  %v735 = vmax.f32 %v671, 0.0
  %v736 = vmax.f32 %v672, 0.0
  %v737 = vmax.f32 %v673, 0.0
  %v738 = vmax.f32 %v674, 0.0
  %v739 = vmax.f32 %v675, 0.0
  %v740 = vmax.f32 %v676, 0.0
  %v741 = vmax.f32 %v677, 0.0
  %v742 = vmax.f32 %v678, 0.0
  %v743 = vmax.f32 %v679, 0.0
  %v744 = vmax.f32 %v680, 0.0
  %v745 = vmax.f32 %v681, 0.0
  %v746 = vmax.f32 %v682, 0.0
  %v747 = vmax.f32 %v683, 0.0
  %v748 = vmax.f32 %v684, 0.0
  %v749 = vmax.f32 %v685, 0.0
  %v750 = vpack.c.bf16 %v686, %v686
  %v751 = vpack.c.bf16 %v687, %v687
  %v752 = vpack.c.bf16 %v688, %v688
  %v753 = vpack.c.bf16 %v689, %v689
  %v754 = vpack.c.bf16 %v690, %v690
  %v755 = vpack.c.bf16 %v691, %v691
  %v756 = vpack.c.bf16 %v692, %v692
  %v757 = vpack.c.bf16 %v693, %v693
  %v758 = vpack.c.bf16 %v694, %v694
  %v759 = vpack.c.bf16 %v695, %v695
  %v760 = vpack.c.bf16 %v696, %v696
  %v761 = vpack.c.bf16 %v697, %v697
  %v762 = vpack.c.bf16 %v698, %v698
  %v763 = vpack.c.bf16 %v699, %v699
  %v764 = vpack.c.bf16 %v700, %v700
  %v765 = vpack.c.bf16 %v701, %v701
  %v766 = vpack.c.bf16 %v702, %v702
  %v767 = vpack.c.bf16 %v703, %v703
  %v768 = vpack.c.bf16 %v704, %v704
  %v769 = vpack.c.bf16 %v705, %v705
  %v770 = vpack.c.bf16 %v706, %v706
  %v771 = vpack.c.bf16 %v707, %v707
  %v772 = vpack.c.bf16 %v708, %v708
  %v773 = vpack.c.bf16 %v709, %v709
  %v774 = vpack.c.bf16 %v710, %v710
  %v775 = vpack.c.bf16 %v711, %v711
  %v776 = vpack.c.bf16 %v712, %v712
  %v777 = vpack.c.bf16 %v713, %v713
  %v778 = vpack.c.bf16 %v714, %v714
  %v779 = vpack.c.bf16 %v715, %v715
  %v780 = vpack.c.bf16 %v716, %v716
  %v781 = vpack.c.bf16 %v717, %v717
  %v782 = vpack.c.bf16 %v718, %v718
  %v783 = vpack.c.bf16 %v719, %v719
  %v784 = vpack.c.bf16 %v720, %v720
  %v785 = vpack.c.bf16 %v721, %v721
  %v786 = vpack.c.bf16 %v722, %v722
  %v787 = vpack.c.bf16 %v723, %v723
  %v788 = vpack.c.bf16 %v724, %v724
  %v789 = vpack.c.bf16 %v725, %v725
  %v790 = vpack.c.bf16 %v726, %v726
  %v791 = vpack.c.bf16 %v727, %v727
  %v792 = vpack.c.bf16 %v728, %v728
  %v793 = vpack.c.bf16 %v729, %v729
  %v794 = vpack.c.bf16 %v730, %v730
  %v795 = vpack.c.bf16 %v731, %v731
  %v796 = vpack.c.bf16 %v732, %v732
  %v797 = vpack.c.bf16 %v733, %v733
  %v798 = vpack.c.bf16 %v734, %v734
  %v799 = vpack.c.bf16 %v735, %v735
  %v800 = vpack.c.bf16 %v736, %v736
  %v801 = vpack.c.bf16 %v737, %v737
  %v802 = vpack.c.bf16 %v738, %v738
  %v803 = vpack.c.bf16 %v739, %v739
  %v804 = vpack.c.bf16 %v740, %v740
  %v805 = vpack.c.bf16 %v741, %v741
  %v806 = vpack.c.bf16 %v742, %v742
  %v807 = vpack.c.bf16 %v743, %v743
  %v808 = vpack.c.bf16 %v744, %v744
  %v809 = vpack.c.bf16 %v745, %v745
  %v810 = vpack.c.bf16 %v746, %v746
  %v811 = vpack.c.bf16 %v747, %v747
  %v812 = vpack.c.bf16 %v748, %v748
  %v813 = vpack.c.bf16 %v749, %v749
  %vm814 = vcmask 125952
  %815 = vst.msk [vmem:[%s12] sm:$0xf] %vm814, %v750
  %816 = vst.msk [vmem:[%s12 + $0x4] sm:$0xf] %vm814, %v751
  %817 = vst.msk [vmem:[%s12 + $0x8] sm:$0xf] %vm814, %v752
  %818 = vst.msk [vmem:[%s12 + $0xc] sm:$0xf] %vm814, %v753
  %819 = vst.msk [vmem:[%s12 + $0x10] sm:$0xf] %vm814, %v754
  %820 = vst.msk [vmem:[%s12 + $0x14] sm:$0xf] %vm814, %v755
  %821 = vst.msk [vmem:[%s12 + $0x18] sm:$0xf] %vm814, %v756
  %822 = vst.msk [vmem:[%s12 + $0x1c] sm:$0xf] %vm814, %v757
  %823 = vst.msk [vmem:[%s12 + $0x20] sm:$0xf] %vm814, %v758
  %824 = vst.msk [vmem:[%s12 + $0x24] sm:$0xf] %vm814, %v759
  %825 = vst.msk [vmem:[%s12 + $0x28] sm:$0xf] %vm814, %v760
  %826 = vst.msk [vmem:[%s12 + $0x2c] sm:$0xf] %vm814, %v761
  %827 = vst.msk [vmem:[%s12 + $0x30] sm:$0xf] %vm814, %v762
  %828 = vst.msk [vmem:[%s12 + $0x34] sm:$0xf] %vm814, %v763
  %829 = vst.msk [vmem:[%s12 + $0x38] sm:$0xf] %vm814, %v764
  %830 = vst.msk [vmem:[%s12 + $0x3c] sm:$0xf] %vm814, %v765
  %831 = vst.msk [vmem:[%s12 + $0x40] sm:$0xf] %vm814, %v766
  %832 = vst.msk [vmem:[%s12 + $0x44] sm:$0xf] %vm814, %v767
  %833 = vst.msk [vmem:[%s12 + $0x48] sm:$0xf] %vm814, %v768
  %834 = vst.msk [vmem:[%s12 + $0x4c] sm:$0xf] %vm814, %v769
  %835 = vst.msk [vmem:[%s12 + $0x50] sm:$0xf] %vm814, %v770
  %836 = vst.msk [vmem:[%s12 + $0x54] sm:$0xf] %vm814, %v771
  %837 = vst.msk [vmem:[%s12 + $0x58] sm:$0xf] %vm814, %v772
  %838 = vst.msk [vmem:[%s12 + $0x5c] sm:$0xf] %vm814, %v773
  %839 = vst.msk [vmem:[%s12 + $0x60] sm:$0xf] %vm814, %v774
  %840 = vst.msk [vmem:[%s12 + $0x64] sm:$0xf] %vm814, %v775
  %841 = vst.msk [vmem:[%s12 + $0x68] sm:$0xf] %vm814, %v776
  %842 = vst.msk [vmem:[%s12 + $0x6c] sm:$0xf] %vm814, %v777
  %843 = vst.msk [vmem:[%s12 + $0x70] sm:$0xf] %vm814, %v778
  %844 = vst.msk [vmem:[%s12 + $0x74] sm:$0xf] %vm814, %v779
  %845 = vst.msk [vmem:[%s12 + $0x78] sm:$0xf] %vm814, %v780
  %846 = vst.msk [vmem:[%s12 + $0x7c] sm:$0xf] %vm814, %v781
  %847 = vst.msk [vmem:[%s12 + $0x80] sm:$0xf] %vm814, %v782
  %848 = vst.msk [vmem:[%s12 + $0x84] sm:$0xf] %vm814, %v783
  %849 = vst.msk [vmem:[%s12 + $0x88] sm:$0xf] %vm814, %v784
  %850 = vst.msk [vmem:[%s12 + $0x8c] sm:$0xf] %vm814, %v785
  %851 = vst.msk [vmem:[%s12 + $0x90] sm:$0xf] %vm814, %v786
  %852 = vst.msk [vmem:[%s12 + $0x94] sm:$0xf] %vm814, %v787
  %853 = vst.msk [vmem:[%s12 + $0x98] sm:$0xf] %vm814, %v788
  %854 = vst.msk [vmem:[%s12 + $0x9c] sm:$0xf] %vm814, %v789
  %855 = vst.msk [vmem:[%s12 + $0xa0] sm:$0xf] %vm814, %v790
  %856 = vst.msk [vmem:[%s12 + $0xa4] sm:$0xf] %vm814, %v791
  %857 = vst.msk [vmem:[%s12 + $0xa8] sm:$0xf] %vm814, %v792
  %858 = vst.msk [vmem:[%s12 + $0xac] sm:$0xf] %vm814, %v793
  %859 = vst.msk [vmem:[%s12 + $0xb0] sm:$0xf] %vm814, %v794
  %860 = vst.msk [vmem:[%s12 + $0xb4] sm:$0xf] %vm814, %v795
  %861 = vst.msk [vmem:[%s12 + $0xb8] sm:$0xf] %vm814, %v796
  %862 = vst.msk [vmem:[%s12 + $0xbc] sm:$0xf] %vm814, %v797
  %863 = vst.msk [vmem:[%s12 + $0xc0] sm:$0xf] %vm814, %v798
  %864 = vst.msk [vmem:[%s12 + $0xc4] sm:$0xf] %vm814, %v799
  %865 = vst.msk [vmem:[%s12 + $0xc8] sm:$0xf] %vm814, %v800
  %866 = vst.msk [vmem:[%s12 + $0xcc] sm:$0xf] %vm814, %v801
  %867 = vst.msk [vmem:[%s12 + $0xd0] sm:$0xf] %vm814, %v802
  %868 = vst.msk [vmem:[%s12 + $0xd4] sm:$0xf] %vm814, %v803
  %869 = vst.msk [vmem:[%s12 + $0xd8] sm:$0xf] %vm814, %v804
  %870 = vst.msk [vmem:[%s12 + $0xdc] sm:$0xf] %vm814, %v805
  %871 = vst.msk [vmem:[%s12 + $0xe0] sm:$0xf] %vm814, %v806
  %872 = vst.msk [vmem:[%s12 + $0xe4] sm:$0xf] %vm814, %v807
  %873 = vst.msk [vmem:[%s12 + $0xe8] sm:$0xf] %vm814, %v808
  %874 = vst.msk [vmem:[%s12 + $0xec] sm:$0xf] %vm814, %v809
  %875 = vst.msk [vmem:[%s12 + $0xf0] sm:$0xf] %vm814, %v810
  %876 = vst.msk [vmem:[%s12 + $0xf4] sm:$0xf] %vm814, %v811
  %877 = vst.msk [vmem:[%s12 + $0xf8] sm:$0xf] %vm814, %v812
  %878 = vst.msk [vmem:[%s12 + $0xfc] sm:$0xf] %vm814, %v813
  %v879 = vld [vmem:[%s4] sm:$0x1]
  %v881 = vperm.slane %v879, 0
  %882 = vrot.lane.b32.xlu0 %v881, 16
  %v883 = vpop.permute.xlu0 %882
  %v885 = vmul.f32 %v391, %v883
  %v886 = vmul.f32 %v393, %v883
  %v887 = vmul.f32 %v396, %v883
  %v888 = vmul.f32 %v398, %v883
  %v889 = vmul.f32 %v401, %v883
  %v890 = vmul.f32 %v403, %v883
  %v891 = vmul.f32 %v406, %v883
  %v892 = vmul.f32 %v408, %v883
  %v893 = vmul.f32 %v411, %v883
  %v894 = vmul.f32 %v413, %v883
  %v895 = vmul.f32 %v416, %v883
  %v896 = vmul.f32 %v418, %v883
  %v897 = vmul.f32 %v421, %v883
  %v898 = vmul.f32 %v423, %v883
  %v899 = vmul.f32 %v426, %v883
  %v900 = vmul.f32 %v428, %v883
  %v901 = vmul.f32 %v431, %v883
  %v902 = vmul.f32 %v433, %v883
  %v903 = vmul.f32 %v436, %v883
  %v904 = vmul.f32 %v438, %v883
  %v905 = vmul.f32 %v441, %v883
  %v906 = vmul.f32 %v443, %v883
  %v907 = vmul.f32 %v446, %v883
  %v908 = vmul.f32 %v448, %v883
  %v909 = vmul.f32 %v451, %v883
  %v910 = vmul.f32 %v453, %v883
  %v911 = vmul.f32 %v456, %v883
  %v912 = vmul.f32 %v458, %v883
  %v913 = vmul.f32 %v461, %v883
  %v914 = vmul.f32 %v463, %v883
  %v915 = vmul.f32 %v466, %v883
  %v916 = vmul.f32 %v468, %v883
  %v917 = vmul.f32 %v471, %v883
  %v918 = vmul.f32 %v473, %v883
  %v919 = vmul.f32 %v476, %v883
  %v920 = vmul.f32 %v478, %v883
  %v921 = vmul.f32 %v481, %v883
  %v922 = vmul.f32 %v483, %v883
  %v923 = vmul.f32 %v486, %v883
  %v924 = vmul.f32 %v488, %v883
  %v925 = vmul.f32 %v491, %v883
  %v926 = vmul.f32 %v493, %v883
  %v927 = vmul.f32 %v496, %v883
  %v928 = vmul.f32 %v498, %v883
  %v929 = vmul.f32 %v501, %v883
  %v930 = vmul.f32 %v503, %v883
  %v931 = vmul.f32 %v506, %v883
  %v932 = vmul.f32 %v508, %v883
  %v933 = vmul.f32 %v511, %v883
  %v934 = vmul.f32 %v513, %v883
  %v935 = vmul.f32 %v516, %v883
  %v936 = vmul.f32 %v518, %v883
  %v937 = vmul.f32 %v521, %v883
  %v938 = vmul.f32 %v523, %v883
  %v939 = vmul.f32 %v526, %v883
  %v940 = vmul.f32 %v528, %v883
  %v941 = vmul.f32 %v531, %v883
  %v942 = vmul.f32 %v533, %v883
  %v943 = vmul.f32 %v536, %v883
  %v944 = vmul.f32 %v538, %v883
  %v945 = vmul.f32 %v541, %v883
  %v946 = vmul.f32 %v543, %v883
  %v947 = vmul.f32 %v546, %v883
  %v948 = vmul.f32 %v548, %v883
  %v949 = vld [vmem:[%s5] sm:$0x1]
  %v951 = vperm.slane %v949, 0
  %952 = vrot.lane.b32.xlu0 %v951, 16
  %v953 = vpop.permute.xlu0 %952
  %v955 = vadd.f32 %v885, %v953
  %v956 = vadd.f32 %v886, %v953
  %v957 = vadd.f32 %v887, %v953
  %v958 = vadd.f32 %v888, %v953
  %v959 = vadd.f32 %v889, %v953
  %v960 = vadd.f32 %v890, %v953
  %v961 = vadd.f32 %v891, %v953
  %v962 = vadd.f32 %v892, %v953
  %v963 = vadd.f32 %v893, %v953
  %v964 = vadd.f32 %v894, %v953
  %v965 = vadd.f32 %v895, %v953
  %v966 = vadd.f32 %v896, %v953
  %v967 = vadd.f32 %v897, %v953
  %v968 = vadd.f32 %v898, %v953
  %v969 = vadd.f32 %v899, %v953
  %v970 = vadd.f32 %v900, %v953
  %v971 = vadd.f32 %v901, %v953
  %v972 = vadd.f32 %v902, %v953
  %v973 = vadd.f32 %v903, %v953
  %v974 = vadd.f32 %v904, %v953
  %v975 = vadd.f32 %v905, %v953
  %v976 = vadd.f32 %v906, %v953
  %v977 = vadd.f32 %v907, %v953
  %v978 = vadd.f32 %v908, %v953
  %v979 = vadd.f32 %v909, %v953
  %v980 = vadd.f32 %v910, %v953
  %v981 = vadd.f32 %v911, %v953
  %v982 = vadd.f32 %v912, %v953
  %v983 = vadd.f32 %v913, %v953
  %v984 = vadd.f32 %v914, %v953
  %v985 = vadd.f32 %v915, %v953
  %v986 = vadd.f32 %v916, %v953
  %v987 = vadd.f32 %v917, %v953
  %v988 = vadd.f32 %v918, %v953
  %v989 = vadd.f32 %v919, %v953
  %v990 = vadd.f32 %v920, %v953
  %v991 = vadd.f32 %v921, %v953
  %v992 = vadd.f32 %v922, %v953
  %v993 = vadd.f32 %v923, %v953
  %v994 = vadd.f32 %v924, %v953
  %v995 = vadd.f32 %v925, %v953
  %v996 = vadd.f32 %v926, %v953
  %v997 = vadd.f32 %v927, %v953
  %v998 = vadd.f32 %v928, %v953
  %v999 = vadd.f32 %v929, %v953
  %v1000 = vadd.f32 %v930, %v953
  %v1001 = vadd.f32 %v931, %v953
  %v1002 = vadd.f32 %v932, %v953
  %v1003 = vadd.f32 %v933, %v953
  %v1004 = vadd.f32 %v934, %v953
  %v1005 = vadd.f32 %v935, %v953
  %v1006 = vadd.f32 %v936, %v953
  %v1007 = vadd.f32 %v937, %v953
  %v1008 = vadd.f32 %v938, %v953
  %v1009 = vadd.f32 %v939, %v953
  %v1010 = vadd.f32 %v940, %v953
  %v1011 = vadd.f32 %v941, %v953
  %v1012 = vadd.f32 %v942, %v953
  %v1013 = vadd.f32 %v943, %v953
  %v1014 = vadd.f32 %v944, %v953
  %v1015 = vadd.f32 %v945, %v953
  %v1016 = vadd.f32 %v946, %v953
  %v1017 = vadd.f32 %v947, %v953
  %v1018 = vadd.f32 %v948, %v953
  %v1019 = vmax.f32 %v955, 0.0
  %v1020 = vmax.f32 %v956, 0.0
  %v1021 = vmax.f32 %v957, 0.0
  %v1022 = vmax.f32 %v958, 0.0
  %v1023 = vmax.f32 %v959, 0.0
  %v1024 = vmax.f32 %v960, 0.0
  %v1025 = vmax.f32 %v961, 0.0
  %v1026 = vmax.f32 %v962, 0.0
  %v1027 = vmax.f32 %v963, 0.0
  %v1028 = vmax.f32 %v964, 0.0
  %v1029 = vmax.f32 %v965, 0.0
  %v1030 = vmax.f32 %v966, 0.0
  %v1031 = vmax.f32 %v967, 0.0
  %v1032 = vmax.f32 %v968, 0.0
  %v1033 = vmax.f32 %v969, 0.0
  %v1034 = vmax.f32 %v970, 0.0
  %v1035 = vmax.f32 %v971, 0.0
  %v1036 = vmax.f32 %v972, 0.0
  %v1037 = vmax.f32 %v973, 0.0
  %v1038 = vmax.f32 %v974, 0.0
  %v1039 = vmax.f32 %v975, 0.0
  %v1040 = vmax.f32 %v976, 0.0
  %v1041 = vmax.f32 %v977, 0.0
  %v1042 = vmax.f32 %v978, 0.0
  %v1043 = vmax.f32 %v979, 0.0
  %v1044 = vmax.f32 %v980, 0.0
  %v1045 = vmax.f32 %v981, 0.0
  %v1046 = vmax.f32 %v982, 0.0
  %v1047 = vmax.f32 %v983, 0.0
  %v1048 = vmax.f32 %v984, 0.0
  %v1049 = vmax.f32 %v985, 0.0
  %v1050 = vmax.f32 %v986, 0.0
  %v1051 = vmax.f32 %v987, 0.0
  %v1052 = vmax.f32 %v988, 0.0
  %v1053 = vmax.f32 %v989, 0.0
  %v1054 = vmax.f32 %v990, 0.0
  %v1055 = vmax.f32 %v991, 0.0
  %v1056 = vmax.f32 %v992, 0.0
  %v1057 = vmax.f32 %v993, 0.0
  %v1058 = vmax.f32 %v994, 0.0
  %v1059 = vmax.f32 %v995, 0.0
  %v1060 = vmax.f32 %v996, 0.0
  %v1061 = vmax.f32 %v997, 0.0
  %v1062 = vmax.f32 %v998, 0.0
  %v1063 = vmax.f32 %v999, 0.0
  %v1064 = vmax.f32 %v1000, 0.0
  %v1065 = vmax.f32 %v1001, 0.0
  %v1066 = vmax.f32 %v1002, 0.0
  %v1067 = vmax.f32 %v1003, 0.0
  %v1068 = vmax.f32 %v1004, 0.0
  %v1069 = vmax.f32 %v1005, 0.0
  %v1070 = vmax.f32 %v1006, 0.0
  %v1071 = vmax.f32 %v1007, 0.0
  %v1072 = vmax.f32 %v1008, 0.0
  %v1073 = vmax.f32 %v1009, 0.0
  %v1074 = vmax.f32 %v1010, 0.0
  %v1075 = vmax.f32 %v1011, 0.0
  %v1076 = vmax.f32 %v1012, 0.0
  %v1077 = vmax.f32 %v1013, 0.0
  %v1078 = vmax.f32 %v1014, 0.0
  %v1079 = vmax.f32 %v1015, 0.0
  %v1080 = vmax.f32 %v1016, 0.0
  %v1081 = vmax.f32 %v1017, 0.0
  %v1082 = vmax.f32 %v1018, 0.0
  %v1083 = vpack.c.bf16 %v1019, %v1019
  %v1084 = vpack.c.bf16 %v1020, %v1020
  %v1085 = vpack.c.bf16 %v1021, %v1021
  %v1086 = vpack.c.bf16 %v1022, %v1022
  %v1087 = vpack.c.bf16 %v1023, %v1023
  %v1088 = vpack.c.bf16 %v1024, %v1024
  %v1089 = vpack.c.bf16 %v1025, %v1025
  %v1090 = vpack.c.bf16 %v1026, %v1026
  %v1091 = vpack.c.bf16 %v1027, %v1027
  %v1092 = vpack.c.bf16 %v1028, %v1028
  %v1093 = vpack.c.bf16 %v1029, %v1029
  %v1094 = vpack.c.bf16 %v1030, %v1030
  %v1095 = vpack.c.bf16 %v1031, %v1031
  %v1096 = vpack.c.bf16 %v1032, %v1032
  %v1097 = vpack.c.bf16 %v1033, %v1033
  %v1098 = vpack.c.bf16 %v1034, %v1034
  %v1099 = vpack.c.bf16 %v1035, %v1035
  %v1100 = vpack.c.bf16 %v1036, %v1036
  %v1101 = vpack.c.bf16 %v1037, %v1037
  %v1102 = vpack.c.bf16 %v1038, %v1038
  %v1103 = vpack.c.bf16 %v1039, %v1039
  %v1104 = vpack.c.bf16 %v1040, %v1040
  %v1105 = vpack.c.bf16 %v1041, %v1041
  %v1106 = vpack.c.bf16 %v1042, %v1042
  %v1107 = vpack.c.bf16 %v1043, %v1043
  %v1108 = vpack.c.bf16 %v1044, %v1044
  %v1109 = vpack.c.bf16 %v1045, %v1045
  %v1110 = vpack.c.bf16 %v1046, %v1046
  %v1111 = vpack.c.bf16 %v1047, %v1047
  %v1112 = vpack.c.bf16 %v1048, %v1048
  %v1113 = vpack.c.bf16 %v1049, %v1049
  %v1114 = vpack.c.bf16 %v1050, %v1050
  %v1115 = vpack.c.bf16 %v1051, %v1051
  %v1116 = vpack.c.bf16 %v1052, %v1052
  %v1117 = vpack.c.bf16 %v1053, %v1053
  %v1118 = vpack.c.bf16 %v1054, %v1054
  %v1119 = vpack.c.bf16 %v1055, %v1055
  %v1120 = vpack.c.bf16 %v1056, %v1056
  %v1121 = vpack.c.bf16 %v1057, %v1057
  %v1122 = vpack.c.bf16 %v1058, %v1058
  %v1123 = vpack.c.bf16 %v1059, %v1059
  %v1124 = vpack.c.bf16 %v1060, %v1060
  %v1125 = vpack.c.bf16 %v1061, %v1061
  %v1126 = vpack.c.bf16 %v1062, %v1062
  %v1127 = vpack.c.bf16 %v1063, %v1063
  %v1128 = vpack.c.bf16 %v1064, %v1064
  %v1129 = vpack.c.bf16 %v1065, %v1065
  %v1130 = vpack.c.bf16 %v1066, %v1066
  %v1131 = vpack.c.bf16 %v1067, %v1067
  %v1132 = vpack.c.bf16 %v1068, %v1068
  %v1133 = vpack.c.bf16 %v1069, %v1069
  %v1134 = vpack.c.bf16 %v1070, %v1070
  %v1135 = vpack.c.bf16 %v1071, %v1071
  %v1136 = vpack.c.bf16 %v1072, %v1072
  %v1137 = vpack.c.bf16 %v1073, %v1073
  %v1138 = vpack.c.bf16 %v1074, %v1074
  %v1139 = vpack.c.bf16 %v1075, %v1075
  %v1140 = vpack.c.bf16 %v1076, %v1076
  %v1141 = vpack.c.bf16 %v1077, %v1077
  %v1142 = vpack.c.bf16 %v1078, %v1078
  %v1143 = vpack.c.bf16 %v1079, %v1079
  %v1144 = vpack.c.bf16 %v1080, %v1080
  %v1145 = vpack.c.bf16 %v1081, %v1081
  %v1146 = vpack.c.bf16 %v1082, %v1082
  %v1211 = vunpack.c.l.b16 %v1083
  %v1212 = vunpack.c.l.b16 %v1084
  %v1213 = vunpack.c.l.b16 %v1085
  %v1214 = vunpack.c.l.b16 %v1086
  %v1215 = vunpack.c.l.b16 %v1087
  %v1216 = vunpack.c.l.b16 %v1088
  %v1217 = vunpack.c.l.b16 %v1089
  %v1218 = vunpack.c.l.b16 %v1090
  %v1219 = vunpack.c.l.b16 %v1091
  %v1220 = vunpack.c.l.b16 %v1092
  %v1221 = vunpack.c.l.b16 %v1093
  %v1222 = vunpack.c.l.b16 %v1094
  %v1223 = vunpack.c.l.b16 %v1095
  %v1224 = vunpack.c.l.b16 %v1096
  %v1225 = vunpack.c.l.b16 %v1097
  %v1226 = vunpack.c.l.b16 %v1098
  %v1227 = vunpack.c.l.b16 %v1099
  %v1228 = vunpack.c.l.b16 %v1100
  %v1229 = vunpack.c.l.b16 %v1101
  %v1230 = vunpack.c.l.b16 %v1102
  %v1231 = vunpack.c.l.b16 %v1103
  %v1232 = vunpack.c.l.b16 %v1104
  %v1233 = vunpack.c.l.b16 %v1105
  %v1234 = vunpack.c.l.b16 %v1106
  %v1235 = vunpack.c.l.b16 %v1107
  %v1236 = vunpack.c.l.b16 %v1108
  %v1237 = vunpack.c.l.b16 %v1109
  %v1238 = vunpack.c.l.b16 %v1110
  %v1239 = vunpack.c.l.b16 %v1111
  %v1240 = vunpack.c.l.b16 %v1112
  %v1241 = vunpack.c.l.b16 %v1113
  %v1242 = vunpack.c.l.b16 %v1114
  %v1243 = vunpack.c.l.b16 %v1115
  %v1244 = vunpack.c.l.b16 %v1116
  %v1245 = vunpack.c.l.b16 %v1117
  %v1246 = vunpack.c.l.b16 %v1118
  %v1247 = vunpack.c.l.b16 %v1119
  %v1248 = vunpack.c.l.b16 %v1120
  %v1249 = vunpack.c.l.b16 %v1121
  %v1250 = vunpack.c.l.b16 %v1122
  %v1251 = vunpack.c.l.b16 %v1123
  %v1252 = vunpack.c.l.b16 %v1124
  %v1253 = vunpack.c.l.b16 %v1125
  %v1254 = vunpack.c.l.b16 %v1126
  %v1255 = vunpack.c.l.b16 %v1127
  %v1256 = vunpack.c.l.b16 %v1128
  %v1257 = vunpack.c.l.b16 %v1129
  %v1258 = vunpack.c.l.b16 %v1130
  %v1259 = vunpack.c.l.b16 %v1131
  %v1260 = vunpack.c.l.b16 %v1132
  %v1261 = vunpack.c.l.b16 %v1133
  %v1262 = vunpack.c.l.b16 %v1134
  %v1263 = vunpack.c.l.b16 %v1135
  %v1264 = vunpack.c.l.b16 %v1136
  %v1265 = vunpack.c.l.b16 %v1137
  %v1266 = vunpack.c.l.b16 %v1138
  %v1267 = vunpack.c.l.b16 %v1139
  %v1268 = vunpack.c.l.b16 %v1140
  %v1269 = vunpack.c.l.b16 %v1141
  %v1270 = vunpack.c.l.b16 %v1142
  %v1271 = vunpack.c.l.b16 %v1143
  %v1272 = vunpack.c.l.b16 %v1144
  %v1273 = vunpack.c.l.b16 %v1145
  %v1274 = vunpack.c.l.b16 %v1146
  %v1275 = vpack.c.b16 %v1212, %v1211
  %v1276 = vpack.c.b16 %v1214, %v1213
  %v1277 = vpack.c.b16 %v1216, %v1215
  %v1278 = vpack.c.b16 %v1218, %v1217
  %v1279 = vpack.c.b16 %v1220, %v1219
  %v1280 = vpack.c.b16 %v1222, %v1221
  %v1281 = vpack.c.b16 %v1224, %v1223
  %v1282 = vpack.c.b16 %v1226, %v1225
  %v1283 = vpack.c.b16 %v1228, %v1227
  %v1284 = vpack.c.b16 %v1230, %v1229
  %v1285 = vpack.c.b16 %v1232, %v1231
  %v1286 = vpack.c.b16 %v1234, %v1233
  %v1287 = vpack.c.b16 %v1236, %v1235
  %v1288 = vpack.c.b16 %v1238, %v1237
  %v1289 = vpack.c.b16 %v1240, %v1239
  %v1290 = vpack.c.b16 %v1242, %v1241
  %v1291 = vpack.c.b16 %v1244, %v1243
  %v1292 = vpack.c.b16 %v1246, %v1245
  %v1293 = vpack.c.b16 %v1248, %v1247
  %v1294 = vpack.c.b16 %v1250, %v1249
  %v1295 = vpack.c.b16 %v1252, %v1251
  %v1296 = vpack.c.b16 %v1254, %v1253
  %v1297 = vpack.c.b16 %v1256, %v1255
  %v1298 = vpack.c.b16 %v1258, %v1257
  %v1299 = vpack.c.b16 %v1260, %v1259
  %v1300 = vpack.c.b16 %v1262, %v1261
  %v1301 = vpack.c.b16 %v1264, %v1263
  %v1302 = vpack.c.b16 %v1266, %v1265
  %v1303 = vpack.c.b16 %v1268, %v1267
  %v1304 = vpack.c.b16 %v1270, %v1269
  %v1305 = vpack.c.b16 %v1272, %v1271
  %v1306 = vpack.c.b16 %v1274, %v1273
  %v1308 = vshrl.u32 %v1275, 16
  %v1310 = vrot.slane %v1308, 6
  %v1311 = vshll.u32 %v1275, 16
  %v1313 = vrot.slane %v1311, 7
  %v1314 = vor.u32 %v1310, %v1313
  %v1316 = vshrl.u32 %v1276, 16
  %v1318 = vrot.slane %v1316, 6
  %v1319 = vshll.u32 %v1276, 16
  %v1321 = vrot.slane %v1319, 7
  %v1322 = vor.u32 %v1318, %v1321
  %v1324 = vshrl.u32 %v1277, 16
  %v1326 = vrot.slane %v1324, 6
  %v1327 = vshll.u32 %v1277, 16
  %v1329 = vrot.slane %v1327, 7
  %v1330 = vor.u32 %v1326, %v1329
  %v1332 = vshrl.u32 %v1278, 16
  %v1334 = vrot.slane %v1332, 6
  %v1335 = vshll.u32 %v1278, 16
  %v1337 = vrot.slane %v1335, 7
  %v1338 = vor.u32 %v1334, %v1337
  %v1340 = vshrl.u32 %v1279, 16
  %v1342 = vrot.slane %v1340, 6
  %v1343 = vshll.u32 %v1279, 16
  %v1345 = vrot.slane %v1343, 7
  %v1346 = vor.u32 %v1342, %v1345
  %v1348 = vshrl.u32 %v1280, 16
  %v1350 = vrot.slane %v1348, 6
  %v1351 = vshll.u32 %v1280, 16
  %v1353 = vrot.slane %v1351, 7
  %v1354 = vor.u32 %v1350, %v1353
  %v1356 = vshrl.u32 %v1281, 16
  %v1358 = vrot.slane %v1356, 6
  %v1359 = vshll.u32 %v1281, 16
  %v1361 = vrot.slane %v1359, 7
  %v1362 = vor.u32 %v1358, %v1361
  %v1364 = vshrl.u32 %v1282, 16
  %v1366 = vrot.slane %v1364, 6
  %v1367 = vshll.u32 %v1282, 16
  %v1369 = vrot.slane %v1367, 7
  %v1370 = vor.u32 %v1366, %v1369
  %v1372 = vshrl.u32 %v1283, 16
  %v1374 = vrot.slane %v1372, 6
  %v1375 = vshll.u32 %v1283, 16
  %v1377 = vrot.slane %v1375, 7
  %v1378 = vor.u32 %v1374, %v1377
  %v1380 = vshrl.u32 %v1284, 16
  %v1382 = vrot.slane %v1380, 6
  %v1383 = vshll.u32 %v1284, 16
  %v1385 = vrot.slane %v1383, 7
  %v1386 = vor.u32 %v1382, %v1385
  %v1388 = vshrl.u32 %v1285, 16
  %v1390 = vrot.slane %v1388, 6
  %v1391 = vshll.u32 %v1285, 16
  %v1393 = vrot.slane %v1391, 7
  %v1394 = vor.u32 %v1390, %v1393
  %v1396 = vshrl.u32 %v1286, 16
  %v1398 = vrot.slane %v1396, 6
  %v1399 = vshll.u32 %v1286, 16
  %v1401 = vrot.slane %v1399, 7
  %v1402 = vor.u32 %v1398, %v1401
  %v1404 = vshrl.u32 %v1287, 16
  %v1406 = vrot.slane %v1404, 6
  %v1407 = vshll.u32 %v1287, 16
  %v1409 = vrot.slane %v1407, 7
  %v1410 = vor.u32 %v1406, %v1409
  %v1412 = vshrl.u32 %v1288, 16
  %v1414 = vrot.slane %v1412, 6
  %v1415 = vshll.u32 %v1288, 16
  %v1417 = vrot.slane %v1415, 7
  %v1418 = vor.u32 %v1414, %v1417
  %v1420 = vshrl.u32 %v1289, 16
  %v1422 = vrot.slane %v1420, 6
  %v1423 = vshll.u32 %v1289, 16
  %v1425 = vrot.slane %v1423, 7
  %v1426 = vor.u32 %v1422, %v1425
  %v1428 = vshrl.u32 %v1290, 16
  %v1430 = vrot.slane %v1428, 6
  %v1431 = vshll.u32 %v1290, 16
  %v1433 = vrot.slane %v1431, 7
  %v1434 = vor.u32 %v1430, %v1433
  %v1436 = vshrl.u32 %v1291, 16
  %v1438 = vrot.slane %v1436, 6
  %v1439 = vshll.u32 %v1291, 16
  %v1441 = vrot.slane %v1439, 7
  %v1442 = vor.u32 %v1438, %v1441
  %v1444 = vshrl.u32 %v1292, 16
  %v1446 = vrot.slane %v1444, 6
  %v1447 = vshll.u32 %v1292, 16
  %v1449 = vrot.slane %v1447, 7
  %v1450 = vor.u32 %v1446, %v1449
  %v1452 = vshrl.u32 %v1293, 16
  %v1454 = vrot.slane %v1452, 6
  %v1455 = vshll.u32 %v1293, 16
  %v1457 = vrot.slane %v1455, 7
  %v1458 = vor.u32 %v1454, %v1457
  %v1460 = vshrl.u32 %v1294, 16
  %v1462 = vrot.slane %v1460, 6
  %v1463 = vshll.u32 %v1294, 16
  %v1465 = vrot.slane %v1463, 7
  %v1466 = vor.u32 %v1462, %v1465
  %v1468 = vshrl.u32 %v1295, 16
  %v1470 = vrot.slane %v1468, 6
  %v1471 = vshll.u32 %v1295, 16
  %v1473 = vrot.slane %v1471, 7
  %v1474 = vor.u32 %v1470, %v1473
  %v1476 = vshrl.u32 %v1296, 16
  %v1478 = vrot.slane %v1476, 6
  %v1479 = vshll.u32 %v1296, 16
  %v1481 = vrot.slane %v1479, 7
  %v1482 = vor.u32 %v1478, %v1481
  %v1484 = vshrl.u32 %v1297, 16
  %v1486 = vrot.slane %v1484, 6
  %v1487 = vshll.u32 %v1297, 16
  %v1489 = vrot.slane %v1487, 7
  %v1490 = vor.u32 %v1486, %v1489
  %v1492 = vshrl.u32 %v1298, 16
  %v1494 = vrot.slane %v1492, 6
  %v1495 = vshll.u32 %v1298, 16
  %v1497 = vrot.slane %v1495, 7
  %v1498 = vor.u32 %v1494, %v1497
  %v1500 = vshrl.u32 %v1299, 16
  %v1502 = vrot.slane %v1500, 6
  %v1503 = vshll.u32 %v1299, 16
  %v1505 = vrot.slane %v1503, 7
  %v1506 = vor.u32 %v1502, %v1505
  %v1508 = vshrl.u32 %v1300, 16
  %v1510 = vrot.slane %v1508, 6
  %v1511 = vshll.u32 %v1300, 16
  %v1513 = vrot.slane %v1511, 7
  %v1514 = vor.u32 %v1510, %v1513
  %v1516 = vshrl.u32 %v1301, 16
  %v1518 = vrot.slane %v1516, 6
  %v1519 = vshll.u32 %v1301, 16
  %v1521 = vrot.slane %v1519, 7
  %v1522 = vor.u32 %v1518, %v1521
  %v1524 = vshrl.u32 %v1302, 16
  %v1526 = vrot.slane %v1524, 6
  %v1527 = vshll.u32 %v1302, 16
  %v1529 = vrot.slane %v1527, 7
  %v1530 = vor.u32 %v1526, %v1529
  %v1532 = vshrl.u32 %v1303, 16
  %v1534 = vrot.slane %v1532, 6
  %v1535 = vshll.u32 %v1303, 16
  %v1537 = vrot.slane %v1535, 7
  %v1538 = vor.u32 %v1534, %v1537
  %v1540 = vshrl.u32 %v1304, 16
  %v1542 = vrot.slane %v1540, 6
  %v1543 = vshll.u32 %v1304, 16
  %v1545 = vrot.slane %v1543, 7
  %v1546 = vor.u32 %v1542, %v1545
  %v1548 = vshrl.u32 %v1305, 16
  %v1550 = vrot.slane %v1548, 6
  %v1551 = vshll.u32 %v1305, 16
  %v1553 = vrot.slane %v1551, 7
  %v1554 = vor.u32 %v1550, %v1553
  %v1556 = vshrl.u32 %v1306, 16
  %v1558 = vrot.slane %v1556, 6
  %v1559 = vshll.u32 %v1306, 16
  %v1561 = vrot.slane %v1559, 7
  %v1562 = vor.u32 %v1558, %v1561
  %1563 = vrot.lane.b32.xlu0 %v1314, 112
  %v1564 = vpop.permute.xlu0 %1563
  %1565 = vrot.lane.b32.xlu0 %v1322, 112
  %v1566 = vpop.permute.xlu0 %1565
  %1567 = vrot.lane.b32.xlu0 %v1330, 112
  %v1568 = vpop.permute.xlu0 %1567
  %1569 = vrot.lane.b32.xlu0 %v1338, 112
  %v1570 = vpop.permute.xlu0 %1569
  %1571 = vrot.lane.b32.xlu0 %v1346, 112
  %v1572 = vpop.permute.xlu0 %1571
  %1573 = vrot.lane.b32.xlu0 %v1354, 112
  %v1574 = vpop.permute.xlu0 %1573
  %1575 = vrot.lane.b32.xlu0 %v1362, 112
  %v1576 = vpop.permute.xlu0 %1575
  %1577 = vrot.lane.b32.xlu0 %v1370, 112
  %v1578 = vpop.permute.xlu0 %1577
  %1579 = vrot.lane.b32.xlu0 %v1378, 112
  %v1580 = vpop.permute.xlu0 %1579
  %1581 = vrot.lane.b32.xlu0 %v1386, 112
  %v1582 = vpop.permute.xlu0 %1581
  %1583 = vrot.lane.b32.xlu0 %v1394, 112
  %v1584 = vpop.permute.xlu0 %1583
  %1585 = vrot.lane.b32.xlu0 %v1402, 112
  %v1586 = vpop.permute.xlu0 %1585
  %1587 = vrot.lane.b32.xlu0 %v1410, 112
  %v1588 = vpop.permute.xlu0 %1587
  %1589 = vrot.lane.b32.xlu0 %v1418, 112
  %v1590 = vpop.permute.xlu0 %1589
  %1591 = vrot.lane.b32.xlu0 %v1426, 112
  %v1592 = vpop.permute.xlu0 %1591
  %1593 = vrot.lane.b32.xlu0 %v1434, 112
  %v1594 = vpop.permute.xlu0 %1593
  %1595 = vrot.lane.b32.xlu0 %v1442, 112
  %v1596 = vpop.permute.xlu0 %1595
  %1597 = vrot.lane.b32.xlu0 %v1450, 112
  %v1598 = vpop.permute.xlu0 %1597
  %1599 = vrot.lane.b32.xlu0 %v1458, 112
  %v1600 = vpop.permute.xlu0 %1599
  %1601 = vrot.lane.b32.xlu0 %v1466, 112
  %v1602 = vpop.permute.xlu0 %1601
  %1603 = vrot.lane.b32.xlu0 %v1474, 112
  %v1604 = vpop.permute.xlu0 %1603
  %1605 = vrot.lane.b32.xlu0 %v1482, 112
  %v1606 = vpop.permute.xlu0 %1605
  %1607 = vrot.lane.b32.xlu0 %v1490, 112
  %v1608 = vpop.permute.xlu0 %1607
  %1609 = vrot.lane.b32.xlu0 %v1498, 112
  %v1610 = vpop.permute.xlu0 %1609
  %1611 = vrot.lane.b32.xlu0 %v1506, 112
  %v1612 = vpop.permute.xlu0 %1611
  %1613 = vrot.lane.b32.xlu0 %v1514, 112
  %v1614 = vpop.permute.xlu0 %1613
  %1615 = vrot.lane.b32.xlu0 %v1522, 112
  %v1616 = vpop.permute.xlu0 %1615
  %1617 = vrot.lane.b32.xlu0 %v1530, 112
  %v1618 = vpop.permute.xlu0 %1617
  %1619 = vrot.lane.b32.xlu0 %v1538, 112
  %v1620 = vpop.permute.xlu0 %1619
  %1621 = vrot.lane.b32.xlu0 %v1546, 112
  %v1622 = vpop.permute.xlu0 %1621
  %1623 = vrot.lane.b32.xlu0 %v1554, 112
  %v1624 = vpop.permute.xlu0 %1623
  %1625 = vrot.lane.b32.xlu0 %v1562, 112
  %v1626 = vpop.permute.xlu0 %1625
  %vm1659 = vcmask 1041408
  %vm1660 = vsmask.f32 1280
  %vm1661 = vmand %vm1659, %vm1660
  %v1662 = vsel %vm1661, 0, %v1564
  %v1663 = vsel %vm1661, 0, %v1566
  %v1664 = vsel %vm1661, 0, %v1568
  %v1665 = vsel %vm1661, 0, %v1570
  %v1666 = vsel %vm1661, 0, %v1572
  %v1667 = vsel %vm1661, 0, %v1574
  %v1668 = vsel %vm1661, 0, %v1576
  %v1669 = vsel %vm1661, 0, %v1578
  %v1670 = vsel %vm1661, 0, %v1580
  %v1671 = vsel %vm1661, 0, %v1582
  %v1672 = vsel %vm1661, 0, %v1584
  %v1673 = vsel %vm1661, 0, %v1586
  %v1674 = vsel %vm1661, 0, %v1588
  %v1675 = vsel %vm1661, 0, %v1590
  %v1676 = vsel %vm1661, 0, %v1592
  %v1677 = vsel %vm1661, 0, %v1594
  %v1678 = vsel %vm1661, 0, %v1596
  %v1679 = vsel %vm1661, 0, %v1598
  %v1680 = vsel %vm1661, 0, %v1600
  %v1681 = vsel %vm1661, 0, %v1602
  %v1682 = vsel %vm1661, 0, %v1604
  %v1683 = vsel %vm1661, 0, %v1606
  %v1684 = vsel %vm1661, 0, %v1608
  %v1685 = vsel %vm1661, 0, %v1610
  %v1686 = vsel %vm1661, 0, %v1612
  %v1687 = vsel %vm1661, 0, %v1614
  %v1688 = vsel %vm1661, 0, %v1616
  %v1689 = vsel %vm1661, 0, %v1618
  %v1690 = vsel %vm1661, 0, %v1620
  %v1691 = vsel %vm1661, 0, %v1622
  %v1692 = vsel %vm1661, 0, %v1624
  %v1693 = vsel %vm1661, 0, %v1626
  %v1694 = vrot.slane %v1275, 7
  %v1695 = vrot.slane %v1276, 7
  %v1696 = vrot.slane %v1277, 7
  %v1697 = vrot.slane %v1278, 7
  %v1698 = vrot.slane %v1279, 7
  %v1699 = vrot.slane %v1280, 7
  %v1700 = vrot.slane %v1281, 7
  %v1701 = vrot.slane %v1282, 7
  %v1702 = vrot.slane %v1283, 7
  %v1703 = vrot.slane %v1284, 7
  %v1704 = vrot.slane %v1285, 7
  %v1705 = vrot.slane %v1286, 7
  %v1706 = vrot.slane %v1287, 7
  %v1707 = vrot.slane %v1288, 7
  %v1708 = vrot.slane %v1289, 7
  %v1709 = vrot.slane %v1290, 7
  %v1710 = vrot.slane %v1291, 7
  %v1711 = vrot.slane %v1292, 7
  %v1712 = vrot.slane %v1293, 7
  %v1713 = vrot.slane %v1294, 7
  %v1714 = vrot.slane %v1295, 7
  %v1715 = vrot.slane %v1296, 7
  %v1716 = vrot.slane %v1297, 7
  %v1717 = vrot.slane %v1298, 7
  %v1718 = vrot.slane %v1299, 7
  %v1719 = vrot.slane %v1300, 7
  %v1720 = vrot.slane %v1301, 7
  %v1721 = vrot.slane %v1302, 7
  %v1722 = vrot.slane %v1303, 7
  %v1723 = vrot.slane %v1304, 7
  %v1724 = vrot.slane %v1305, 7
  %v1725 = vrot.slane %v1306, 7
  %1726 = vrot.lane.b32.xlu0 %v1694, 112
  %v1727 = vpop.permute.xlu0 %1726
  %1728 = vrot.lane.b32.xlu0 %v1695, 112
  %v1729 = vpop.permute.xlu0 %1728
  %1730 = vrot.lane.b32.xlu0 %v1696, 112
  %v1731 = vpop.permute.xlu0 %1730
  %1732 = vrot.lane.b32.xlu0 %v1697, 112
  %v1733 = vpop.permute.xlu0 %1732
  %1734 = vrot.lane.b32.xlu0 %v1698, 112
  %v1735 = vpop.permute.xlu0 %1734
  %1736 = vrot.lane.b32.xlu0 %v1699, 112
  %v1737 = vpop.permute.xlu0 %1736
  %1738 = vrot.lane.b32.xlu0 %v1700, 112
  %v1739 = vpop.permute.xlu0 %1738
  %1740 = vrot.lane.b32.xlu0 %v1701, 112
  %v1741 = vpop.permute.xlu0 %1740
  %1742 = vrot.lane.b32.xlu0 %v1702, 112
  %v1743 = vpop.permute.xlu0 %1742
  %1744 = vrot.lane.b32.xlu0 %v1703, 112
  %v1745 = vpop.permute.xlu0 %1744
  %1746 = vrot.lane.b32.xlu0 %v1704, 112
  %v1747 = vpop.permute.xlu0 %1746
  %1748 = vrot.lane.b32.xlu0 %v1705, 112
  %v1749 = vpop.permute.xlu0 %1748
  %1750 = vrot.lane.b32.xlu0 %v1706, 112
  %v1751 = vpop.permute.xlu0 %1750
  %1752 = vrot.lane.b32.xlu0 %v1707, 112
  %v1753 = vpop.permute.xlu0 %1752
  %1754 = vrot.lane.b32.xlu0 %v1708, 112
  %v1755 = vpop.permute.xlu0 %1754
  %1756 = vrot.lane.b32.xlu0 %v1709, 112
  %v1757 = vpop.permute.xlu0 %1756
  %1758 = vrot.lane.b32.xlu0 %v1710, 112
  %v1759 = vpop.permute.xlu0 %1758
  %1760 = vrot.lane.b32.xlu0 %v1711, 112
  %v1761 = vpop.permute.xlu0 %1760
  %1762 = vrot.lane.b32.xlu0 %v1712, 112
  %v1763 = vpop.permute.xlu0 %1762
  %1764 = vrot.lane.b32.xlu0 %v1713, 112
  %v1765 = vpop.permute.xlu0 %1764
  %1766 = vrot.lane.b32.xlu0 %v1714, 112
  %v1767 = vpop.permute.xlu0 %1766
  %1768 = vrot.lane.b32.xlu0 %v1715, 112
  %v1769 = vpop.permute.xlu0 %1768
  %1770 = vrot.lane.b32.xlu0 %v1716, 112
  %v1771 = vpop.permute.xlu0 %1770
  %1772 = vrot.lane.b32.xlu0 %v1717, 112
  %v1773 = vpop.permute.xlu0 %1772
  %1774 = vrot.lane.b32.xlu0 %v1718, 112
  %v1775 = vpop.permute.xlu0 %1774
  %1776 = vrot.lane.b32.xlu0 %v1719, 112
  %v1777 = vpop.permute.xlu0 %1776
  %1778 = vrot.lane.b32.xlu0 %v1720, 112
  %v1779 = vpop.permute.xlu0 %1778
  %1780 = vrot.lane.b32.xlu0 %v1721, 112
  %v1781 = vpop.permute.xlu0 %1780
  %1782 = vrot.lane.b32.xlu0 %v1722, 112
  %v1783 = vpop.permute.xlu0 %1782
  %1784 = vrot.lane.b32.xlu0 %v1723, 112
  %v1785 = vpop.permute.xlu0 %1784
  %1786 = vrot.lane.b32.xlu0 %v1724, 112
  %v1787 = vpop.permute.xlu0 %1786
  %1788 = vrot.lane.b32.xlu0 %v1725, 112
  %v1789 = vpop.permute.xlu0 %1788
  %vm1790 = vcmask 1040384
  %v1793 = vsel %vm1790, 0, %v1727
  %v1795 = vsel %vm1790, 0, %v1729
  %v1797 = vsel %vm1790, 0, %v1731
  %v1799 = vsel %vm1790, 0, %v1733
  %v1801 = vsel %vm1790, 0, %v1735
  %v1803 = vsel %vm1790, 0, %v1737
  %v1805 = vsel %vm1790, 0, %v1739
  %v1807 = vsel %vm1790, 0, %v1741
  %v1809 = vsel %vm1790, 0, %v1743
  %v1811 = vsel %vm1790, 0, %v1745
  %v1813 = vsel %vm1790, 0, %v1747
  %v1815 = vsel %vm1790, 0, %v1749
  %v1817 = vsel %vm1790, 0, %v1751
  %v1819 = vsel %vm1790, 0, %v1753
  %v1821 = vsel %vm1790, 0, %v1755
  %v1823 = vsel %vm1790, 0, %v1757
  %v1825 = vsel %vm1790, 0, %v1759
  %v1827 = vsel %vm1790, 0, %v1761
  %v1829 = vsel %vm1790, 0, %v1763
  %v1831 = vsel %vm1790, 0, %v1765
  %v1833 = vsel %vm1790, 0, %v1767
  %v1835 = vsel %vm1790, 0, %v1769
  %v1837 = vsel %vm1790, 0, %v1771
  %v1839 = vsel %vm1790, 0, %v1773
  %v1841 = vsel %vm1790, 0, %v1775
  %v1843 = vsel %vm1790, 0, %v1777
  %v1845 = vsel %vm1790, 0, %v1779
  %v1847 = vsel %vm1790, 0, %v1781
  %v1849 = vsel %vm1790, 0, %v1783
  %v1851 = vsel %vm1790, 0, %v1785
  %v1853 = vsel %vm1790, 0, %v1787
  %v1855 = vsel %vm1790, 0, %v1789
  %v1856 = vrot.slane %v1308, 7
  %v1857 = vor.u32 %v1856, %v1311
  %v1858 = vrot.slane %v1316, 7
  %v1859 = vor.u32 %v1858, %v1319
  %v1860 = vrot.slane %v1324, 7
  %v1861 = vor.u32 %v1860, %v1327
  %v1862 = vrot.slane %v1332, 7
  %v1863 = vor.u32 %v1862, %v1335
  %v1864 = vrot.slane %v1340, 7
  %v1865 = vor.u32 %v1864, %v1343
  %v1866 = vrot.slane %v1348, 7
  %v1867 = vor.u32 %v1866, %v1351
  %v1868 = vrot.slane %v1356, 7
  %v1869 = vor.u32 %v1868, %v1359
  %v1870 = vrot.slane %v1364, 7
  %v1871 = vor.u32 %v1870, %v1367
  %v1872 = vrot.slane %v1372, 7
  %v1873 = vor.u32 %v1872, %v1375
  %v1874 = vrot.slane %v1380, 7
  %v1875 = vor.u32 %v1874, %v1383
  %v1876 = vrot.slane %v1388, 7
  %v1877 = vor.u32 %v1876, %v1391
  %v1878 = vrot.slane %v1396, 7
  %v1879 = vor.u32 %v1878, %v1399
  %v1880 = vrot.slane %v1404, 7
  %v1881 = vor.u32 %v1880, %v1407
  %v1882 = vrot.slane %v1412, 7
  %v1883 = vor.u32 %v1882, %v1415
  %v1884 = vrot.slane %v1420, 7
  %v1885 = vor.u32 %v1884, %v1423
  %v1886 = vrot.slane %v1428, 7
  %v1887 = vor.u32 %v1886, %v1431
  %v1888 = vrot.slane %v1436, 7
  %v1889 = vor.u32 %v1888, %v1439
  %v1890 = vrot.slane %v1444, 7
  %v1891 = vor.u32 %v1890, %v1447
  %v1892 = vrot.slane %v1452, 7
  %v1893 = vor.u32 %v1892, %v1455
  %v1894 = vrot.slane %v1460, 7
  %v1895 = vor.u32 %v1894, %v1463
  %v1896 = vrot.slane %v1468, 7
  %v1897 = vor.u32 %v1896, %v1471
  %v1898 = vrot.slane %v1476, 7
  %v1899 = vor.u32 %v1898, %v1479
  %v1900 = vrot.slane %v1484, 7
  %v1901 = vor.u32 %v1900, %v1487
  %v1902 = vrot.slane %v1492, 7
  %v1903 = vor.u32 %v1902, %v1495
  %v1904 = vrot.slane %v1500, 7
  %v1905 = vor.u32 %v1904, %v1503
  %v1906 = vrot.slane %v1508, 7
  %v1907 = vor.u32 %v1906, %v1511
  %v1908 = vrot.slane %v1516, 7
  %v1909 = vor.u32 %v1908, %v1519
  %v1910 = vrot.slane %v1524, 7
  %v1911 = vor.u32 %v1910, %v1527
  %v1912 = vrot.slane %v1532, 7
  %v1913 = vor.u32 %v1912, %v1535
  %v1914 = vrot.slane %v1540, 7
  %v1915 = vor.u32 %v1914, %v1543
  %v1916 = vrot.slane %v1548, 7
  %v1917 = vor.u32 %v1916, %v1551
  %v1918 = vrot.slane %v1556, 7
  %v1919 = vor.u32 %v1918, %v1559
  %1920 = vrot.lane.b32.xlu0 %v1857, 112
  %v1921 = vpop.permute.xlu0 %1920
  %1922 = vrot.lane.b32.xlu0 %v1859, 112
  %v1923 = vpop.permute.xlu0 %1922
  %1924 = vrot.lane.b32.xlu0 %v1861, 112
  %v1925 = vpop.permute.xlu0 %1924
  %1926 = vrot.lane.b32.xlu0 %v1863, 112
  %v1927 = vpop.permute.xlu0 %1926
  %1928 = vrot.lane.b32.xlu0 %v1865, 112
  %v1929 = vpop.permute.xlu0 %1928
  %1930 = vrot.lane.b32.xlu0 %v1867, 112
  %v1931 = vpop.permute.xlu0 %1930
  %1932 = vrot.lane.b32.xlu0 %v1869, 112
  %v1933 = vpop.permute.xlu0 %1932
  %1934 = vrot.lane.b32.xlu0 %v1871, 112
  %v1935 = vpop.permute.xlu0 %1934
  %1936 = vrot.lane.b32.xlu0 %v1873, 112
  %v1937 = vpop.permute.xlu0 %1936
  %1938 = vrot.lane.b32.xlu0 %v1875, 112
  %v1939 = vpop.permute.xlu0 %1938
  %1940 = vrot.lane.b32.xlu0 %v1877, 112
  %v1941 = vpop.permute.xlu0 %1940
  %1942 = vrot.lane.b32.xlu0 %v1879, 112
  %v1943 = vpop.permute.xlu0 %1942
  %1944 = vrot.lane.b32.xlu0 %v1881, 112
  %v1945 = vpop.permute.xlu0 %1944
  %1946 = vrot.lane.b32.xlu0 %v1883, 112
  %v1947 = vpop.permute.xlu0 %1946
  %1948 = vrot.lane.b32.xlu0 %v1885, 112
  %v1949 = vpop.permute.xlu0 %1948
  %1950 = vrot.lane.b32.xlu0 %v1887, 112
  %v1951 = vpop.permute.xlu0 %1950
  %1952 = vrot.lane.b32.xlu0 %v1889, 112
  %v1953 = vpop.permute.xlu0 %1952
  %1954 = vrot.lane.b32.xlu0 %v1891, 112
  %v1955 = vpop.permute.xlu0 %1954
  %1956 = vrot.lane.b32.xlu0 %v1893, 112
  %v1957 = vpop.permute.xlu0 %1956
  %1958 = vrot.lane.b32.xlu0 %v1895, 112
  %v1959 = vpop.permute.xlu0 %1958
  %1960 = vrot.lane.b32.xlu0 %v1897, 112
  %v1961 = vpop.permute.xlu0 %1960
  %1962 = vrot.lane.b32.xlu0 %v1899, 112
  %v1963 = vpop.permute.xlu0 %1962
  %1964 = vrot.lane.b32.xlu0 %v1901, 112
  %v1965 = vpop.permute.xlu0 %1964
  %1966 = vrot.lane.b32.xlu0 %v1903, 112
  %v1967 = vpop.permute.xlu0 %1966
  %1968 = vrot.lane.b32.xlu0 %v1905, 112
  %v1969 = vpop.permute.xlu0 %1968
  %1970 = vrot.lane.b32.xlu0 %v1907, 112
  %v1971 = vpop.permute.xlu0 %1970
  %1972 = vrot.lane.b32.xlu0 %v1909, 112
  %v1973 = vpop.permute.xlu0 %1972
  %1974 = vrot.lane.b32.xlu0 %v1911, 112
  %v1975 = vpop.permute.xlu0 %1974
  %1976 = vrot.lane.b32.xlu0 %v1913, 112
  %v1977 = vpop.permute.xlu0 %1976
  %1978 = vrot.lane.b32.xlu0 %v1915, 112
  %v1979 = vpop.permute.xlu0 %1978
  %1980 = vrot.lane.b32.xlu0 %v1917, 112
  %v1981 = vpop.permute.xlu0 %1980
  %1982 = vrot.lane.b32.xlu0 %v1919, 112
  %v1983 = vpop.permute.xlu0 %1982
  %vm2016 = vcmask 1040384
  %vm2017 = vsmask.f32 256
  %vm2018 = vmand %vm2016, %vm2017
  %v2019 = vsel %vm2018, 0, %v1921
  %v2020 = vsel %vm2018, 0, %v1923
  %v2021 = vsel %vm2018, 0, %v1925
  %v2022 = vsel %vm2018, 0, %v1927
  %v2023 = vsel %vm2018, 0, %v1929
  %v2024 = vsel %vm2018, 0, %v1931
  %v2025 = vsel %vm2018, 0, %v1933
  %v2026 = vsel %vm2018, 0, %v1935
  %v2027 = vsel %vm2018, 0, %v1937
  %v2028 = vsel %vm2018, 0, %v1939
  %v2029 = vsel %vm2018, 0, %v1941
  %v2030 = vsel %vm2018, 0, %v1943
  %v2031 = vsel %vm2018, 0, %v1945
  %v2032 = vsel %vm2018, 0, %v1947
  %v2033 = vsel %vm2018, 0, %v1949
  %v2034 = vsel %vm2018, 0, %v1951
  %v2035 = vsel %vm2018, 0, %v1953
  %v2036 = vsel %vm2018, 0, %v1955
  %v2037 = vsel %vm2018, 0, %v1957
  %v2038 = vsel %vm2018, 0, %v1959
  %v2039 = vsel %vm2018, 0, %v1961
  %v2040 = vsel %vm2018, 0, %v1963
  %v2041 = vsel %vm2018, 0, %v1965
  %v2042 = vsel %vm2018, 0, %v1967
  %v2043 = vsel %vm2018, 0, %v1969
  %v2044 = vsel %vm2018, 0, %v1971
  %v2045 = vsel %vm2018, 0, %v1973
  %v2046 = vsel %vm2018, 0, %v1975
  %v2047 = vsel %vm2018, 0, %v1977
  %v2048 = vsel %vm2018, 0, %v1979
  %v2049 = vsel %vm2018, 0, %v1981
  %v2050 = vsel %vm2018, 0, %v1983
  %v2051 = vrot.slane %v1311, 1
  %v2052 = vor.u32 %v1308, %v2051
  %v2053 = vrot.slane %v1319, 1
  %v2054 = vor.u32 %v1316, %v2053
  %v2055 = vrot.slane %v1327, 1
  %v2056 = vor.u32 %v1324, %v2055
  %v2057 = vrot.slane %v1335, 1
  %v2058 = vor.u32 %v1332, %v2057
  %v2059 = vrot.slane %v1343, 1
  %v2060 = vor.u32 %v1340, %v2059
  %v2061 = vrot.slane %v1351, 1
  %v2062 = vor.u32 %v1348, %v2061
  %v2063 = vrot.slane %v1359, 1
  %v2064 = vor.u32 %v1356, %v2063
  %v2065 = vrot.slane %v1367, 1
  %v2066 = vor.u32 %v1364, %v2065
  %v2067 = vrot.slane %v1375, 1
  %v2068 = vor.u32 %v1372, %v2067
  %v2069 = vrot.slane %v1383, 1
  %v2070 = vor.u32 %v1380, %v2069
  %v2071 = vrot.slane %v1391, 1
  %v2072 = vor.u32 %v1388, %v2071
  %v2073 = vrot.slane %v1399, 1
  %v2074 = vor.u32 %v1396, %v2073
  %v2075 = vrot.slane %v1407, 1
  %v2076 = vor.u32 %v1404, %v2075
  %v2077 = vrot.slane %v1415, 1
  %v2078 = vor.u32 %v1412, %v2077
  %v2079 = vrot.slane %v1423, 1
  %v2080 = vor.u32 %v1420, %v2079
  %v2081 = vrot.slane %v1431, 1
  %v2082 = vor.u32 %v1428, %v2081
  %v2083 = vrot.slane %v1439, 1
  %v2084 = vor.u32 %v1436, %v2083
  %v2085 = vrot.slane %v1447, 1
  %v2086 = vor.u32 %v1444, %v2085
  %v2087 = vrot.slane %v1455, 1
  %v2088 = vor.u32 %v1452, %v2087
  %v2089 = vrot.slane %v1463, 1
  %v2090 = vor.u32 %v1460, %v2089
  %v2091 = vrot.slane %v1471, 1
  %v2092 = vor.u32 %v1468, %v2091
  %v2093 = vrot.slane %v1479, 1
  %v2094 = vor.u32 %v1476, %v2093
  %v2095 = vrot.slane %v1487, 1
  %v2096 = vor.u32 %v1484, %v2095
  %v2097 = vrot.slane %v1495, 1
  %v2098 = vor.u32 %v1492, %v2097
  %v2099 = vrot.slane %v1503, 1
  %v2100 = vor.u32 %v1500, %v2099
  %v2101 = vrot.slane %v1511, 1
  %v2102 = vor.u32 %v1508, %v2101
  %v2103 = vrot.slane %v1519, 1
  %v2104 = vor.u32 %v1516, %v2103
  %v2105 = vrot.slane %v1527, 1
  %v2106 = vor.u32 %v1524, %v2105
  %v2107 = vrot.slane %v1535, 1
  %v2108 = vor.u32 %v1532, %v2107
  %v2109 = vrot.slane %v1543, 1
  %v2110 = vor.u32 %v1540, %v2109
  %v2111 = vrot.slane %v1551, 1
  %v2112 = vor.u32 %v1548, %v2111
  %v2113 = vrot.slane %v1559, 1
  %v2114 = vor.u32 %v1556, %v2113
  %vm2147 = vcmask 1047552
  %vm2148 = vsmask.f32 7424
  %vm2149 = vmand %vm2147, %vm2148
  %v2150 = vsel %vm2149, %v2052, 0
  %v2151 = vsel %vm2149, %v2054, 0
  %v2152 = vsel %vm2149, %v2056, 0
  %v2153 = vsel %vm2149, %v2058, 0
  %v2154 = vsel %vm2149, %v2060, 0
  %v2155 = vsel %vm2149, %v2062, 0
  %v2156 = vsel %vm2149, %v2064, 0
  %v2157 = vsel %vm2149, %v2066, 0
  %v2158 = vsel %vm2149, %v2068, 0
  %v2159 = vsel %vm2149, %v2070, 0
  %v2160 = vsel %vm2149, %v2072, 0
  %v2161 = vsel %vm2149, %v2074, 0
  %v2162 = vsel %vm2149, %v2076, 0
  %v2163 = vsel %vm2149, %v2078, 0
  %v2164 = vsel %vm2149, %v2080, 0
  %v2165 = vsel %vm2149, %v2082, 0
  %v2166 = vsel %vm2149, %v2084, 0
  %v2167 = vsel %vm2149, %v2086, 0
  %v2168 = vsel %vm2149, %v2088, 0
  %v2169 = vsel %vm2149, %v2090, 0
  %v2170 = vsel %vm2149, %v2092, 0
  %v2171 = vsel %vm2149, %v2094, 0
  %v2172 = vsel %vm2149, %v2096, 0
  %v2173 = vsel %vm2149, %v2098, 0
  %v2174 = vsel %vm2149, %v2100, 0
  %v2175 = vsel %vm2149, %v2102, 0
  %v2176 = vsel %vm2149, %v2104, 0
  %v2177 = vsel %vm2149, %v2106, 0
  %v2178 = vsel %vm2149, %v2108, 0
  %v2179 = vsel %vm2149, %v2110, 0
  %v2180 = vsel %vm2149, %v2112, 0
  %v2181 = vsel %vm2149, %v2114, 0
  %v2182 = vrot.slane %v1275, 1
  %v2183 = vrot.slane %v1276, 1
  %v2184 = vrot.slane %v1277, 1
  %v2185 = vrot.slane %v1278, 1
  %v2186 = vrot.slane %v1279, 1
  %v2187 = vrot.slane %v1280, 1
  %v2188 = vrot.slane %v1281, 1
  %v2189 = vrot.slane %v1282, 1
  %v2190 = vrot.slane %v1283, 1
  %v2191 = vrot.slane %v1284, 1
  %v2192 = vrot.slane %v1285, 1
  %v2193 = vrot.slane %v1286, 1
  %v2194 = vrot.slane %v1287, 1
  %v2195 = vrot.slane %v1288, 1
  %v2196 = vrot.slane %v1289, 1
  %v2197 = vrot.slane %v1290, 1
  %v2198 = vrot.slane %v1291, 1
  %v2199 = vrot.slane %v1292, 1
  %v2200 = vrot.slane %v1293, 1
  %v2201 = vrot.slane %v1294, 1
  %v2202 = vrot.slane %v1295, 1
  %v2203 = vrot.slane %v1296, 1
  %v2204 = vrot.slane %v1297, 1
  %v2205 = vrot.slane %v1298, 1
  %v2206 = vrot.slane %v1299, 1
  %v2207 = vrot.slane %v1300, 1
  %v2208 = vrot.slane %v1301, 1
  %v2209 = vrot.slane %v1302, 1
  %v2210 = vrot.slane %v1303, 1
  %v2211 = vrot.slane %v1304, 1
  %v2212 = vrot.slane %v1305, 1
  %v2213 = vrot.slane %v1306, 1
  %vm2214 = vcmask 1046528
  %v2216 = vsel %vm2214, %v2182, 0
  %v2218 = vsel %vm2214, %v2183, 0
  %v2220 = vsel %vm2214, %v2184, 0
  %v2222 = vsel %vm2214, %v2185, 0
  %v2224 = vsel %vm2214, %v2186, 0
  %v2226 = vsel %vm2214, %v2187, 0
  %v2228 = vsel %vm2214, %v2188, 0
  %v2230 = vsel %vm2214, %v2189, 0
  %v2232 = vsel %vm2214, %v2190, 0
  %v2234 = vsel %vm2214, %v2191, 0
  %v2236 = vsel %vm2214, %v2192, 0
  %v2238 = vsel %vm2214, %v2193, 0
  %v2240 = vsel %vm2214, %v2194, 0
  %v2242 = vsel %vm2214, %v2195, 0
  %v2244 = vsel %vm2214, %v2196, 0
  %v2246 = vsel %vm2214, %v2197, 0
  %v2248 = vsel %vm2214, %v2198, 0
  %v2250 = vsel %vm2214, %v2199, 0
  %v2252 = vsel %vm2214, %v2200, 0
  %v2254 = vsel %vm2214, %v2201, 0
  %v2256 = vsel %vm2214, %v2202, 0
  %v2258 = vsel %vm2214, %v2203, 0
  %v2260 = vsel %vm2214, %v2204, 0
  %v2262 = vsel %vm2214, %v2205, 0
  %v2264 = vsel %vm2214, %v2206, 0
  %v2266 = vsel %vm2214, %v2207, 0
  %v2268 = vsel %vm2214, %v2208, 0
  %v2270 = vsel %vm2214, %v2209, 0
  %v2272 = vsel %vm2214, %v2210, 0
  %v2274 = vsel %vm2214, %v2211, 0
  %v2276 = vsel %vm2214, %v2212, 0
  %v2278 = vsel %vm2214, %v2213, 0
  %v2279 = vrot.slane %v1308, 1
  %v2280 = vrot.slane %v1311, 2
  %v2281 = vor.u32 %v2279, %v2280
  %v2282 = vrot.slane %v1316, 1
  %v2283 = vrot.slane %v1319, 2
  %v2284 = vor.u32 %v2282, %v2283
  %v2285 = vrot.slane %v1324, 1
  %v2286 = vrot.slane %v1327, 2
  %v2287 = vor.u32 %v2285, %v2286
  %v2288 = vrot.slane %v1332, 1
  %v2289 = vrot.slane %v1335, 2
  %v2290 = vor.u32 %v2288, %v2289
  %v2291 = vrot.slane %v1340, 1
  %v2292 = vrot.slane %v1343, 2
  %v2293 = vor.u32 %v2291, %v2292
  %v2294 = vrot.slane %v1348, 1
  %v2295 = vrot.slane %v1351, 2
  %v2296 = vor.u32 %v2294, %v2295
  %v2297 = vrot.slane %v1356, 1
  %v2298 = vrot.slane %v1359, 2
  %v2299 = vor.u32 %v2297, %v2298
  %v2300 = vrot.slane %v1364, 1
  %v2301 = vrot.slane %v1367, 2
  %v2302 = vor.u32 %v2300, %v2301
  %v2303 = vrot.slane %v1372, 1
  %v2304 = vrot.slane %v1375, 2
  %v2305 = vor.u32 %v2303, %v2304
  %v2306 = vrot.slane %v1380, 1
  %v2307 = vrot.slane %v1383, 2
  %v2308 = vor.u32 %v2306, %v2307
  %v2309 = vrot.slane %v1388, 1
  %v2310 = vrot.slane %v1391, 2
  %v2311 = vor.u32 %v2309, %v2310
  %v2312 = vrot.slane %v1396, 1
  %v2313 = vrot.slane %v1399, 2
  %v2314 = vor.u32 %v2312, %v2313
  %v2315 = vrot.slane %v1404, 1
  %v2316 = vrot.slane %v1407, 2
  %v2317 = vor.u32 %v2315, %v2316
  %v2318 = vrot.slane %v1412, 1
  %v2319 = vrot.slane %v1415, 2
  %v2320 = vor.u32 %v2318, %v2319
  %v2321 = vrot.slane %v1420, 1
  %v2322 = vrot.slane %v1423, 2
  %v2323 = vor.u32 %v2321, %v2322
  %v2324 = vrot.slane %v1428, 1
  %v2325 = vrot.slane %v1431, 2
  %v2326 = vor.u32 %v2324, %v2325
  %v2327 = vrot.slane %v1436, 1
  %v2328 = vrot.slane %v1439, 2
  %v2329 = vor.u32 %v2327, %v2328
  %v2330 = vrot.slane %v1444, 1
  %v2331 = vrot.slane %v1447, 2
  %v2332 = vor.u32 %v2330, %v2331
  %v2333 = vrot.slane %v1452, 1
  %v2334 = vrot.slane %v1455, 2
  %v2335 = vor.u32 %v2333, %v2334
  %v2336 = vrot.slane %v1460, 1
  %v2337 = vrot.slane %v1463, 2
  %v2338 = vor.u32 %v2336, %v2337
  %v2339 = vrot.slane %v1468, 1
  %v2340 = vrot.slane %v1471, 2
  %v2341 = vor.u32 %v2339, %v2340
  %v2342 = vrot.slane %v1476, 1
  %v2343 = vrot.slane %v1479, 2
  %v2344 = vor.u32 %v2342, %v2343
  %v2345 = vrot.slane %v1484, 1
  %v2346 = vrot.slane %v1487, 2
  %v2347 = vor.u32 %v2345, %v2346
  %v2348 = vrot.slane %v1492, 1
  %v2349 = vrot.slane %v1495, 2
  %v2350 = vor.u32 %v2348, %v2349
  %v2351 = vrot.slane %v1500, 1
  %v2352 = vrot.slane %v1503, 2
  %v2353 = vor.u32 %v2351, %v2352
  %v2354 = vrot.slane %v1508, 1
  %v2355 = vrot.slane %v1511, 2
  %v2356 = vor.u32 %v2354, %v2355
  %v2357 = vrot.slane %v1516, 1
  %v2358 = vrot.slane %v1519, 2
  %v2359 = vor.u32 %v2357, %v2358
  %v2360 = vrot.slane %v1524, 1
  %v2361 = vrot.slane %v1527, 2
  %v2362 = vor.u32 %v2360, %v2361
  %v2363 = vrot.slane %v1532, 1
  %v2364 = vrot.slane %v1535, 2
  %v2365 = vor.u32 %v2363, %v2364
  %v2366 = vrot.slane %v1540, 1
  %v2367 = vrot.slane %v1543, 2
  %v2368 = vor.u32 %v2366, %v2367
  %v2369 = vrot.slane %v1548, 1
  %v2370 = vrot.slane %v1551, 2
  %v2371 = vor.u32 %v2369, %v2370
  %v2372 = vrot.slane %v1556, 1
  %v2373 = vrot.slane %v1559, 2
  %v2374 = vor.u32 %v2372, %v2373
  %vm2407 = vcmask 1046528
  %vm2408 = vsmask.f32 6400
  %vm2409 = vmand %vm2407, %vm2408
  %v2410 = vsel %vm2409, %v2281, 0
  %v2411 = vsel %vm2409, %v2284, 0
  %v2412 = vsel %vm2409, %v2287, 0
  %v2413 = vsel %vm2409, %v2290, 0
  %v2414 = vsel %vm2409, %v2293, 0
  %v2415 = vsel %vm2409, %v2296, 0
  %v2416 = vsel %vm2409, %v2299, 0
  %v2417 = vsel %vm2409, %v2302, 0
  %v2418 = vsel %vm2409, %v2305, 0
  %v2419 = vsel %vm2409, %v2308, 0
  %v2420 = vsel %vm2409, %v2311, 0
  %v2421 = vsel %vm2409, %v2314, 0
  %v2422 = vsel %vm2409, %v2317, 0
  %v2423 = vsel %vm2409, %v2320, 0
  %v2424 = vsel %vm2409, %v2323, 0
  %v2425 = vsel %vm2409, %v2326, 0
  %v2426 = vsel %vm2409, %v2329, 0
  %v2427 = vsel %vm2409, %v2332, 0
  %v2428 = vsel %vm2409, %v2335, 0
  %v2429 = vsel %vm2409, %v2338, 0
  %v2430 = vsel %vm2409, %v2341, 0
  %v2431 = vsel %vm2409, %v2344, 0
  %v2432 = vsel %vm2409, %v2347, 0
  %v2433 = vsel %vm2409, %v2350, 0
  %v2434 = vsel %vm2409, %v2353, 0
  %v2435 = vsel %vm2409, %v2356, 0
  %v2436 = vsel %vm2409, %v2359, 0
  %v2437 = vsel %vm2409, %v2362, 0
  %v2438 = vsel %vm2409, %v2365, 0
  %v2439 = vsel %vm2409, %v2368, 0
  %v2440 = vsel %vm2409, %v2371, 0
  %v2441 = vsel %vm2409, %v2374, 0
  %2474 = vrot.lane.b32.xlu0 %v1793, 16
  %v2475 = vpop.permute.xlu0 %2474
  %2476 = vrot.lane.b32.xlu0 %v1795, 16
  %v2477 = vpop.permute.xlu0 %2476
  %2478 = vrot.lane.b32.xlu0 %v1797, 16
  %v2479 = vpop.permute.xlu0 %2478
  %2480 = vrot.lane.b32.xlu0 %v1799, 16
  %v2481 = vpop.permute.xlu0 %2480
  %2482 = vrot.lane.b32.xlu0 %v1801, 16
  %v2483 = vpop.permute.xlu0 %2482
  %2484 = vrot.lane.b32.xlu0 %v1803, 16
  %v2485 = vpop.permute.xlu0 %2484
  %2486 = vrot.lane.b32.xlu0 %v1805, 16
  %v2487 = vpop.permute.xlu0 %2486
  %2488 = vrot.lane.b32.xlu0 %v1807, 16
  %v2489 = vpop.permute.xlu0 %2488
  %2490 = vrot.lane.b32.xlu0 %v1809, 16
  %v2491 = vpop.permute.xlu0 %2490
  %2492 = vrot.lane.b32.xlu0 %v1811, 16
  %v2493 = vpop.permute.xlu0 %2492
  %2494 = vrot.lane.b32.xlu0 %v1813, 16
  %v2495 = vpop.permute.xlu0 %2494
  %2496 = vrot.lane.b32.xlu0 %v1815, 16
  %v2497 = vpop.permute.xlu0 %2496
  %2498 = vrot.lane.b32.xlu0 %v1817, 16
  %v2499 = vpop.permute.xlu0 %2498
  %2500 = vrot.lane.b32.xlu0 %v1819, 16
  %v2501 = vpop.permute.xlu0 %2500
  %2502 = vrot.lane.b32.xlu0 %v1821, 16
  %v2503 = vpop.permute.xlu0 %2502
  %2504 = vrot.lane.b32.xlu0 %v1823, 16
  %v2505 = vpop.permute.xlu0 %2504
  %2506 = vrot.lane.b32.xlu0 %v1825, 16
  %v2507 = vpop.permute.xlu0 %2506
  %2508 = vrot.lane.b32.xlu0 %v1827, 16
  %v2509 = vpop.permute.xlu0 %2508
  %2510 = vrot.lane.b32.xlu0 %v1829, 16
  %v2511 = vpop.permute.xlu0 %2510
  %2512 = vrot.lane.b32.xlu0 %v1831, 16
  %v2513 = vpop.permute.xlu0 %2512
  %2514 = vrot.lane.b32.xlu0 %v1833, 16
  %v2515 = vpop.permute.xlu0 %2514
  %2516 = vrot.lane.b32.xlu0 %v1835, 16
  %v2517 = vpop.permute.xlu0 %2516
  %2518 = vrot.lane.b32.xlu0 %v1837, 16
  %v2519 = vpop.permute.xlu0 %2518
  %2520 = vrot.lane.b32.xlu0 %v1839, 16
  %v2521 = vpop.permute.xlu0 %2520
  %2522 = vrot.lane.b32.xlu0 %v1841, 16
  %v2523 = vpop.permute.xlu0 %2522
  %2524 = vrot.lane.b32.xlu0 %v1843, 16
  %v2525 = vpop.permute.xlu0 %2524
  %2526 = vrot.lane.b32.xlu0 %v1845, 16
  %v2527 = vpop.permute.xlu0 %2526
  %2528 = vrot.lane.b32.xlu0 %v1847, 16
  %v2529 = vpop.permute.xlu0 %2528
  %2530 = vrot.lane.b32.xlu0 %v1849, 16
  %v2531 = vpop.permute.xlu0 %2530
  %2532 = vrot.lane.b32.xlu0 %v1851, 16
  %v2533 = vpop.permute.xlu0 %2532
  %2534 = vrot.lane.b32.xlu0 %v1853, 16
  %v2535 = vpop.permute.xlu0 %2534
  %2536 = vrot.lane.b32.xlu0 %v1855, 16
  %v2537 = vpop.permute.xlu0 %2536
  %2570 = vrot.lane.b32.xlu0 %v2019, 32
  %v2571 = vpop.permute.xlu0 %2570
  %2572 = vrot.lane.b32.xlu0 %v2020, 32
  %v2573 = vpop.permute.xlu0 %2572
  %2574 = vrot.lane.b32.xlu0 %v2021, 32
  %v2575 = vpop.permute.xlu0 %2574
  %2576 = vrot.lane.b32.xlu0 %v2022, 32
  %v2577 = vpop.permute.xlu0 %2576
  %2578 = vrot.lane.b32.xlu0 %v2023, 32
  %v2579 = vpop.permute.xlu0 %2578
  %2580 = vrot.lane.b32.xlu0 %v2024, 32
  %v2581 = vpop.permute.xlu0 %2580
  %2582 = vrot.lane.b32.xlu0 %v2025, 32
  %v2583 = vpop.permute.xlu0 %2582
  %2584 = vrot.lane.b32.xlu0 %v2026, 32
  %v2585 = vpop.permute.xlu0 %2584
  %2586 = vrot.lane.b32.xlu0 %v2027, 32
  %v2587 = vpop.permute.xlu0 %2586
  %2588 = vrot.lane.b32.xlu0 %v2028, 32
  %v2589 = vpop.permute.xlu0 %2588
  %2590 = vrot.lane.b32.xlu0 %v2029, 32
  %v2591 = vpop.permute.xlu0 %2590
  %2592 = vrot.lane.b32.xlu0 %v2030, 32
  %v2593 = vpop.permute.xlu0 %2592
  %2594 = vrot.lane.b32.xlu0 %v2031, 32
  %v2595 = vpop.permute.xlu0 %2594
  %2596 = vrot.lane.b32.xlu0 %v2032, 32
  %v2597 = vpop.permute.xlu0 %2596
  %2598 = vrot.lane.b32.xlu0 %v2033, 32
  %v2599 = vpop.permute.xlu0 %2598
  %2600 = vrot.lane.b32.xlu0 %v2034, 32
  %v2601 = vpop.permute.xlu0 %2600
  %2602 = vrot.lane.b32.xlu0 %v2035, 32
  %v2603 = vpop.permute.xlu0 %2602
  %2604 = vrot.lane.b32.xlu0 %v2036, 32
  %v2605 = vpop.permute.xlu0 %2604
  %2606 = vrot.lane.b32.xlu0 %v2037, 32
  %v2607 = vpop.permute.xlu0 %2606
  %2608 = vrot.lane.b32.xlu0 %v2038, 32
  %v2609 = vpop.permute.xlu0 %2608
  %2610 = vrot.lane.b32.xlu0 %v2039, 32
  %v2611 = vpop.permute.xlu0 %2610
  %2612 = vrot.lane.b32.xlu0 %v2040, 32
  %v2613 = vpop.permute.xlu0 %2612
  %2614 = vrot.lane.b32.xlu0 %v2041, 32
  %v2615 = vpop.permute.xlu0 %2614
  %2616 = vrot.lane.b32.xlu0 %v2042, 32
  %v2617 = vpop.permute.xlu0 %2616
  %2618 = vrot.lane.b32.xlu0 %v2043, 32
  %v2619 = vpop.permute.xlu0 %2618
  %2620 = vrot.lane.b32.xlu0 %v2044, 32
  %v2621 = vpop.permute.xlu0 %2620
  %2622 = vrot.lane.b32.xlu0 %v2045, 32
  %v2623 = vpop.permute.xlu0 %2622
  %2624 = vrot.lane.b32.xlu0 %v2046, 32
  %v2625 = vpop.permute.xlu0 %2624
  %2626 = vrot.lane.b32.xlu0 %v2047, 32
  %v2627 = vpop.permute.xlu0 %2626
  %2628 = vrot.lane.b32.xlu0 %v2048, 32
  %v2629 = vpop.permute.xlu0 %2628
  %2630 = vrot.lane.b32.xlu0 %v2049, 32
  %v2631 = vpop.permute.xlu0 %2630
  %2632 = vrot.lane.b32.xlu0 %v2050, 32
  %v2633 = vpop.permute.xlu0 %2632
  %2634 = vrot.lane.b32.xlu0 %v1275, 32
  %v2635 = vpop.permute.xlu0 %2634
  %2636 = vrot.lane.b32.xlu0 %v1276, 32
  %v2637 = vpop.permute.xlu0 %2636
  %2638 = vrot.lane.b32.xlu0 %v1277, 32
  %v2639 = vpop.permute.xlu0 %2638
  %2640 = vrot.lane.b32.xlu0 %v1278, 32
  %v2641 = vpop.permute.xlu0 %2640
  %2642 = vrot.lane.b32.xlu0 %v1279, 32
  %v2643 = vpop.permute.xlu0 %2642
  %2644 = vrot.lane.b32.xlu0 %v1280, 32
  %v2645 = vpop.permute.xlu0 %2644
  %2646 = vrot.lane.b32.xlu0 %v1281, 32
  %v2647 = vpop.permute.xlu0 %2646
  %2648 = vrot.lane.b32.xlu0 %v1282, 32
  %v2649 = vpop.permute.xlu0 %2648
  %2650 = vrot.lane.b32.xlu0 %v1283, 32
  %v2651 = vpop.permute.xlu0 %2650
  %2652 = vrot.lane.b32.xlu0 %v1284, 32
  %v2653 = vpop.permute.xlu0 %2652
  %2654 = vrot.lane.b32.xlu0 %v1285, 32
  %v2655 = vpop.permute.xlu0 %2654
  %2656 = vrot.lane.b32.xlu0 %v1286, 32
  %v2657 = vpop.permute.xlu0 %2656
  %2658 = vrot.lane.b32.xlu0 %v1287, 32
  %v2659 = vpop.permute.xlu0 %2658
  %2660 = vrot.lane.b32.xlu0 %v1288, 32
  %v2661 = vpop.permute.xlu0 %2660
  %2662 = vrot.lane.b32.xlu0 %v1289, 32
  %v2663 = vpop.permute.xlu0 %2662
  %2664 = vrot.lane.b32.xlu0 %v1290, 32
  %v2665 = vpop.permute.xlu0 %2664
  %2666 = vrot.lane.b32.xlu0 %v1291, 32
  %v2667 = vpop.permute.xlu0 %2666
  %2668 = vrot.lane.b32.xlu0 %v1292, 32
  %v2669 = vpop.permute.xlu0 %2668
  %2670 = vrot.lane.b32.xlu0 %v1293, 32
  %v2671 = vpop.permute.xlu0 %2670
  %2672 = vrot.lane.b32.xlu0 %v1294, 32
  %v2673 = vpop.permute.xlu0 %2672
  %2674 = vrot.lane.b32.xlu0 %v1295, 32
  %v2675 = vpop.permute.xlu0 %2674
  %2676 = vrot.lane.b32.xlu0 %v1296, 32
  %v2677 = vpop.permute.xlu0 %2676
  %2678 = vrot.lane.b32.xlu0 %v1297, 32
  %v2679 = vpop.permute.xlu0 %2678
  %2680 = vrot.lane.b32.xlu0 %v1298, 32
  %v2681 = vpop.permute.xlu0 %2680
  %2682 = vrot.lane.b32.xlu0 %v1299, 32
  %v2683 = vpop.permute.xlu0 %2682
  %2684 = vrot.lane.b32.xlu0 %v1300, 32
  %v2685 = vpop.permute.xlu0 %2684
  %2686 = vrot.lane.b32.xlu0 %v1301, 32
  %v2687 = vpop.permute.xlu0 %2686
  %2688 = vrot.lane.b32.xlu0 %v1302, 32
  %v2689 = vpop.permute.xlu0 %2688
  %2690 = vrot.lane.b32.xlu0 %v1303, 32
  %v2691 = vpop.permute.xlu0 %2690
  %2692 = vrot.lane.b32.xlu0 %v1304, 32
  %v2693 = vpop.permute.xlu0 %2692
  %2694 = vrot.lane.b32.xlu0 %v1305, 32
  %v2695 = vpop.permute.xlu0 %2694
  %2696 = vrot.lane.b32.xlu0 %v1306, 32
  %v2697 = vpop.permute.xlu0 %2696
  %2730 = vrot.lane.b32.xlu0 %v2150, 48
  %v2731 = vpop.permute.xlu0 %2730
  %2732 = vrot.lane.b32.xlu0 %v2151, 48
  %v2733 = vpop.permute.xlu0 %2732
  %2734 = vrot.lane.b32.xlu0 %v2152, 48
  %v2735 = vpop.permute.xlu0 %2734
  %2736 = vrot.lane.b32.xlu0 %v2153, 48
  %v2737 = vpop.permute.xlu0 %2736
  %2738 = vrot.lane.b32.xlu0 %v2154, 48
  %v2739 = vpop.permute.xlu0 %2738
  %2740 = vrot.lane.b32.xlu0 %v2155, 48
  %v2741 = vpop.permute.xlu0 %2740
  %2742 = vrot.lane.b32.xlu0 %v2156, 48
  %v2743 = vpop.permute.xlu0 %2742
  %2744 = vrot.lane.b32.xlu0 %v2157, 48
  %v2745 = vpop.permute.xlu0 %2744
  %2746 = vrot.lane.b32.xlu0 %v2158, 48
  %v2747 = vpop.permute.xlu0 %2746
  %2748 = vrot.lane.b32.xlu0 %v2159, 48
  %v2749 = vpop.permute.xlu0 %2748
  %2750 = vrot.lane.b32.xlu0 %v2160, 48
  %v2751 = vpop.permute.xlu0 %2750
  %2752 = vrot.lane.b32.xlu0 %v2161, 48
  %v2753 = vpop.permute.xlu0 %2752
  %2754 = vrot.lane.b32.xlu0 %v2162, 48
  %v2755 = vpop.permute.xlu0 %2754
  %2756 = vrot.lane.b32.xlu0 %v2163, 48
  %v2757 = vpop.permute.xlu0 %2756
  %2758 = vrot.lane.b32.xlu0 %v2164, 48
  %v2759 = vpop.permute.xlu0 %2758
  %2760 = vrot.lane.b32.xlu0 %v2165, 48
  %v2761 = vpop.permute.xlu0 %2760
  %2762 = vrot.lane.b32.xlu0 %v2166, 48
  %v2763 = vpop.permute.xlu0 %2762
  %2764 = vrot.lane.b32.xlu0 %v2167, 48
  %v2765 = vpop.permute.xlu0 %2764
  %2766 = vrot.lane.b32.xlu0 %v2168, 48
  %v2767 = vpop.permute.xlu0 %2766
  %2768 = vrot.lane.b32.xlu0 %v2169, 48
  %v2769 = vpop.permute.xlu0 %2768
  %2770 = vrot.lane.b32.xlu0 %v2170, 48
  %v2771 = vpop.permute.xlu0 %2770
  %2772 = vrot.lane.b32.xlu0 %v2171, 48
  %v2773 = vpop.permute.xlu0 %2772
  %2774 = vrot.lane.b32.xlu0 %v2172, 48
  %v2775 = vpop.permute.xlu0 %2774
  %2776 = vrot.lane.b32.xlu0 %v2173, 48
  %v2777 = vpop.permute.xlu0 %2776
  %2778 = vrot.lane.b32.xlu0 %v2174, 48
  %v2779 = vpop.permute.xlu0 %2778
  %2780 = vrot.lane.b32.xlu0 %v2175, 48
  %v2781 = vpop.permute.xlu0 %2780
  %2782 = vrot.lane.b32.xlu0 %v2176, 48
  %v2783 = vpop.permute.xlu0 %2782
  %2784 = vrot.lane.b32.xlu0 %v2177, 48
  %v2785 = vpop.permute.xlu0 %2784
  %2786 = vrot.lane.b32.xlu0 %v2178, 48
  %v2787 = vpop.permute.xlu0 %2786
  %2788 = vrot.lane.b32.xlu0 %v2179, 48
  %v2789 = vpop.permute.xlu0 %2788
  %2790 = vrot.lane.b32.xlu0 %v2180, 48
  %v2791 = vpop.permute.xlu0 %2790
  %2792 = vrot.lane.b32.xlu0 %v2181, 48
  %v2793 = vpop.permute.xlu0 %2792
  %2826 = vrot.lane.b32.xlu0 %v2216, 64
  %v2827 = vpop.permute.xlu0 %2826
  %2828 = vrot.lane.b32.xlu0 %v2218, 64
  %v2829 = vpop.permute.xlu0 %2828
  %2830 = vrot.lane.b32.xlu0 %v2220, 64
  %v2831 = vpop.permute.xlu0 %2830
  %2832 = vrot.lane.b32.xlu0 %v2222, 64
  %v2833 = vpop.permute.xlu0 %2832
  %2834 = vrot.lane.b32.xlu0 %v2224, 64
  %v2835 = vpop.permute.xlu0 %2834
  %2836 = vrot.lane.b32.xlu0 %v2226, 64
  %v2837 = vpop.permute.xlu0 %2836
  %2838 = vrot.lane.b32.xlu0 %v2228, 64
  %v2839 = vpop.permute.xlu0 %2838
  %2840 = vrot.lane.b32.xlu0 %v2230, 64
  %v2841 = vpop.permute.xlu0 %2840
  %2842 = vrot.lane.b32.xlu0 %v2232, 64
  %v2843 = vpop.permute.xlu0 %2842
  %2844 = vrot.lane.b32.xlu0 %v2234, 64
  %v2845 = vpop.permute.xlu0 %2844
  %2846 = vrot.lane.b32.xlu0 %v2236, 64
  %v2847 = vpop.permute.xlu0 %2846
  %2848 = vrot.lane.b32.xlu0 %v2238, 64
  %v2849 = vpop.permute.xlu0 %2848
  %2850 = vrot.lane.b32.xlu0 %v2240, 64
  %v2851 = vpop.permute.xlu0 %2850
  %2852 = vrot.lane.b32.xlu0 %v2242, 64
  %v2853 = vpop.permute.xlu0 %2852
  %2854 = vrot.lane.b32.xlu0 %v2244, 64
  %v2855 = vpop.permute.xlu0 %2854
  %2856 = vrot.lane.b32.xlu0 %v2246, 64
  %v2857 = vpop.permute.xlu0 %2856
  %2858 = vrot.lane.b32.xlu0 %v2248, 64
  %v2859 = vpop.permute.xlu0 %2858
  %2860 = vrot.lane.b32.xlu0 %v2250, 64
  %v2861 = vpop.permute.xlu0 %2860
  %2862 = vrot.lane.b32.xlu0 %v2252, 64
  %v2863 = vpop.permute.xlu0 %2862
  %2864 = vrot.lane.b32.xlu0 %v2254, 64
  %v2865 = vpop.permute.xlu0 %2864
  %2866 = vrot.lane.b32.xlu0 %v2256, 64
  %v2867 = vpop.permute.xlu0 %2866
  %2868 = vrot.lane.b32.xlu0 %v2258, 64
  %v2869 = vpop.permute.xlu0 %2868
  %2870 = vrot.lane.b32.xlu0 %v2260, 64
  %v2871 = vpop.permute.xlu0 %2870
  %2872 = vrot.lane.b32.xlu0 %v2262, 64
  %v2873 = vpop.permute.xlu0 %2872
  %2874 = vrot.lane.b32.xlu0 %v2264, 64
  %v2875 = vpop.permute.xlu0 %2874
  %2876 = vrot.lane.b32.xlu0 %v2266, 64
  %v2877 = vpop.permute.xlu0 %2876
  %2878 = vrot.lane.b32.xlu0 %v2268, 64
  %v2879 = vpop.permute.xlu0 %2878
  %2880 = vrot.lane.b32.xlu0 %v2270, 64
  %v2881 = vpop.permute.xlu0 %2880
  %2882 = vrot.lane.b32.xlu0 %v2272, 64
  %v2883 = vpop.permute.xlu0 %2882
  %2884 = vrot.lane.b32.xlu0 %v2274, 64
  %v2885 = vpop.permute.xlu0 %2884
  %2886 = vrot.lane.b32.xlu0 %v2276, 64
  %v2887 = vpop.permute.xlu0 %2886
  %2888 = vrot.lane.b32.xlu0 %v2278, 64
  %v2889 = vpop.permute.xlu0 %2888
  %2922 = vrot.lane.b32.xlu0 %v2410, 80
  %v2923 = vpop.permute.xlu0 %2922
  %2924 = vrot.lane.b32.xlu0 %v2411, 80
  %v2925 = vpop.permute.xlu0 %2924
  %2926 = vrot.lane.b32.xlu0 %v2412, 80
  %v2927 = vpop.permute.xlu0 %2926
  %2928 = vrot.lane.b32.xlu0 %v2413, 80
  %v2929 = vpop.permute.xlu0 %2928
  %2930 = vrot.lane.b32.xlu0 %v2414, 80
  %v2931 = vpop.permute.xlu0 %2930
  %2932 = vrot.lane.b32.xlu0 %v2415, 80
  %v2933 = vpop.permute.xlu0 %2932
  %2934 = vrot.lane.b32.xlu0 %v2416, 80
  %v2935 = vpop.permute.xlu0 %2934
  %2936 = vrot.lane.b32.xlu0 %v2417, 80
  %v2937 = vpop.permute.xlu0 %2936
  %2938 = vrot.lane.b32.xlu0 %v2418, 80
  %v2939 = vpop.permute.xlu0 %2938
  %2940 = vrot.lane.b32.xlu0 %v2419, 80
  %v2941 = vpop.permute.xlu0 %2940
  %2942 = vrot.lane.b32.xlu0 %v2420, 80
  %v2943 = vpop.permute.xlu0 %2942
  %2944 = vrot.lane.b32.xlu0 %v2421, 80
  %v2945 = vpop.permute.xlu0 %2944
  %2946 = vrot.lane.b32.xlu0 %v2422, 80
  %v2947 = vpop.permute.xlu0 %2946
  %2948 = vrot.lane.b32.xlu0 %v2423, 80
  %v2949 = vpop.permute.xlu0 %2948
  %2950 = vrot.lane.b32.xlu0 %v2424, 80
  %v2951 = vpop.permute.xlu0 %2950
  %2952 = vrot.lane.b32.xlu0 %v2425, 80
  %v2953 = vpop.permute.xlu0 %2952
  %2954 = vrot.lane.b32.xlu0 %v2426, 80
  %v2955 = vpop.permute.xlu0 %2954
  %2956 = vrot.lane.b32.xlu0 %v2427, 80
  %v2957 = vpop.permute.xlu0 %2956
  %2958 = vrot.lane.b32.xlu0 %v2428, 80
  %v2959 = vpop.permute.xlu0 %2958
  %2960 = vrot.lane.b32.xlu0 %v2429, 80
  %v2961 = vpop.permute.xlu0 %2960
  %2962 = vrot.lane.b32.xlu0 %v2430, 80
  %v2963 = vpop.permute.xlu0 %2962
  %2964 = vrot.lane.b32.xlu0 %v2431, 80
  %v2965 = vpop.permute.xlu0 %2964
  %2966 = vrot.lane.b32.xlu0 %v2432, 80
  %v2967 = vpop.permute.xlu0 %2966
  %2968 = vrot.lane.b32.xlu0 %v2433, 80
  %v2969 = vpop.permute.xlu0 %2968
  %2970 = vrot.lane.b32.xlu0 %v2434, 80
  %v2971 = vpop.permute.xlu0 %2970
  %2972 = vrot.lane.b32.xlu0 %v2435, 80
  %v2973 = vpop.permute.xlu0 %2972
  %2974 = vrot.lane.b32.xlu0 %v2436, 80
  %v2975 = vpop.permute.xlu0 %2974
  %2976 = vrot.lane.b32.xlu0 %v2437, 80
  %v2977 = vpop.permute.xlu0 %2976
  %2978 = vrot.lane.b32.xlu0 %v2438, 80
  %v2979 = vpop.permute.xlu0 %2978
  %2980 = vrot.lane.b32.xlu0 %v2439, 80
  %v2981 = vpop.permute.xlu0 %2980
  %2982 = vrot.lane.b32.xlu0 %v2440, 80
  %v2983 = vpop.permute.xlu0 %2982
  %2984 = vrot.lane.b32.xlu0 %v2441, 80
  %v2985 = vpop.permute.xlu0 %2984
  %vm2986 = vcmask 130048
  %v2989 = vsel %vm2986, %v1662, %v2475
  %v2992 = vsel %vm2986, %v1663, %v2477
  %v2995 = vsel %vm2986, %v1664, %v2479
  %v2998 = vsel %vm2986, %v1665, %v2481
  %v3001 = vsel %vm2986, %v1666, %v2483
  %v3004 = vsel %vm2986, %v1667, %v2485
  %v3007 = vsel %vm2986, %v1668, %v2487
  %v3010 = vsel %vm2986, %v1669, %v2489
  %v3013 = vsel %vm2986, %v1670, %v2491
  %v3016 = vsel %vm2986, %v1671, %v2493
  %v3019 = vsel %vm2986, %v1672, %v2495
  %v3022 = vsel %vm2986, %v1673, %v2497
  %v3025 = vsel %vm2986, %v1674, %v2499
  %v3028 = vsel %vm2986, %v1675, %v2501
  %v3031 = vsel %vm2986, %v1676, %v2503
  %v3034 = vsel %vm2986, %v1677, %v2505
  %v3037 = vsel %vm2986, %v1678, %v2507
  %v3040 = vsel %vm2986, %v1679, %v2509
  %v3043 = vsel %vm2986, %v1680, %v2511
  %v3046 = vsel %vm2986, %v1681, %v2513
  %v3049 = vsel %vm2986, %v1682, %v2515
  %v3052 = vsel %vm2986, %v1683, %v2517
  %v3055 = vsel %vm2986, %v1684, %v2519
  %v3058 = vsel %vm2986, %v1685, %v2521
  %v3061 = vsel %vm2986, %v1686, %v2523
  %v3064 = vsel %vm2986, %v1687, %v2525
  %v3067 = vsel %vm2986, %v1688, %v2527
  %v3070 = vsel %vm2986, %v1689, %v2529
  %v3073 = vsel %vm2986, %v1690, %v2531
  %v3076 = vsel %vm2986, %v1691, %v2533
  %v3079 = vsel %vm2986, %v1692, %v2535
  %v3082 = vsel %vm2986, %v1693, %v2537
  %v3084 = vsel %vm284, %v2989, %v2571
  %v3086 = vsel %vm284, %v2992, %v2573
  %v3088 = vsel %vm284, %v2995, %v2575
  %v3090 = vsel %vm284, %v2998, %v2577
  %v3092 = vsel %vm284, %v3001, %v2579
  %v3094 = vsel %vm284, %v3004, %v2581
  %v3096 = vsel %vm284, %v3007, %v2583
  %v3098 = vsel %vm284, %v3010, %v2585
  %v3100 = vsel %vm284, %v3013, %v2587
  %v3102 = vsel %vm284, %v3016, %v2589
  %v3104 = vsel %vm284, %v3019, %v2591
  %v3106 = vsel %vm284, %v3022, %v2593
  %v3108 = vsel %vm284, %v3025, %v2595
  %v3110 = vsel %vm284, %v3028, %v2597
  %v3112 = vsel %vm284, %v3031, %v2599
  %v3114 = vsel %vm284, %v3034, %v2601
  %v3116 = vsel %vm284, %v3037, %v2603
  %v3118 = vsel %vm284, %v3040, %v2605
  %v3120 = vsel %vm284, %v3043, %v2607
  %v3122 = vsel %vm284, %v3046, %v2609
  %v3124 = vsel %vm284, %v3049, %v2611
  %v3126 = vsel %vm284, %v3052, %v2613
  %v3128 = vsel %vm284, %v3055, %v2615
  %v3130 = vsel %vm284, %v3058, %v2617
  %v3132 = vsel %vm284, %v3061, %v2619
  %v3134 = vsel %vm284, %v3064, %v2621
  %v3136 = vsel %vm284, %v3067, %v2623
  %v3138 = vsel %vm284, %v3070, %v2625
  %v3140 = vsel %vm284, %v3073, %v2627
  %v3142 = vsel %vm284, %v3076, %v2629
  %v3144 = vsel %vm284, %v3079, %v2631
  %v3146 = vsel %vm284, %v3082, %v2633
  %vm3147 = vcmask 392192
  %v3149 = vsel %vm3147, %v3084, %v2635
  %v3151 = vsel %vm3147, %v3086, %v2637
  %v3153 = vsel %vm3147, %v3088, %v2639
  %v3155 = vsel %vm3147, %v3090, %v2641
  %v3157 = vsel %vm3147, %v3092, %v2643
  %v3159 = vsel %vm3147, %v3094, %v2645
  %v3161 = vsel %vm3147, %v3096, %v2647
  %v3163 = vsel %vm3147, %v3098, %v2649
  %v3165 = vsel %vm3147, %v3100, %v2651
  %v3167 = vsel %vm3147, %v3102, %v2653
  %v3169 = vsel %vm3147, %v3104, %v2655
  %v3171 = vsel %vm3147, %v3106, %v2657
  %v3173 = vsel %vm3147, %v3108, %v2659
  %v3175 = vsel %vm3147, %v3110, %v2661
  %v3177 = vsel %vm3147, %v3112, %v2663
  %v3179 = vsel %vm3147, %v3114, %v2665
  %v3181 = vsel %vm3147, %v3116, %v2667
  %v3183 = vsel %vm3147, %v3118, %v2669
  %v3185 = vsel %vm3147, %v3120, %v2671
  %v3187 = vsel %vm3147, %v3122, %v2673
  %v3189 = vsel %vm3147, %v3124, %v2675
  %v3191 = vsel %vm3147, %v3126, %v2677
  %v3193 = vsel %vm3147, %v3128, %v2679
  %v3195 = vsel %vm3147, %v3130, %v2681
  %v3197 = vsel %vm3147, %v3132, %v2683
  %v3199 = vsel %vm3147, %v3134, %v2685
  %v3201 = vsel %vm3147, %v3136, %v2687
  %v3203 = vsel %vm3147, %v3138, %v2689
  %v3205 = vsel %vm3147, %v3140, %v2691
  %v3207 = vsel %vm3147, %v3142, %v2693
  %v3209 = vsel %vm3147, %v3144, %v2695
  %v3211 = vsel %vm3147, %v3146, %v2697
  %vm3212 = vcmask 523264
  %v3214 = vsel %vm3212, %v3149, %v2731
  %v3216 = vsel %vm3212, %v3151, %v2733
  %v3218 = vsel %vm3212, %v3153, %v2735
  %v3220 = vsel %vm3212, %v3155, %v2737
  %v3222 = vsel %vm3212, %v3157, %v2739
  %v3224 = vsel %vm3212, %v3159, %v2741
  %v3226 = vsel %vm3212, %v3161, %v2743
  %v3228 = vsel %vm3212, %v3163, %v2745
  %v3230 = vsel %vm3212, %v3165, %v2747
  %v3232 = vsel %vm3212, %v3167, %v2749
  %v3234 = vsel %vm3212, %v3169, %v2751
  %v3236 = vsel %vm3212, %v3171, %v2753
  %v3238 = vsel %vm3212, %v3173, %v2755
  %v3240 = vsel %vm3212, %v3175, %v2757
  %v3242 = vsel %vm3212, %v3177, %v2759
  %v3244 = vsel %vm3212, %v3179, %v2761
  %v3246 = vsel %vm3212, %v3181, %v2763
  %v3248 = vsel %vm3212, %v3183, %v2765
  %v3250 = vsel %vm3212, %v3185, %v2767
  %v3252 = vsel %vm3212, %v3187, %v2769
  %v3254 = vsel %vm3212, %v3189, %v2771
  %v3256 = vsel %vm3212, %v3191, %v2773
  %v3258 = vsel %vm3212, %v3193, %v2775
  %v3260 = vsel %vm3212, %v3195, %v2777
  %v3262 = vsel %vm3212, %v3197, %v2779
  %v3264 = vsel %vm3212, %v3199, %v2781
  %v3266 = vsel %vm3212, %v3201, %v2783
  %v3268 = vsel %vm3212, %v3203, %v2785
  %v3270 = vsel %vm3212, %v3205, %v2787
  %v3272 = vsel %vm3212, %v3207, %v2789
  %v3274 = vsel %vm3212, %v3209, %v2791
  %v3276 = vsel %vm3212, %v3211, %v2793
  %vm3277 = vcmask 654336
  %v3279 = vsel %vm3277, %v3214, %v2827
  %v3281 = vsel %vm3277, %v3216, %v2829
  %v3283 = vsel %vm3277, %v3218, %v2831
  %v3285 = vsel %vm3277, %v3220, %v2833
  %v3287 = vsel %vm3277, %v3222, %v2835
  %v3289 = vsel %vm3277, %v3224, %v2837
  %v3291 = vsel %vm3277, %v3226, %v2839
  %v3293 = vsel %vm3277, %v3228, %v2841
  %v3295 = vsel %vm3277, %v3230, %v2843
  %v3297 = vsel %vm3277, %v3232, %v2845
  %v3299 = vsel %vm3277, %v3234, %v2847
  %v3301 = vsel %vm3277, %v3236, %v2849
  %v3303 = vsel %vm3277, %v3238, %v2851
  %v3305 = vsel %vm3277, %v3240, %v2853
  %v3307 = vsel %vm3277, %v3242, %v2855
  %v3309 = vsel %vm3277, %v3244, %v2857
  %v3311 = vsel %vm3277, %v3246, %v2859
  %v3313 = vsel %vm3277, %v3248, %v2861
  %v3315 = vsel %vm3277, %v3250, %v2863
  %v3317 = vsel %vm3277, %v3252, %v2865
  %v3319 = vsel %vm3277, %v3254, %v2867
  %v3321 = vsel %vm3277, %v3256, %v2869
  %v3323 = vsel %vm3277, %v3258, %v2871
  %v3325 = vsel %vm3277, %v3260, %v2873
  %v3327 = vsel %vm3277, %v3262, %v2875
  %v3329 = vsel %vm3277, %v3264, %v2877
  %v3331 = vsel %vm3277, %v3266, %v2879
  %v3333 = vsel %vm3277, %v3268, %v2881
  %v3335 = vsel %vm3277, %v3270, %v2883
  %v3337 = vsel %vm3277, %v3272, %v2885
  %v3339 = vsel %vm3277, %v3274, %v2887
  %v3341 = vsel %vm3277, %v3276, %v2889
  %vm3342 = vcmask 785408
  %v3344 = vsel %vm3342, %v3279, %v2923
  %v3346 = vsel %vm3342, %v3281, %v2925
  %v3348 = vsel %vm3342, %v3283, %v2927
  %v3350 = vsel %vm3342, %v3285, %v2929
  %v3352 = vsel %vm3342, %v3287, %v2931
  %v3354 = vsel %vm3342, %v3289, %v2933
  %v3356 = vsel %vm3342, %v3291, %v2935
  %v3358 = vsel %vm3342, %v3293, %v2937
  %v3360 = vsel %vm3342, %v3295, %v2939
  %v3362 = vsel %vm3342, %v3297, %v2941
  %v3364 = vsel %vm3342, %v3299, %v2943
  %v3366 = vsel %vm3342, %v3301, %v2945
  %v3368 = vsel %vm3342, %v3303, %v2947
  %v3370 = vsel %vm3342, %v3305, %v2949
  %v3372 = vsel %vm3342, %v3307, %v2951
  %v3374 = vsel %vm3342, %v3309, %v2953
  %v3376 = vsel %vm3342, %v3311, %v2955
  %v3378 = vsel %vm3342, %v3313, %v2957
  %v3380 = vsel %vm3342, %v3315, %v2959
  %v3382 = vsel %vm3342, %v3317, %v2961
  %v3384 = vsel %vm3342, %v3319, %v2963
  %v3386 = vsel %vm3342, %v3321, %v2965
  %v3388 = vsel %vm3342, %v3323, %v2967
  %v3390 = vsel %vm3342, %v3325, %v2969
  %v3392 = vsel %vm3342, %v3327, %v2971
  %v3394 = vsel %vm3342, %v3329, %v2973
  %v3396 = vsel %vm3342, %v3331, %v2975
  %v3398 = vsel %vm3342, %v3333, %v2977
  %v3400 = vsel %vm3342, %v3335, %v2979
  %v3402 = vsel %vm3342, %v3337, %v2981
  %v3404 = vsel %vm3342, %v3339, %v2983
  %v3406 = vsel %vm3342, %v3341, %v2985
  %v3407 = vld [vmem:[%s6] sm:$0xf]
  %v3408 = vld [vmem:[%s6 + $0x4] sm:$0xf]
  %v3409 = vld [vmem:[%s6 + $0x8] sm:$0xf]
  %v3410 = vld [vmem:[%s6 + $0xc] sm:$0xf]
  %v3411 = vld [vmem:[%s6 + $0x10] sm:$0xf]
  %v3412 = vld [vmem:[%s6 + $0x14] sm:$0xf]
  %v3413 = vld [vmem:[%s6 + $0x18] sm:$0xf]
  %v3414 = vld [vmem:[%s6 + $0x1c] sm:$0xf]
  %v3415 = vld [vmem:[%s6 + $0x20] sm:$0xf]
  %v3416 = vld [vmem:[%s6 + $0x24] sm:$0xf]
  %v3417 = vld [vmem:[%s6 + $0x28] sm:$0xf]
  %v3418 = vld [vmem:[%s6 + $0x2c] sm:$0xf]
  %v3419 = vld [vmem:[%s6 + $0x30] sm:$0xf]
  %v3420 = vld [vmem:[%s6 + $0x34] sm:$0xf]
  %v3435 = vunpack.c.l.b16 %v3407
  %v3436 = vunpack.c.l.b16 %v3408
  %v3437 = vunpack.c.l.b16 %v3409
  %v3438 = vunpack.c.l.b16 %v3410
  %v3439 = vunpack.c.l.b16 %v3411
  %v3440 = vunpack.c.l.b16 %v3412
  %v3441 = vunpack.c.l.b16 %v3413
  %v3442 = vunpack.c.l.b16 %v3414
  %v3443 = vunpack.c.l.b16 %v3415
  %v3444 = vunpack.c.l.b16 %v3416
  %v3445 = vunpack.c.l.b16 %v3417
  %v3446 = vunpack.c.l.b16 %v3418
  %v3447 = vunpack.c.l.b16 %v3419
  %v3448 = vunpack.c.l.b16 %v3420
  %v3449 = vpack.c.b16 %v3436, %v3435
  %v3450 = vpack.c.b16 %v3438, %v3437
  %v3451 = vpack.c.b16 %v3440, %v3439
  %v3452 = vpack.c.b16 %v3442, %v3441
  %v3453 = vpack.c.b16 %v3444, %v3443
  %v3454 = vpack.c.b16 %v3446, %v3445
  %v3455 = vpack.c.b16 %v3448, %v3447
  %vm3463 = vcmask 916480
  %v3464 = vsel %vm3463, %v3344, 0
  %v3466 = vsel %vm3463, %v3346, 0
  %v3468 = vsel %vm3463, %v3348, 0
  %v3470 = vsel %vm3463, %v3350, 0
  %v3472 = vsel %vm3463, %v3352, 0
  %v3474 = vsel %vm3463, %v3354, 0
  %v3476 = vsel %vm3463, %v3356, 0
  %v3478 = vsel %vm3463, %v3358, 0
  %v3480 = vsel %vm3463, %v3360, 0
  %v3482 = vsel %vm3463, %v3362, 0
  %v3484 = vsel %vm3463, %v3364, 0
  %v3486 = vsel %vm3463, %v3366, 0
  %v3488 = vsel %vm3463, %v3368, 0
  %v3490 = vsel %vm3463, %v3370, 0
  %v3492 = vsel %vm3463, %v3372, 0
  %v3494 = vsel %vm3463, %v3374, 0
  %v3496 = vsel %vm3463, %v3376, 0
  %v3498 = vsel %vm3463, %v3378, 0
  %v3500 = vsel %vm3463, %v3380, 0
  %v3502 = vsel %vm3463, %v3382, 0
  %v3504 = vsel %vm3463, %v3384, 0
  %v3506 = vsel %vm3463, %v3386, 0
  %v3508 = vsel %vm3463, %v3388, 0
  %v3510 = vsel %vm3463, %v3390, 0
  %v3512 = vsel %vm3463, %v3392, 0
  %v3514 = vsel %vm3463, %v3394, 0
  %v3516 = vsel %vm3463, %v3396, 0
  %v3518 = vsel %vm3463, %v3398, 0
  %v3520 = vsel %vm3463, %v3400, 0
  %v3522 = vsel %vm3463, %v3402, 0
  %v3524 = vsel %vm3463, %v3404, 0
  %v3526 = vsel %vm3463, %v3406, 0
  %3528 = vmatpush.bf16.msra.mxu0 0
  %3529 = vmatpush.bf16.msra.mxu0 %v3455
  %3530 = vmatpush.bf16.msra.mxu0 %v3454
  %3531 = vmatpush.bf16.msra.mxu0 %v3453
  %3532 = vmatpush.bf16.msra.mxu0 %v3452
  %3533 = vmatpush.bf16.msra.mxu0 %v3451
  %3534 = vmatpush.bf16.msra.mxu0 %v3450
  %3535 = vmatpush.bf16.msra.mxu0 %v3449
  %3536 = vmatmul.bf16.gmra.mxu0 %v3464
  %v3537 = vpop.f32.mrf.mxu0
  %v3538 = vadd.f32 0.0, %v3537
  %v3539 = vpop.f32.mrf.mxu0
  %v3540 = vadd.f32 0.0, %v3539
  %3541 = vmatmul.bf16.gmra.mxu0 %v3466
  %v3542 = vpop.f32.mrf.mxu0
  %v3543 = vadd.f32 0.0, %v3542
  %v3544 = vpop.f32.mrf.mxu0
  %v3545 = vadd.f32 0.0, %v3544
  %3546 = vmatmul.bf16.gmra.mxu0 %v3468
  %v3547 = vpop.f32.mrf.mxu0
  %v3548 = vadd.f32 0.0, %v3547
  %v3549 = vpop.f32.mrf.mxu0
  %v3550 = vadd.f32 0.0, %v3549
  %3551 = vmatmul.bf16.gmra.mxu0 %v3470
  %v3552 = vpop.f32.mrf.mxu0
  %v3553 = vadd.f32 0.0, %v3552
  %v3554 = vpop.f32.mrf.mxu0
  %v3555 = vadd.f32 0.0, %v3554
  %3556 = vmatmul.bf16.gmra.mxu0 %v3472
  %v3557 = vpop.f32.mrf.mxu0
  %v3558 = vadd.f32 0.0, %v3557
  %v3559 = vpop.f32.mrf.mxu0
  %v3560 = vadd.f32 0.0, %v3559
  %3561 = vmatmul.bf16.gmra.mxu0 %v3474
  %v3562 = vpop.f32.mrf.mxu0
  %v3563 = vadd.f32 0.0, %v3562
  %v3564 = vpop.f32.mrf.mxu0
  %v3565 = vadd.f32 0.0, %v3564
  %3566 = vmatmul.bf16.gmra.mxu0 %v3476
  %v3567 = vpop.f32.mrf.mxu0
  %v3568 = vadd.f32 0.0, %v3567
  %v3569 = vpop.f32.mrf.mxu0
  %v3570 = vadd.f32 0.0, %v3569
  %3571 = vmatmul.bf16.gmra.mxu0 %v3478
  %v3572 = vpop.f32.mrf.mxu0
  %v3573 = vadd.f32 0.0, %v3572
  %v3574 = vpop.f32.mrf.mxu0
  %v3575 = vadd.f32 0.0, %v3574
  %3576 = vmatmul.bf16.gmra.mxu0 %v3480
  %v3577 = vpop.f32.mrf.mxu0
  %v3578 = vadd.f32 0.0, %v3577
  %v3579 = vpop.f32.mrf.mxu0
  %v3580 = vadd.f32 0.0, %v3579
  %3581 = vmatmul.bf16.gmra.mxu0 %v3482
  %v3582 = vpop.f32.mrf.mxu0
  %v3583 = vadd.f32 0.0, %v3582
  %v3584 = vpop.f32.mrf.mxu0
  %v3585 = vadd.f32 0.0, %v3584
  %3586 = vmatmul.bf16.gmra.mxu0 %v3484
  %v3587 = vpop.f32.mrf.mxu0
  %v3588 = vadd.f32 0.0, %v3587
  %v3589 = vpop.f32.mrf.mxu0
  %v3590 = vadd.f32 0.0, %v3589
  %3591 = vmatmul.bf16.gmra.mxu0 %v3486
  %v3592 = vpop.f32.mrf.mxu0
  %v3593 = vadd.f32 0.0, %v3592
  %v3594 = vpop.f32.mrf.mxu0
  %v3595 = vadd.f32 0.0, %v3594
  %3596 = vmatmul.bf16.gmra.mxu0 %v3488
  %v3597 = vpop.f32.mrf.mxu0
  %v3598 = vadd.f32 0.0, %v3597
  %v3599 = vpop.f32.mrf.mxu0
  %v3600 = vadd.f32 0.0, %v3599
  %3601 = vmatmul.bf16.gmra.mxu0 %v3490
  %v3602 = vpop.f32.mrf.mxu0
  %v3603 = vadd.f32 0.0, %v3602
  %v3604 = vpop.f32.mrf.mxu0
  %v3605 = vadd.f32 0.0, %v3604
  %3606 = vmatmul.bf16.gmra.mxu0 %v3492
  %v3607 = vpop.f32.mrf.mxu0
  %v3608 = vadd.f32 0.0, %v3607
  %v3609 = vpop.f32.mrf.mxu0
  %v3610 = vadd.f32 0.0, %v3609
  %3611 = vmatmul.bf16.gmra.mxu0 %v3494
  %v3612 = vpop.f32.mrf.mxu0
  %v3613 = vadd.f32 0.0, %v3612
  %v3614 = vpop.f32.mrf.mxu0
  %v3615 = vadd.f32 0.0, %v3614
  %3616 = vmatmul.bf16.gmra.mxu0 %v3496
  %v3617 = vpop.f32.mrf.mxu0
  %v3618 = vadd.f32 0.0, %v3617
  %v3619 = vpop.f32.mrf.mxu0
  %v3620 = vadd.f32 0.0, %v3619
  %3621 = vmatmul.bf16.gmra.mxu0 %v3498
  %v3622 = vpop.f32.mrf.mxu0
  %v3623 = vadd.f32 0.0, %v3622
  %v3624 = vpop.f32.mrf.mxu0
  %v3625 = vadd.f32 0.0, %v3624
  %3626 = vmatmul.bf16.gmra.mxu0 %v3500
  %v3627 = vpop.f32.mrf.mxu0
  %v3628 = vadd.f32 0.0, %v3627
  %v3629 = vpop.f32.mrf.mxu0
  %v3630 = vadd.f32 0.0, %v3629
  %3631 = vmatmul.bf16.gmra.mxu0 %v3502
  %v3632 = vpop.f32.mrf.mxu0
  %v3633 = vadd.f32 0.0, %v3632
  %v3634 = vpop.f32.mrf.mxu0
  %v3635 = vadd.f32 0.0, %v3634
  %3636 = vmatmul.bf16.gmra.mxu0 %v3504
  %v3637 = vpop.f32.mrf.mxu0
  %v3638 = vadd.f32 0.0, %v3637
  %v3639 = vpop.f32.mrf.mxu0
  %v3640 = vadd.f32 0.0, %v3639
  %3641 = vmatmul.bf16.gmra.mxu0 %v3506
  %v3642 = vpop.f32.mrf.mxu0
  %v3643 = vadd.f32 0.0, %v3642
  %v3644 = vpop.f32.mrf.mxu0
  %v3645 = vadd.f32 0.0, %v3644
  %3646 = vmatmul.bf16.gmra.mxu0 %v3508
  %v3647 = vpop.f32.mrf.mxu0
  %v3648 = vadd.f32 0.0, %v3647
  %v3649 = vpop.f32.mrf.mxu0
  %v3650 = vadd.f32 0.0, %v3649
  %3651 = vmatmul.bf16.gmra.mxu0 %v3510
  %v3652 = vpop.f32.mrf.mxu0
  %v3653 = vadd.f32 0.0, %v3652
  %v3654 = vpop.f32.mrf.mxu0
  %v3655 = vadd.f32 0.0, %v3654
  %3656 = vmatmul.bf16.gmra.mxu0 %v3512
  %v3657 = vpop.f32.mrf.mxu0
  %v3658 = vadd.f32 0.0, %v3657
  %v3659 = vpop.f32.mrf.mxu0
  %v3660 = vadd.f32 0.0, %v3659
  %3661 = vmatmul.bf16.gmra.mxu0 %v3514
  %v3662 = vpop.f32.mrf.mxu0
  %v3663 = vadd.f32 0.0, %v3662
  %v3664 = vpop.f32.mrf.mxu0
  %v3665 = vadd.f32 0.0, %v3664
  %3666 = vmatmul.bf16.gmra.mxu0 %v3516
  %v3667 = vpop.f32.mrf.mxu0
  %v3668 = vadd.f32 0.0, %v3667
  %v3669 = vpop.f32.mrf.mxu0
  %v3670 = vadd.f32 0.0, %v3669
  %3671 = vmatmul.bf16.gmra.mxu0 %v3518
  %v3672 = vpop.f32.mrf.mxu0
  %v3673 = vadd.f32 0.0, %v3672
  %v3674 = vpop.f32.mrf.mxu0
  %v3675 = vadd.f32 0.0, %v3674
  %3676 = vmatmul.bf16.gmra.mxu0 %v3520
  %v3677 = vpop.f32.mrf.mxu0
  %v3678 = vadd.f32 0.0, %v3677
  %v3679 = vpop.f32.mrf.mxu0
  %v3680 = vadd.f32 0.0, %v3679
  %3681 = vmatmul.bf16.gmra.mxu0 %v3522
  %v3682 = vpop.f32.mrf.mxu0
  %v3683 = vadd.f32 0.0, %v3682
  %v3684 = vpop.f32.mrf.mxu0
  %v3685 = vadd.f32 0.0, %v3684
  %3686 = vmatmul.bf16.gmra.mxu0 %v3524
  %v3687 = vpop.f32.mrf.mxu0
  %v3688 = vadd.f32 0.0, %v3687
  %v3689 = vpop.f32.mrf.mxu0
  %v3690 = vadd.f32 0.0, %v3689
  %3691 = vmatmul.bf16.gmra.mxu0 %v3526
  %v3692 = vpop.f32.mrf.mxu0
  %v3693 = vadd.f32 0.0, %v3692
  %v3694 = vpop.f32.mrf.mxu0
  %v3695 = vadd.f32 0.0, %v3694
  %3696 = vdwg.mxu0
  %v3697 = vld [vmem:[%s7] sm:$0x1]
  %v3699 = vperm.slane %v3697, 0
  %v3701 = vmul.f32 %v3538, %v3699
  %v3702 = vmul.f32 %v3540, %v3699
  %v3703 = vmul.f32 %v3543, %v3699
  %v3704 = vmul.f32 %v3545, %v3699
  %v3705 = vmul.f32 %v3548, %v3699
  %v3706 = vmul.f32 %v3550, %v3699
  %v3707 = vmul.f32 %v3553, %v3699
  %v3708 = vmul.f32 %v3555, %v3699
  %v3709 = vmul.f32 %v3558, %v3699
  %v3710 = vmul.f32 %v3560, %v3699
  %v3711 = vmul.f32 %v3563, %v3699
  %v3712 = vmul.f32 %v3565, %v3699
  %v3713 = vmul.f32 %v3568, %v3699
  %v3714 = vmul.f32 %v3570, %v3699
  %v3715 = vmul.f32 %v3573, %v3699
  %v3716 = vmul.f32 %v3575, %v3699
  %v3717 = vmul.f32 %v3578, %v3699
  %v3718 = vmul.f32 %v3580, %v3699
  %v3719 = vmul.f32 %v3583, %v3699
  %v3720 = vmul.f32 %v3585, %v3699
  %v3721 = vmul.f32 %v3588, %v3699
  %v3722 = vmul.f32 %v3590, %v3699
  %v3723 = vmul.f32 %v3593, %v3699
  %v3724 = vmul.f32 %v3595, %v3699
  %v3725 = vmul.f32 %v3598, %v3699
  %v3726 = vmul.f32 %v3600, %v3699
  %v3727 = vmul.f32 %v3603, %v3699
  %v3728 = vmul.f32 %v3605, %v3699
  %v3729 = vmul.f32 %v3608, %v3699
  %v3730 = vmul.f32 %v3610, %v3699
  %v3731 = vmul.f32 %v3613, %v3699
  %v3732 = vmul.f32 %v3615, %v3699
  %v3733 = vmul.f32 %v3618, %v3699
  %v3734 = vmul.f32 %v3620, %v3699
  %v3735 = vmul.f32 %v3623, %v3699
  %v3736 = vmul.f32 %v3625, %v3699
  %v3737 = vmul.f32 %v3628, %v3699
  %v3738 = vmul.f32 %v3630, %v3699
  %v3739 = vmul.f32 %v3633, %v3699
  %v3740 = vmul.f32 %v3635, %v3699
  %v3741 = vmul.f32 %v3638, %v3699
  %v3742 = vmul.f32 %v3640, %v3699
  %v3743 = vmul.f32 %v3643, %v3699
  %v3744 = vmul.f32 %v3645, %v3699
  %v3745 = vmul.f32 %v3648, %v3699
  %v3746 = vmul.f32 %v3650, %v3699
  %v3747 = vmul.f32 %v3653, %v3699
  %v3748 = vmul.f32 %v3655, %v3699
  %v3749 = vmul.f32 %v3658, %v3699
  %v3750 = vmul.f32 %v3660, %v3699
  %v3751 = vmul.f32 %v3663, %v3699
  %v3752 = vmul.f32 %v3665, %v3699
  %v3753 = vmul.f32 %v3668, %v3699
  %v3754 = vmul.f32 %v3670, %v3699
  %v3755 = vmul.f32 %v3673, %v3699
  %v3756 = vmul.f32 %v3675, %v3699
  %v3757 = vmul.f32 %v3678, %v3699
  %v3758 = vmul.f32 %v3680, %v3699
  %v3759 = vmul.f32 %v3683, %v3699
  %v3760 = vmul.f32 %v3685, %v3699
  %v3761 = vmul.f32 %v3688, %v3699
  %v3762 = vmul.f32 %v3690, %v3699
  %v3763 = vmul.f32 %v3693, %v3699
  %v3764 = vmul.f32 %v3695, %v3699
  %v3765 = vld [vmem:[%s8] sm:$0x1]
  %v3767 = vperm.slane %v3765, 0
  %v3769 = vadd.f32 %v3701, %v3767
  %v3770 = vadd.f32 %v3702, %v3767
  %v3771 = vadd.f32 %v3703, %v3767
  %v3772 = vadd.f32 %v3704, %v3767
  %v3773 = vadd.f32 %v3705, %v3767
  %v3774 = vadd.f32 %v3706, %v3767
  %v3775 = vadd.f32 %v3707, %v3767
  %v3776 = vadd.f32 %v3708, %v3767
  %v3777 = vadd.f32 %v3709, %v3767
  %v3778 = vadd.f32 %v3710, %v3767
  %v3779 = vadd.f32 %v3711, %v3767
  %v3780 = vadd.f32 %v3712, %v3767
  %v3781 = vadd.f32 %v3713, %v3767
  %v3782 = vadd.f32 %v3714, %v3767
  %v3783 = vadd.f32 %v3715, %v3767
  %v3784 = vadd.f32 %v3716, %v3767
  %v3785 = vadd.f32 %v3717, %v3767
  %v3786 = vadd.f32 %v3718, %v3767
  %v3787 = vadd.f32 %v3719, %v3767
  %v3788 = vadd.f32 %v3720, %v3767
  %v3789 = vadd.f32 %v3721, %v3767
  %v3790 = vadd.f32 %v3722, %v3767
  %v3791 = vadd.f32 %v3723, %v3767
  %v3792 = vadd.f32 %v3724, %v3767
  %v3793 = vadd.f32 %v3725, %v3767
  %v3794 = vadd.f32 %v3726, %v3767
  %v3795 = vadd.f32 %v3727, %v3767
  %v3796 = vadd.f32 %v3728, %v3767
  %v3797 = vadd.f32 %v3729, %v3767
  %v3798 = vadd.f32 %v3730, %v3767
  %v3799 = vadd.f32 %v3731, %v3767
  %v3800 = vadd.f32 %v3732, %v3767
  %v3801 = vadd.f32 %v3733, %v3767
  %v3802 = vadd.f32 %v3734, %v3767
  %v3803 = vadd.f32 %v3735, %v3767
  %v3804 = vadd.f32 %v3736, %v3767
  %v3805 = vadd.f32 %v3737, %v3767
  %v3806 = vadd.f32 %v3738, %v3767
  %v3807 = vadd.f32 %v3739, %v3767
  %v3808 = vadd.f32 %v3740, %v3767
  %v3809 = vadd.f32 %v3741, %v3767
  %v3810 = vadd.f32 %v3742, %v3767
  %v3811 = vadd.f32 %v3743, %v3767
  %v3812 = vadd.f32 %v3744, %v3767
  %v3813 = vadd.f32 %v3745, %v3767
  %v3814 = vadd.f32 %v3746, %v3767
  %v3815 = vadd.f32 %v3747, %v3767
  %v3816 = vadd.f32 %v3748, %v3767
  %v3817 = vadd.f32 %v3749, %v3767
  %v3818 = vadd.f32 %v3750, %v3767
  %v3819 = vadd.f32 %v3751, %v3767
  %v3820 = vadd.f32 %v3752, %v3767
  %v3821 = vadd.f32 %v3753, %v3767
  %v3822 = vadd.f32 %v3754, %v3767
  %v3823 = vadd.f32 %v3755, %v3767
  %v3824 = vadd.f32 %v3756, %v3767
  %v3825 = vadd.f32 %v3757, %v3767
  %v3826 = vadd.f32 %v3758, %v3767
  %v3827 = vadd.f32 %v3759, %v3767
  %v3828 = vadd.f32 %v3760, %v3767
  %v3829 = vadd.f32 %v3761, %v3767
  %v3830 = vadd.f32 %v3762, %v3767
  %v3831 = vadd.f32 %v3763, %v3767
  %v3832 = vadd.f32 %v3764, %v3767
  %v3833 = vmax.f32 %v3769, 0.0
  %v3834 = vmax.f32 %v3770, 0.0
  %v3835 = vmax.f32 %v3771, 0.0
  %v3836 = vmax.f32 %v3772, 0.0
  %v3837 = vmax.f32 %v3773, 0.0
  %v3838 = vmax.f32 %v3774, 0.0
  %v3839 = vmax.f32 %v3775, 0.0
  %v3840 = vmax.f32 %v3776, 0.0
  %v3841 = vmax.f32 %v3777, 0.0
  %v3842 = vmax.f32 %v3778, 0.0
  %v3843 = vmax.f32 %v3779, 0.0
  %v3844 = vmax.f32 %v3780, 0.0
  %v3845 = vmax.f32 %v3781, 0.0
  %v3846 = vmax.f32 %v3782, 0.0
  %v3847 = vmax.f32 %v3783, 0.0
  %v3848 = vmax.f32 %v3784, 0.0
  %v3849 = vmax.f32 %v3785, 0.0
  %v3850 = vmax.f32 %v3786, 0.0
  %v3851 = vmax.f32 %v3787, 0.0
  %v3852 = vmax.f32 %v3788, 0.0
  %v3853 = vmax.f32 %v3789, 0.0
  %v3854 = vmax.f32 %v3790, 0.0
  %v3855 = vmax.f32 %v3791, 0.0
  %v3856 = vmax.f32 %v3792, 0.0
  %v3857 = vmax.f32 %v3793, 0.0
  %v3858 = vmax.f32 %v3794, 0.0
  %v3859 = vmax.f32 %v3795, 0.0
  %v3860 = vmax.f32 %v3796, 0.0
  %v3861 = vmax.f32 %v3797, 0.0
  %v3862 = vmax.f32 %v3798, 0.0
  %v3863 = vmax.f32 %v3799, 0.0
  %v3864 = vmax.f32 %v3800, 0.0
  %v3865 = vmax.f32 %v3801, 0.0
  %v3866 = vmax.f32 %v3802, 0.0
  %v3867 = vmax.f32 %v3803, 0.0
  %v3868 = vmax.f32 %v3804, 0.0
  %v3869 = vmax.f32 %v3805, 0.0
  %v3870 = vmax.f32 %v3806, 0.0
  %v3871 = vmax.f32 %v3807, 0.0
  %v3872 = vmax.f32 %v3808, 0.0
  %v3873 = vmax.f32 %v3809, 0.0
  %v3874 = vmax.f32 %v3810, 0.0
  %v3875 = vmax.f32 %v3811, 0.0
  %v3876 = vmax.f32 %v3812, 0.0
  %v3877 = vmax.f32 %v3813, 0.0
  %v3878 = vmax.f32 %v3814, 0.0
  %v3879 = vmax.f32 %v3815, 0.0
  %v3880 = vmax.f32 %v3816, 0.0
  %v3881 = vmax.f32 %v3817, 0.0
  %v3882 = vmax.f32 %v3818, 0.0
  %v3883 = vmax.f32 %v3819, 0.0
  %v3884 = vmax.f32 %v3820, 0.0
  %v3885 = vmax.f32 %v3821, 0.0
  %v3886 = vmax.f32 %v3822, 0.0
  %v3887 = vmax.f32 %v3823, 0.0
  %v3888 = vmax.f32 %v3824, 0.0
  %v3889 = vmax.f32 %v3825, 0.0
  %v3890 = vmax.f32 %v3826, 0.0
  %v3891 = vmax.f32 %v3827, 0.0
  %v3892 = vmax.f32 %v3828, 0.0
  %v3893 = vmax.f32 %v3829, 0.0
  %v3894 = vmax.f32 %v3830, 0.0
  %v3895 = vmax.f32 %v3831, 0.0
  %v3896 = vmax.f32 %v3832, 0.0
  %v3897 = vpack.c.bf16 %v3833, %v3833
  %v3898 = vpack.c.bf16 %v3834, %v3834
  %v3899 = vpack.c.bf16 %v3835, %v3835
  %v3900 = vpack.c.bf16 %v3836, %v3836
  %v3901 = vpack.c.bf16 %v3837, %v3837
  %v3902 = vpack.c.bf16 %v3838, %v3838
  %v3903 = vpack.c.bf16 %v3839, %v3839
  %v3904 = vpack.c.bf16 %v3840, %v3840
  %v3905 = vpack.c.bf16 %v3841, %v3841
  %v3906 = vpack.c.bf16 %v3842, %v3842
  %v3907 = vpack.c.bf16 %v3843, %v3843
  %v3908 = vpack.c.bf16 %v3844, %v3844
  %v3909 = vpack.c.bf16 %v3845, %v3845
  %v3910 = vpack.c.bf16 %v3846, %v3846
  %v3911 = vpack.c.bf16 %v3847, %v3847
  %v3912 = vpack.c.bf16 %v3848, %v3848
  %v3913 = vpack.c.bf16 %v3849, %v3849
  %v3914 = vpack.c.bf16 %v3850, %v3850
  %v3915 = vpack.c.bf16 %v3851, %v3851
  %v3916 = vpack.c.bf16 %v3852, %v3852
  %v3917 = vpack.c.bf16 %v3853, %v3853
  %v3918 = vpack.c.bf16 %v3854, %v3854
  %v3919 = vpack.c.bf16 %v3855, %v3855
  %v3920 = vpack.c.bf16 %v3856, %v3856
  %v3921 = vpack.c.bf16 %v3857, %v3857
  %v3922 = vpack.c.bf16 %v3858, %v3858
  %v3923 = vpack.c.bf16 %v3859, %v3859
  %v3924 = vpack.c.bf16 %v3860, %v3860
  %v3925 = vpack.c.bf16 %v3861, %v3861
  %v3926 = vpack.c.bf16 %v3862, %v3862
  %v3927 = vpack.c.bf16 %v3863, %v3863
  %v3928 = vpack.c.bf16 %v3864, %v3864
  %v3929 = vpack.c.bf16 %v3865, %v3865
  %v3930 = vpack.c.bf16 %v3866, %v3866
  %v3931 = vpack.c.bf16 %v3867, %v3867
  %v3932 = vpack.c.bf16 %v3868, %v3868
  %v3933 = vpack.c.bf16 %v3869, %v3869
  %v3934 = vpack.c.bf16 %v3870, %v3870
  %v3935 = vpack.c.bf16 %v3871, %v3871
  %v3936 = vpack.c.bf16 %v3872, %v3872
  %v3937 = vpack.c.bf16 %v3873, %v3873
  %v3938 = vpack.c.bf16 %v3874, %v3874
  %v3939 = vpack.c.bf16 %v3875, %v3875
  %v3940 = vpack.c.bf16 %v3876, %v3876
  %v3941 = vpack.c.bf16 %v3877, %v3877
  %v3942 = vpack.c.bf16 %v3878, %v3878
  %v3943 = vpack.c.bf16 %v3879, %v3879
  %v3944 = vpack.c.bf16 %v3880, %v3880
  %v3945 = vpack.c.bf16 %v3881, %v3881
  %v3946 = vpack.c.bf16 %v3882, %v3882
  %v3947 = vpack.c.bf16 %v3883, %v3883
  %v3948 = vpack.c.bf16 %v3884, %v3884
  %v3949 = vpack.c.bf16 %v3885, %v3885
  %v3950 = vpack.c.bf16 %v3886, %v3886
  %v3951 = vpack.c.bf16 %v3887, %v3887
  %v3952 = vpack.c.bf16 %v3888, %v3888
  %v3953 = vpack.c.bf16 %v3889, %v3889
  %v3954 = vpack.c.bf16 %v3890, %v3890
  %v3955 = vpack.c.bf16 %v3891, %v3891
  %v3956 = vpack.c.bf16 %v3892, %v3892
  %v3957 = vpack.c.bf16 %v3893, %v3893
  %v3958 = vpack.c.bf16 %v3894, %v3894
  %v3959 = vpack.c.bf16 %v3895, %v3895
  %v3960 = vpack.c.bf16 %v3896, %v3896
  %v4013 = vunpack.c.l.b16 %v3897
  %v4014 = vunpack.c.l.b16 %v3898
  %v4015 = vunpack.c.l.b16 %v3899
  %v4016 = vunpack.c.l.b16 %v3900
  %v4017 = vunpack.c.l.b16 %v3901
  %v4018 = vunpack.c.l.b16 %v3902
  %v4019 = vunpack.c.l.b16 %v3903
  %v4020 = vunpack.c.l.b16 %v3904
  %v4021 = vunpack.c.l.b16 %v3905
  %v4022 = vunpack.c.l.b16 %v3906
  %v4023 = vunpack.c.l.b16 %v3907
  %v4024 = vunpack.c.l.b16 %v3908
  %v4025 = vunpack.c.l.b16 %v3909
  %v4026 = vunpack.c.l.b16 %v3910
  %v4027 = vunpack.c.l.b16 %v3911
  %v4028 = vunpack.c.l.b16 %v3912
  %v4029 = vunpack.c.l.b16 %v3913
  %v4030 = vunpack.c.l.b16 %v3914
  %v4031 = vunpack.c.l.b16 %v3915
  %v4032 = vunpack.c.l.b16 %v3916
  %v4033 = vunpack.c.l.b16 %v3917
  %v4034 = vunpack.c.l.b16 %v3918
  %v4035 = vunpack.c.l.b16 %v3919
  %v4036 = vunpack.c.l.b16 %v3920
  %v4037 = vunpack.c.l.b16 %v3921
  %v4038 = vunpack.c.l.b16 %v3922
  %v4039 = vunpack.c.l.b16 %v3929
  %v4040 = vunpack.c.l.b16 %v3930
  %v4041 = vunpack.c.l.b16 %v3931
  %v4042 = vunpack.c.l.b16 %v3932
  %v4043 = vunpack.c.l.b16 %v3933
  %v4044 = vunpack.c.l.b16 %v3934
  %v4045 = vunpack.c.l.b16 %v3935
  %v4046 = vunpack.c.l.b16 %v3936
  %v4047 = vunpack.c.l.b16 %v3937
  %v4048 = vunpack.c.l.b16 %v3938
  %v4049 = vunpack.c.l.b16 %v3939
  %v4050 = vunpack.c.l.b16 %v3940
  %v4051 = vunpack.c.l.b16 %v3941
  %v4052 = vunpack.c.l.b16 %v3942
  %v4053 = vunpack.c.l.b16 %v3943
  %v4054 = vunpack.c.l.b16 %v3944
  %v4055 = vunpack.c.l.b16 %v3945
  %v4056 = vunpack.c.l.b16 %v3946
  %v4057 = vunpack.c.l.b16 %v3947
  %v4058 = vunpack.c.l.b16 %v3948
  %v4059 = vunpack.c.l.b16 %v3949
  %v4060 = vunpack.c.l.b16 %v3950
  %v4061 = vunpack.c.l.b16 %v3951
  %v4062 = vunpack.c.l.b16 %v3952
  %v4063 = vunpack.c.l.b16 %v3953
  %v4064 = vunpack.c.l.b16 %v3954
  %v4065 = vpack.c.b16 %v4014, %v4013
  %v4066 = vpack.c.b16 %v4016, %v4015
  %v4067 = vpack.c.b16 %v4018, %v4017
  %v4068 = vpack.c.b16 %v4020, %v4019
  %v4069 = vpack.c.b16 %v4022, %v4021
  %v4070 = vpack.c.b16 %v4024, %v4023
  %v4071 = vpack.c.b16 %v4026, %v4025
  %v4072 = vpack.c.b16 %v4028, %v4027
  %v4073 = vpack.c.b16 %v4030, %v4029
  %v4074 = vpack.c.b16 %v4032, %v4031
  %v4075 = vpack.c.b16 %v4034, %v4033
  %v4076 = vpack.c.b16 %v4036, %v4035
  %v4077 = vpack.c.b16 %v4038, %v4037
  %v4078 = vpack.c.b16 %v4040, %v4039
  %v4079 = vpack.c.b16 %v4042, %v4041
  %v4080 = vpack.c.b16 %v4044, %v4043
  %v4081 = vpack.c.b16 %v4046, %v4045
  %v4082 = vpack.c.b16 %v4048, %v4047
  %v4083 = vpack.c.b16 %v4050, %v4049
  %v4084 = vpack.c.b16 %v4052, %v4051
  %v4085 = vpack.c.b16 %v4054, %v4053
  %v4086 = vpack.c.b16 %v4056, %v4055
  %v4087 = vpack.c.b16 %v4058, %v4057
  %v4088 = vpack.c.b16 %v4060, %v4059
  %v4089 = vpack.c.b16 %v4062, %v4061
  %v4090 = vpack.c.b16 %v4064, %v4063
  %v4095 = vunpack.c.l.b16 %v3923
  %v4096 = vunpack.c.l.b16 %v3924
  %v4097 = vunpack.c.l.b16 %v3955
  %v4098 = vunpack.c.l.b16 %v3956
  %v4099 = vpack.c.b16 %v4096, %v4095
  %v4100 = vpack.c.b16 %v4098, %v4097
  %v4105 = vunpack.c.l.b16 %v3925
  %v4106 = vunpack.c.l.b16 %v3926
  %v4107 = vunpack.c.l.b16 %v3957
  %v4108 = vunpack.c.l.b16 %v3958
  %v4109 = vpack.c.b16 %v4106, %v4105
  %v4110 = vpack.c.b16 %v4108, %v4107
  %4112 = vrot.lane.b32.xlu0 0, 24
  %v4113 = vpop.permute.xlu0 %4112
  %4114 = vrot.lane.b32.xlu0 %v4065, 24
  %v4115 = vpop.permute.xlu0 %4114
  %4116 = vrot.lane.b32.xlu0 %v4066, 24
  %v4117 = vpop.permute.xlu0 %4116
  %4118 = vrot.lane.b32.xlu0 %v4067, 24
  %v4119 = vpop.permute.xlu0 %4118
  %4120 = vrot.lane.b32.xlu0 %v4068, 24
  %v4121 = vpop.permute.xlu0 %4120
  %4122 = vrot.lane.b32.xlu0 %v4069, 24
  %v4123 = vpop.permute.xlu0 %4122
  %4124 = vrot.lane.b32.xlu0 %v4070, 24
  %v4125 = vpop.permute.xlu0 %4124
  %4126 = vrot.lane.b32.xlu0 %v4071, 24
  %v4127 = vpop.permute.xlu0 %4126
  %4128 = vrot.lane.b32.xlu0 %v4072, 24
  %v4129 = vpop.permute.xlu0 %4128
  %4130 = vrot.lane.b32.xlu0 %v4073, 24
  %v4131 = vpop.permute.xlu0 %4130
  %4132 = vrot.lane.b32.xlu0 %v4074, 24
  %v4133 = vpop.permute.xlu0 %4132
  %4134 = vrot.lane.b32.xlu0 %v4075, 24
  %v4135 = vpop.permute.xlu0 %4134
  %4136 = vrot.lane.b32.xlu0 %v4076, 24
  %v4137 = vpop.permute.xlu0 %4136
  %4138 = vrot.lane.b32.xlu0 %v4077, 24
  %v4139 = vpop.permute.xlu0 %4138
  %4140 = vrot.lane.b32.xlu0 %v4099, 24
  %v4141 = vpop.permute.xlu0 %4140
  %4142 = vrot.lane.b32.xlu0 %v4078, 24
  %v4143 = vpop.permute.xlu0 %4142
  %4144 = vrot.lane.b32.xlu0 %v4079, 24
  %v4145 = vpop.permute.xlu0 %4144
  %4146 = vrot.lane.b32.xlu0 %v4080, 24
  %v4147 = vpop.permute.xlu0 %4146
  %4148 = vrot.lane.b32.xlu0 %v4081, 24
  %v4149 = vpop.permute.xlu0 %4148
  %4150 = vrot.lane.b32.xlu0 %v4082, 24
  %v4151 = vpop.permute.xlu0 %4150
  %4152 = vrot.lane.b32.xlu0 %v4083, 24
  %v4153 = vpop.permute.xlu0 %4152
  %4154 = vrot.lane.b32.xlu0 %v4084, 24
  %v4155 = vpop.permute.xlu0 %4154
  %4156 = vrot.lane.b32.xlu0 %v4085, 24
  %v4157 = vpop.permute.xlu0 %4156
  %4158 = vrot.lane.b32.xlu0 %v4086, 24
  %v4159 = vpop.permute.xlu0 %4158
  %4160 = vrot.lane.b32.xlu0 %v4087, 24
  %v4161 = vpop.permute.xlu0 %4160
  %4162 = vrot.lane.b32.xlu0 %v4088, 24
  %v4163 = vpop.permute.xlu0 %4162
  %4164 = vrot.lane.b32.xlu0 %v4089, 24
  %v4165 = vpop.permute.xlu0 %4164
  %4166 = vrot.lane.b32.xlu0 %v4090, 24
  %v4167 = vpop.permute.xlu0 %4166
  %4168 = vrot.lane.b32.xlu0 %v4100, 24
  %v4169 = vpop.permute.xlu0 %4168
  %4170 = vrot.lane.b32.xlu0 0, 48
  %v4171 = vpop.permute.xlu0 %4170
  %4172 = vrot.lane.b32.xlu0 %v4065, 48
  %v4173 = vpop.permute.xlu0 %4172
  %4174 = vrot.lane.b32.xlu0 %v4066, 48
  %v4175 = vpop.permute.xlu0 %4174
  %4176 = vrot.lane.b32.xlu0 %v4067, 48
  %v4177 = vpop.permute.xlu0 %4176
  %4178 = vrot.lane.b32.xlu0 %v4068, 48
  %v4179 = vpop.permute.xlu0 %4178
  %4180 = vrot.lane.b32.xlu0 %v4069, 48
  %v4181 = vpop.permute.xlu0 %4180
  %4182 = vrot.lane.b32.xlu0 %v4070, 48
  %v4183 = vpop.permute.xlu0 %4182
  %4184 = vrot.lane.b32.xlu0 %v4071, 48
  %v4185 = vpop.permute.xlu0 %4184
  %4186 = vrot.lane.b32.xlu0 %v4072, 48
  %v4187 = vpop.permute.xlu0 %4186
  %4188 = vrot.lane.b32.xlu0 %v4073, 48
  %v4189 = vpop.permute.xlu0 %4188
  %4190 = vrot.lane.b32.xlu0 %v4074, 48
  %v4191 = vpop.permute.xlu0 %4190
  %4192 = vrot.lane.b32.xlu0 %v4075, 48
  %v4193 = vpop.permute.xlu0 %4192
  %4194 = vrot.lane.b32.xlu0 %v4076, 48
  %v4195 = vpop.permute.xlu0 %4194
  %4196 = vrot.lane.b32.xlu0 %v4077, 48
  %v4197 = vpop.permute.xlu0 %4196
  %4198 = vrot.lane.b32.xlu0 %v4099, 48
  %v4199 = vpop.permute.xlu0 %4198
  %4200 = vrot.lane.b32.xlu0 %v4109, 48
  %v4201 = vpop.permute.xlu0 %4200
  %4202 = vrot.lane.b32.xlu0 %v4078, 48
  %v4203 = vpop.permute.xlu0 %4202
  %4204 = vrot.lane.b32.xlu0 %v4079, 48
  %v4205 = vpop.permute.xlu0 %4204
  %4206 = vrot.lane.b32.xlu0 %v4080, 48
  %v4207 = vpop.permute.xlu0 %4206
  %4208 = vrot.lane.b32.xlu0 %v4081, 48
  %v4209 = vpop.permute.xlu0 %4208
  %4210 = vrot.lane.b32.xlu0 %v4082, 48
  %v4211 = vpop.permute.xlu0 %4210
  %4212 = vrot.lane.b32.xlu0 %v4083, 48
  %v4213 = vpop.permute.xlu0 %4212
  %4214 = vrot.lane.b32.xlu0 %v4084, 48
  %v4215 = vpop.permute.xlu0 %4214
  %4216 = vrot.lane.b32.xlu0 %v4085, 48
  %v4217 = vpop.permute.xlu0 %4216
  %4218 = vrot.lane.b32.xlu0 %v4086, 48
  %v4219 = vpop.permute.xlu0 %4218
  %4220 = vrot.lane.b32.xlu0 %v4087, 48
  %v4221 = vpop.permute.xlu0 %4220
  %4222 = vrot.lane.b32.xlu0 %v4088, 48
  %v4223 = vpop.permute.xlu0 %4222
  %4224 = vrot.lane.b32.xlu0 %v4089, 48
  %v4225 = vpop.permute.xlu0 %4224
  %4226 = vrot.lane.b32.xlu0 %v4090, 48
  %v4227 = vpop.permute.xlu0 %4226
  %4228 = vrot.lane.b32.xlu0 %v4100, 48
  %v4229 = vpop.permute.xlu0 %4228
  %4230 = vrot.lane.b32.xlu0 %v4110, 48
  %v4231 = vpop.permute.xlu0 %4230
  %v4236 = vunpack.c.l.b16 %v3927
  %v4237 = vunpack.c.l.b16 %v3928
  %v4238 = vunpack.c.l.b16 %v3959
  %v4239 = vunpack.c.l.b16 %v3960
  %v4240 = vpack.c.b16 %v4237, %v4236
  %v4241 = vpack.c.b16 %v4239, %v4238
  %4242 = vrot.lane.b32.xlu0 %v4065, 72
  %v4243 = vpop.permute.xlu0 %4242
  %4244 = vrot.lane.b32.xlu0 %v4066, 72
  %v4245 = vpop.permute.xlu0 %4244
  %4246 = vrot.lane.b32.xlu0 %v4067, 72
  %v4247 = vpop.permute.xlu0 %4246
  %4248 = vrot.lane.b32.xlu0 %v4068, 72
  %v4249 = vpop.permute.xlu0 %4248
  %4250 = vrot.lane.b32.xlu0 %v4069, 72
  %v4251 = vpop.permute.xlu0 %4250
  %4252 = vrot.lane.b32.xlu0 %v4070, 72
  %v4253 = vpop.permute.xlu0 %4252
  %4254 = vrot.lane.b32.xlu0 %v4071, 72
  %v4255 = vpop.permute.xlu0 %4254
  %4256 = vrot.lane.b32.xlu0 %v4072, 72
  %v4257 = vpop.permute.xlu0 %4256
  %4258 = vrot.lane.b32.xlu0 %v4073, 72
  %v4259 = vpop.permute.xlu0 %4258
  %4260 = vrot.lane.b32.xlu0 %v4074, 72
  %v4261 = vpop.permute.xlu0 %4260
  %4262 = vrot.lane.b32.xlu0 %v4075, 72
  %v4263 = vpop.permute.xlu0 %4262
  %4264 = vrot.lane.b32.xlu0 %v4076, 72
  %v4265 = vpop.permute.xlu0 %4264
  %4266 = vrot.lane.b32.xlu0 %v4077, 72
  %v4267 = vpop.permute.xlu0 %4266
  %4268 = vrot.lane.b32.xlu0 %v4099, 72
  %v4269 = vpop.permute.xlu0 %4268
  %4270 = vrot.lane.b32.xlu0 %v4109, 72
  %v4271 = vpop.permute.xlu0 %4270
  %4272 = vrot.lane.b32.xlu0 %v4240, 72
  %v4273 = vpop.permute.xlu0 %4272
  %4274 = vrot.lane.b32.xlu0 %v4078, 72
  %v4275 = vpop.permute.xlu0 %4274
  %4276 = vrot.lane.b32.xlu0 %v4079, 72
  %v4277 = vpop.permute.xlu0 %4276
  %4278 = vrot.lane.b32.xlu0 %v4080, 72
  %v4279 = vpop.permute.xlu0 %4278
  %4280 = vrot.lane.b32.xlu0 %v4081, 72
  %v4281 = vpop.permute.xlu0 %4280
  %4282 = vrot.lane.b32.xlu0 %v4082, 72
  %v4283 = vpop.permute.xlu0 %4282
  %4284 = vrot.lane.b32.xlu0 %v4083, 72
  %v4285 = vpop.permute.xlu0 %4284
  %4286 = vrot.lane.b32.xlu0 %v4084, 72
  %v4287 = vpop.permute.xlu0 %4286
  %4288 = vrot.lane.b32.xlu0 %v4085, 72
  %v4289 = vpop.permute.xlu0 %4288
  %4290 = vrot.lane.b32.xlu0 %v4086, 72
  %v4291 = vpop.permute.xlu0 %4290
  %4292 = vrot.lane.b32.xlu0 %v4087, 72
  %v4293 = vpop.permute.xlu0 %4292
  %4294 = vrot.lane.b32.xlu0 %v4088, 72
  %v4295 = vpop.permute.xlu0 %4294
  %4296 = vrot.lane.b32.xlu0 %v4089, 72
  %v4297 = vpop.permute.xlu0 %4296
  %4298 = vrot.lane.b32.xlu0 %v4090, 72
  %v4299 = vpop.permute.xlu0 %4298
  %4300 = vrot.lane.b32.xlu0 %v4100, 72
  %v4301 = vpop.permute.xlu0 %4300
  %4302 = vrot.lane.b32.xlu0 %v4110, 72
  %v4303 = vpop.permute.xlu0 %4302
  %4304 = vrot.lane.b32.xlu0 %v4241, 72
  %v4305 = vpop.permute.xlu0 %4304
  %v4306 = vunpack.c.l.b16 0
  %v4307 = vpack.c.b16 %v4306, %v4306
  %4308 = vrot.lane.b32.xlu0 %v4066, 96
  %v4309 = vpop.permute.xlu0 %4308
  %4310 = vrot.lane.b32.xlu0 %v4067, 96
  %v4311 = vpop.permute.xlu0 %4310
  %4312 = vrot.lane.b32.xlu0 %v4068, 96
  %v4313 = vpop.permute.xlu0 %4312
  %4314 = vrot.lane.b32.xlu0 %v4069, 96
  %v4315 = vpop.permute.xlu0 %4314
  %4316 = vrot.lane.b32.xlu0 %v4070, 96
  %v4317 = vpop.permute.xlu0 %4316
  %4318 = vrot.lane.b32.xlu0 %v4071, 96
  %v4319 = vpop.permute.xlu0 %4318
  %4320 = vrot.lane.b32.xlu0 %v4072, 96
  %v4321 = vpop.permute.xlu0 %4320
  %4322 = vrot.lane.b32.xlu0 %v4073, 96
  %v4323 = vpop.permute.xlu0 %4322
  %4324 = vrot.lane.b32.xlu0 %v4074, 96
  %v4325 = vpop.permute.xlu0 %4324
  %4326 = vrot.lane.b32.xlu0 %v4075, 96
  %v4327 = vpop.permute.xlu0 %4326
  %4328 = vrot.lane.b32.xlu0 %v4076, 96
  %v4329 = vpop.permute.xlu0 %4328
  %4330 = vrot.lane.b32.xlu0 %v4077, 96
  %v4331 = vpop.permute.xlu0 %4330
  %4332 = vrot.lane.b32.xlu0 %v4099, 96
  %v4333 = vpop.permute.xlu0 %4332
  %4334 = vrot.lane.b32.xlu0 %v4109, 96
  %v4335 = vpop.permute.xlu0 %4334
  %4336 = vrot.lane.b32.xlu0 %v4240, 96
  %v4337 = vpop.permute.xlu0 %4336
  %4338 = vrot.lane.b32.xlu0 %v4307, 96
  %v4339 = vpop.permute.xlu0 %4338
  %4340 = vrot.lane.b32.xlu0 %v4079, 96
  %v4341 = vpop.permute.xlu0 %4340
  %4342 = vrot.lane.b32.xlu0 %v4080, 96
  %v4343 = vpop.permute.xlu0 %4342
  %4344 = vrot.lane.b32.xlu0 %v4081, 96
  %v4345 = vpop.permute.xlu0 %4344
  %4346 = vrot.lane.b32.xlu0 %v4082, 96
  %v4347 = vpop.permute.xlu0 %4346
  %4348 = vrot.lane.b32.xlu0 %v4083, 96
  %v4349 = vpop.permute.xlu0 %4348
  %4350 = vrot.lane.b32.xlu0 %v4084, 96
  %v4351 = vpop.permute.xlu0 %4350
  %4352 = vrot.lane.b32.xlu0 %v4085, 96
  %v4353 = vpop.permute.xlu0 %4352
  %4354 = vrot.lane.b32.xlu0 %v4086, 96
  %v4355 = vpop.permute.xlu0 %4354
  %4356 = vrot.lane.b32.xlu0 %v4087, 96
  %v4357 = vpop.permute.xlu0 %4356
  %4358 = vrot.lane.b32.xlu0 %v4088, 96
  %v4359 = vpop.permute.xlu0 %4358
  %4360 = vrot.lane.b32.xlu0 %v4089, 96
  %v4361 = vpop.permute.xlu0 %4360
  %4362 = vrot.lane.b32.xlu0 %v4090, 96
  %v4363 = vpop.permute.xlu0 %4362
  %4364 = vrot.lane.b32.xlu0 %v4100, 96
  %v4365 = vpop.permute.xlu0 %4364
  %4366 = vrot.lane.b32.xlu0 %v4110, 96
  %v4367 = vpop.permute.xlu0 %4366
  %4368 = vrot.lane.b32.xlu0 %v4241, 96
  %v4369 = vpop.permute.xlu0 %4368
  %4370 = vrot.lane.b32.xlu0 %v4067, 120
  %v4371 = vpop.permute.xlu0 %4370
  %4372 = vrot.lane.b32.xlu0 %v4068, 120
  %v4373 = vpop.permute.xlu0 %4372
  %4374 = vrot.lane.b32.xlu0 %v4069, 120
  %v4375 = vpop.permute.xlu0 %4374
  %4376 = vrot.lane.b32.xlu0 %v4070, 120
  %v4377 = vpop.permute.xlu0 %4376
  %4378 = vrot.lane.b32.xlu0 %v4071, 120
  %v4379 = vpop.permute.xlu0 %4378
  %4380 = vrot.lane.b32.xlu0 %v4072, 120
  %v4381 = vpop.permute.xlu0 %4380
  %4382 = vrot.lane.b32.xlu0 %v4073, 120
  %v4383 = vpop.permute.xlu0 %4382
  %4384 = vrot.lane.b32.xlu0 %v4074, 120
  %v4385 = vpop.permute.xlu0 %4384
  %4386 = vrot.lane.b32.xlu0 %v4075, 120
  %v4387 = vpop.permute.xlu0 %4386
  %4388 = vrot.lane.b32.xlu0 %v4076, 120
  %v4389 = vpop.permute.xlu0 %4388
  %4390 = vrot.lane.b32.xlu0 %v4077, 120
  %v4391 = vpop.permute.xlu0 %4390
  %4392 = vrot.lane.b32.xlu0 %v4099, 120
  %v4393 = vpop.permute.xlu0 %4392
  %4394 = vrot.lane.b32.xlu0 %v4109, 120
  %v4395 = vpop.permute.xlu0 %4394
  %4396 = vrot.lane.b32.xlu0 %v4240, 120
  %v4397 = vpop.permute.xlu0 %4396
  %4398 = vrot.lane.b32.xlu0 %v4307, 120
  %v4399 = vpop.permute.xlu0 %4398
  %4400 = vrot.lane.b32.xlu0 %v4080, 120
  %v4401 = vpop.permute.xlu0 %4400
  %4402 = vrot.lane.b32.xlu0 %v4081, 120
  %v4403 = vpop.permute.xlu0 %4402
  %4404 = vrot.lane.b32.xlu0 %v4082, 120
  %v4405 = vpop.permute.xlu0 %4404
  %4406 = vrot.lane.b32.xlu0 %v4083, 120
  %v4407 = vpop.permute.xlu0 %4406
  %4408 = vrot.lane.b32.xlu0 %v4084, 120
  %v4409 = vpop.permute.xlu0 %4408
  %4410 = vrot.lane.b32.xlu0 %v4085, 120
  %v4411 = vpop.permute.xlu0 %4410
  %4412 = vrot.lane.b32.xlu0 %v4086, 120
  %v4413 = vpop.permute.xlu0 %4412
  %4414 = vrot.lane.b32.xlu0 %v4087, 120
  %v4415 = vpop.permute.xlu0 %4414
  %4416 = vrot.lane.b32.xlu0 %v4088, 120
  %v4417 = vpop.permute.xlu0 %4416
  %4418 = vrot.lane.b32.xlu0 %v4089, 120
  %v4419 = vpop.permute.xlu0 %4418
  %4420 = vrot.lane.b32.xlu0 %v4090, 120
  %v4421 = vpop.permute.xlu0 %4420
  %4422 = vrot.lane.b32.xlu0 %v4100, 120
  %v4423 = vpop.permute.xlu0 %4422
  %4424 = vrot.lane.b32.xlu0 %v4110, 120
  %v4425 = vpop.permute.xlu0 %4424
  %4426 = vrot.lane.b32.xlu0 %v4241, 120
  %v4427 = vpop.permute.xlu0 %4426
  %4428 = vrot.lane.b32.xlu0 %v4068, 16
  %v4429 = vpop.permute.xlu0 %4428
  %4430 = vrot.lane.b32.xlu0 %v4069, 16
  %v4431 = vpop.permute.xlu0 %4430
  %4432 = vrot.lane.b32.xlu0 %v4070, 16
  %v4433 = vpop.permute.xlu0 %4432
  %4434 = vrot.lane.b32.xlu0 %v4071, 16
  %v4435 = vpop.permute.xlu0 %4434
  %4436 = vrot.lane.b32.xlu0 %v4072, 16
  %v4437 = vpop.permute.xlu0 %4436
  %4438 = vrot.lane.b32.xlu0 %v4073, 16
  %v4439 = vpop.permute.xlu0 %4438
  %4440 = vrot.lane.b32.xlu0 %v4074, 16
  %v4441 = vpop.permute.xlu0 %4440
  %4442 = vrot.lane.b32.xlu0 %v4075, 16
  %v4443 = vpop.permute.xlu0 %4442
  %4444 = vrot.lane.b32.xlu0 %v4076, 16
  %v4445 = vpop.permute.xlu0 %4444
  %4446 = vrot.lane.b32.xlu0 %v4077, 16
  %v4447 = vpop.permute.xlu0 %4446
  %4448 = vrot.lane.b32.xlu0 %v4099, 16
  %v4449 = vpop.permute.xlu0 %4448
  %4450 = vrot.lane.b32.xlu0 %v4109, 16
  %v4451 = vpop.permute.xlu0 %4450
  %4452 = vrot.lane.b32.xlu0 %v4240, 16
  %v4453 = vpop.permute.xlu0 %4452
  %4454 = vrot.lane.b32.xlu0 %v4307, 16
  %v4455 = vpop.permute.xlu0 %4454
  %4456 = vrot.lane.b32.xlu0 %v4081, 16
  %v4457 = vpop.permute.xlu0 %4456
  %4458 = vrot.lane.b32.xlu0 %v4082, 16
  %v4459 = vpop.permute.xlu0 %4458
  %4460 = vrot.lane.b32.xlu0 %v4083, 16
  %v4461 = vpop.permute.xlu0 %4460
  %4462 = vrot.lane.b32.xlu0 %v4084, 16
  %v4463 = vpop.permute.xlu0 %4462
  %4464 = vrot.lane.b32.xlu0 %v4085, 16
  %v4465 = vpop.permute.xlu0 %4464
  %4466 = vrot.lane.b32.xlu0 %v4086, 16
  %v4467 = vpop.permute.xlu0 %4466
  %4468 = vrot.lane.b32.xlu0 %v4087, 16
  %v4469 = vpop.permute.xlu0 %4468
  %4470 = vrot.lane.b32.xlu0 %v4088, 16
  %v4471 = vpop.permute.xlu0 %4470
  %4472 = vrot.lane.b32.xlu0 %v4089, 16
  %v4473 = vpop.permute.xlu0 %4472
  %4474 = vrot.lane.b32.xlu0 %v4090, 16
  %v4475 = vpop.permute.xlu0 %4474
  %4476 = vrot.lane.b32.xlu0 %v4100, 16
  %v4477 = vpop.permute.xlu0 %4476
  %4478 = vrot.lane.b32.xlu0 %v4110, 16
  %v4479 = vpop.permute.xlu0 %4478
  %4480 = vrot.lane.b32.xlu0 %v4241, 16
  %v4481 = vpop.permute.xlu0 %4480
  %vm4482 = vcmask 195584
  %v4484 = vsel %vm4482, 0, %v4113
  %v4486 = vsel %vm4482, 0, %v4115
  %v4489 = vsel %vm4482, %v4065, %v4117
  %v4492 = vsel %vm4482, %v4066, %v4119
  %v4495 = vsel %vm4482, %v4067, %v4121
  %v4498 = vsel %vm4482, %v4068, %v4123
  %v4501 = vsel %vm4482, %v4069, %v4125
  %v4504 = vsel %vm4482, %v4070, %v4127
  %v4507 = vsel %vm4482, %v4071, %v4129
  %v4510 = vsel %vm4482, %v4072, %v4131
  %v4513 = vsel %vm4482, %v4073, %v4133
  %v4516 = vsel %vm4482, %v4074, %v4135
  %v4519 = vsel %vm4482, %v4075, %v4137
  %v4522 = vsel %vm4482, %v4076, %v4139
  %v4525 = vsel %vm4482, %v4077, %v4141
  %v4527 = vsel %vm4482, 0, %v4143
  %v4530 = vsel %vm4482, %v4078, %v4145
  %v4533 = vsel %vm4482, %v4079, %v4147
  %v4536 = vsel %vm4482, %v4080, %v4149
  %v4539 = vsel %vm4482, %v4081, %v4151
  %v4542 = vsel %vm4482, %v4082, %v4153
  %v4545 = vsel %vm4482, %v4083, %v4155
  %v4548 = vsel %vm4482, %v4084, %v4157
  %v4551 = vsel %vm4482, %v4085, %v4159
  %v4554 = vsel %vm4482, %v4086, %v4161
  %v4557 = vsel %vm4482, %v4087, %v4163
  %v4560 = vsel %vm4482, %v4088, %v4165
  %v4563 = vsel %vm4482, %v4089, %v4167
  %v4566 = vsel %vm4482, %v4090, %v4169
  %v4568 = vsel %vm3147, %v4484, %v4171
  %v4570 = vsel %vm3147, %v4484, %v4173
  %v4572 = vsel %vm3147, %v4486, %v4175
  %v4574 = vsel %vm3147, %v4489, %v4177
  %v4576 = vsel %vm3147, %v4492, %v4179
  %v4578 = vsel %vm3147, %v4495, %v4181
  %v4580 = vsel %vm3147, %v4498, %v4183
  %v4582 = vsel %vm3147, %v4501, %v4185
  %v4584 = vsel %vm3147, %v4504, %v4187
  %v4586 = vsel %vm3147, %v4507, %v4189
  %v4588 = vsel %vm3147, %v4510, %v4191
  %v4590 = vsel %vm3147, %v4513, %v4193
  %v4592 = vsel %vm3147, %v4516, %v4195
  %v4594 = vsel %vm3147, %v4519, %v4197
  %v4596 = vsel %vm3147, %v4522, %v4199
  %v4598 = vsel %vm3147, %v4525, %v4201
  %v4600 = vsel %vm3147, %v4484, %v4203
  %v4602 = vsel %vm3147, %v4527, %v4205
  %v4604 = vsel %vm3147, %v4530, %v4207
  %v4606 = vsel %vm3147, %v4533, %v4209
  %v4608 = vsel %vm3147, %v4536, %v4211
  %v4610 = vsel %vm3147, %v4539, %v4213
  %v4612 = vsel %vm3147, %v4542, %v4215
  %v4614 = vsel %vm3147, %v4545, %v4217
  %v4616 = vsel %vm3147, %v4548, %v4219
  %v4618 = vsel %vm3147, %v4551, %v4221
  %v4620 = vsel %vm3147, %v4554, %v4223
  %v4622 = vsel %vm3147, %v4557, %v4225
  %v4624 = vsel %vm3147, %v4560, %v4227
  %v4626 = vsel %vm3147, %v4563, %v4229
  %v4628 = vsel %vm3147, %v4566, %v4231
  %vm4629 = vcmask 588800
  %v4631 = vsel %vm4629, %v4568, %v4243
  %v4633 = vsel %vm4629, %v4570, %v4245
  %v4635 = vsel %vm4629, %v4572, %v4247
  %v4637 = vsel %vm4629, %v4574, %v4249
  %v4639 = vsel %vm4629, %v4576, %v4251
  %v4641 = vsel %vm4629, %v4578, %v4253
  %v4643 = vsel %vm4629, %v4580, %v4255
  %v4645 = vsel %vm4629, %v4582, %v4257
  %v4647 = vsel %vm4629, %v4584, %v4259
  %v4649 = vsel %vm4629, %v4586, %v4261
  %v4651 = vsel %vm4629, %v4588, %v4263
  %v4653 = vsel %vm4629, %v4590, %v4265
  %v4655 = vsel %vm4629, %v4592, %v4267
  %v4657 = vsel %vm4629, %v4594, %v4269
  %v4659 = vsel %vm4629, %v4596, %v4271
  %v4661 = vsel %vm4629, %v4598, %v4273
  %v4663 = vsel %vm4629, %v4568, %v4275
  %v4665 = vsel %vm4629, %v4600, %v4277
  %v4667 = vsel %vm4629, %v4602, %v4279
  %v4669 = vsel %vm4629, %v4604, %v4281
  %v4671 = vsel %vm4629, %v4606, %v4283
  %v4673 = vsel %vm4629, %v4608, %v4285
  %v4675 = vsel %vm4629, %v4610, %v4287
  %v4677 = vsel %vm4629, %v4612, %v4289
  %v4679 = vsel %vm4629, %v4614, %v4291
  %v4681 = vsel %vm4629, %v4616, %v4293
  %v4683 = vsel %vm4629, %v4618, %v4295
  %v4685 = vsel %vm4629, %v4620, %v4297
  %v4687 = vsel %vm4629, %v4622, %v4299
  %v4689 = vsel %vm4629, %v4624, %v4301
  %v4691 = vsel %vm4629, %v4626, %v4303
  %v4693 = vsel %vm4629, %v4628, %v4305
  %v4695 = vsel %vm3342, %v4631, %v4309
  %v4697 = vsel %vm3342, %v4633, %v4311
  %v4699 = vsel %vm3342, %v4635, %v4313
  %v4701 = vsel %vm3342, %v4637, %v4315
  %v4703 = vsel %vm3342, %v4639, %v4317
  %v4705 = vsel %vm3342, %v4641, %v4319
  %v4707 = vsel %vm3342, %v4643, %v4321
  %v4709 = vsel %vm3342, %v4645, %v4323
  %v4711 = vsel %vm3342, %v4647, %v4325
  %v4713 = vsel %vm3342, %v4649, %v4327
  %v4715 = vsel %vm3342, %v4651, %v4329
  %v4717 = vsel %vm3342, %v4653, %v4331
  %v4719 = vsel %vm3342, %v4655, %v4333
  %v4721 = vsel %vm3342, %v4657, %v4335
  %v4723 = vsel %vm3342, %v4659, %v4337
  %v4725 = vsel %vm3342, %v4661, %v4339
  %v4727 = vsel %vm3342, %v4663, %v4341
  %v4729 = vsel %vm3342, %v4665, %v4343
  %v4731 = vsel %vm3342, %v4667, %v4345
  %v4733 = vsel %vm3342, %v4669, %v4347
  %v4735 = vsel %vm3342, %v4671, %v4349
  %v4737 = vsel %vm3342, %v4673, %v4351
  %v4739 = vsel %vm3342, %v4675, %v4353
  %v4741 = vsel %vm3342, %v4677, %v4355
  %v4743 = vsel %vm3342, %v4679, %v4357
  %v4745 = vsel %vm3342, %v4681, %v4359
  %v4747 = vsel %vm3342, %v4683, %v4361
  %v4749 = vsel %vm3342, %v4685, %v4363
  %v4751 = vsel %vm3342, %v4687, %v4365
  %v4753 = vsel %vm3342, %v4689, %v4367
  %v4755 = vsel %vm3342, %v4691, %v4369
  %v4756 = vsel %vm3342, %v4693, %v4339
  %vm4757 = vcmask 982016
  %v4759 = vsel %vm4757, %v4695, %v4371
  %v4762 = vsel %vm4757, %v4697, %v4373
  %v4765 = vsel %vm4757, %v4699, %v4375
  %v4768 = vsel %vm4757, %v4701, %v4377
  %v4771 = vsel %vm4757, %v4703, %v4379
  %v4774 = vsel %vm4757, %v4705, %v4381
  %v4777 = vsel %vm4757, %v4707, %v4383
  %v4780 = vsel %vm4757, %v4709, %v4385
  %v4783 = vsel %vm4757, %v4711, %v4387
  %v4786 = vsel %vm4757, %v4713, %v4389
  %v4789 = vsel %vm4757, %v4715, %v4391
  %v4792 = vsel %vm4757, %v4717, %v4393
  %v4795 = vsel %vm4757, %v4719, %v4395
  %v4798 = vsel %vm4757, %v4721, %v4397
  %v4801 = vsel %vm4757, %v4723, %v4399
  %v4803 = vsel %vm4757, %v4725, %v4399
  %v4806 = vsel %vm4757, %v4727, %v4401
  %v4809 = vsel %vm4757, %v4729, %v4403
  %v4812 = vsel %vm4757, %v4731, %v4405
  %v4815 = vsel %vm4757, %v4733, %v4407
  %v4818 = vsel %vm4757, %v4735, %v4409
  %v4821 = vsel %vm4757, %v4737, %v4411
  %v4824 = vsel %vm4757, %v4739, %v4413
  %v4827 = vsel %vm4757, %v4741, %v4415
  %v4830 = vsel %vm4757, %v4743, %v4417
  %v4833 = vsel %vm4757, %v4745, %v4419
  %v4836 = vsel %vm4757, %v4747, %v4421
  %v4839 = vsel %vm4757, %v4749, %v4423
  %v4842 = vsel %vm4757, %v4751, %v4425
  %v4845 = vsel %vm4757, %v4753, %v4427
  %v4847 = vsel %vm4757, %v4755, %v4399
  %v4849 = vsel %vm4757, %v4756, %v4399
  %v4852 = vsel %vm2986, %v4371, %v4429
  %v4854 = vsel %vm2986, %v4373, %v4431
  %v4856 = vsel %vm2986, %v4375, %v4433
  %v4858 = vsel %vm2986, %v4377, %v4435
  %v4860 = vsel %vm2986, %v4379, %v4437
  %v4862 = vsel %vm2986, %v4381, %v4439
  %v4864 = vsel %vm2986, %v4383, %v4441
  %v4866 = vsel %vm2986, %v4385, %v4443
  %v4868 = vsel %vm2986, %v4387, %v4445
  %v4870 = vsel %vm2986, %v4389, %v4447
  %v4872 = vsel %vm2986, %v4391, %v4449
  %v4874 = vsel %vm2986, %v4393, %v4451
  %v4876 = vsel %vm2986, %v4395, %v4453
  %v4878 = vsel %vm2986, %v4397, %v4455
  %v4879 = vsel %vm2986, %v4399, %v4455
  %v4881 = vsel %vm2986, %v4401, %v4457
  %v4883 = vsel %vm2986, %v4403, %v4459
  %v4885 = vsel %vm2986, %v4405, %v4461
  %v4887 = vsel %vm2986, %v4407, %v4463
  %v4889 = vsel %vm2986, %v4409, %v4465
  %v4891 = vsel %vm2986, %v4411, %v4467
  %v4893 = vsel %vm2986, %v4413, %v4469
  %v4895 = vsel %vm2986, %v4415, %v4471
  %v4897 = vsel %vm2986, %v4417, %v4473
  %v4899 = vsel %vm2986, %v4419, %v4475
  %v4901 = vsel %vm2986, %v4421, %v4477
  %v4903 = vsel %vm2986, %v4423, %v4479
  %v4905 = vsel %vm2986, %v4425, %v4481
  %v4906 = vsel %vm2986, %v4427, %v4455
  %v4907 = vld [vmem:[%s9] sm:$0xf]
  %v4908 = vld [vmem:[%s9 + $0x4] sm:$0xf]
  %v4909 = vld [vmem:[%s9 + $0x8] sm:$0xf]
  %v4910 = vld [vmem:[%s9 + $0xc] sm:$0xf]
  %v4911 = vld [vmem:[%s9 + $0x10] sm:$0xf]
  %v4912 = vld [vmem:[%s9 + $0x14] sm:$0xf]
  %v4913 = vld [vmem:[%s9 + $0x18] sm:$0xf]
  %v4914 = vld [vmem:[%s9 + $0x1c] sm:$0xf]
  %v4915 = vld [vmem:[%s9 + $0x20] sm:$0xf]
  %v4916 = vld [vmem:[%s9 + $0x24] sm:$0xf]
  %v4917 = vld [vmem:[%s9 + $0x28] sm:$0xf]
  %v4918 = vld [vmem:[%s9 + $0x2c] sm:$0xf]
  %v4919 = vld [vmem:[%s9 + $0x30] sm:$0xf]
  %v4920 = vld [vmem:[%s9 + $0x34] sm:$0xf]
  %v4921 = vld [vmem:[%s9 + $0x38] sm:$0xf]
  %v4922 = vld [vmem:[%s9 + $0x3c] sm:$0xf]
  %v4923 = vld [vmem:[%s9 + $0x40] sm:$0xf]
  %v4924 = vld [vmem:[%s9 + $0x44] sm:$0xf]
  %v4925 = vld [vmem:[%s9 + $0x48] sm:$0xf]
  %v4926 = vld [vmem:[%s9 + $0x4c] sm:$0xf]
  %v4927 = vld [vmem:[%s9 + $0x50] sm:$0xf]
  %v4949 = vunpack.c.l.b16 %v4907
  %v4950 = vunpack.c.l.b16 %v4908
  %v4951 = vunpack.c.l.b16 %v4909
  %v4952 = vunpack.c.l.b16 %v4910
  %v4953 = vunpack.c.l.b16 %v4911
  %v4954 = vunpack.c.l.b16 %v4912
  %v4955 = vunpack.c.l.b16 %v4913
  %v4956 = vunpack.c.l.b16 %v4914
  %v4957 = vunpack.c.l.b16 %v4915
  %v4958 = vunpack.c.l.b16 %v4916
  %v4959 = vunpack.c.l.b16 %v4917
  %v4960 = vunpack.c.l.b16 %v4918
  %v4961 = vunpack.c.l.b16 %v4919
  %v4962 = vunpack.c.l.b16 %v4920
  %v4963 = vunpack.c.l.b16 %v4921
  %v4964 = vunpack.c.l.b16 %v4922
  %v4965 = vunpack.c.l.b16 %v4923
  %v4966 = vunpack.c.l.b16 %v4924
  %v4967 = vunpack.c.l.b16 %v4925
  %v4968 = vunpack.c.l.b16 %v4926
  %v4969 = vunpack.c.l.b16 %v4927
  %v4970 = vpack.c.b16 %v4950, %v4949
  %v4971 = vpack.c.b16 %v4952, %v4951
  %v4972 = vpack.c.b16 %v4954, %v4953
  %v4973 = vpack.c.b16 %v4956, %v4955
  %v4974 = vpack.c.b16 %v4958, %v4957
  %v4975 = vpack.c.b16 %v4960, %v4959
  %v4976 = vpack.c.b16 %v4962, %v4961
  %v4977 = vpack.c.b16 %v4964, %v4963
  %v4978 = vpack.c.b16 %v4966, %v4965
  %v4979 = vpack.c.b16 %v4968, %v4967
  %v4980 = vpack.c.b16 %v4969, %v4969
  %vm4991 = vcmask 326656
  %v4992 = vsel %vm4991, %v4852, 0
  %v4994 = vsel %vm4991, %v4854, 0
  %v4996 = vsel %vm4991, %v4856, 0
  %v4998 = vsel %vm4991, %v4858, 0
  %v5000 = vsel %vm4991, %v4860, 0
  %v5002 = vsel %vm4991, %v4862, 0
  %v5004 = vsel %vm4991, %v4864, 0
  %v5006 = vsel %vm4991, %v4866, 0
  %v5008 = vsel %vm4991, %v4868, 0
  %v5010 = vsel %vm4991, %v4870, 0
  %v5012 = vsel %vm4991, %v4872, 0
  %v5014 = vsel %vm4991, %v4874, 0
  %v5016 = vsel %vm4991, %v4876, 0
  %v5018 = vsel %vm4991, %v4878, 0
  %v5020 = vsel %vm4991, %v4879, 0
  %v5022 = vsel %vm4991, %v4881, 0
  %v5024 = vsel %vm4991, %v4883, 0
  %v5026 = vsel %vm4991, %v4885, 0
  %v5028 = vsel %vm4991, %v4887, 0
  %v5030 = vsel %vm4991, %v4889, 0
  %v5032 = vsel %vm4991, %v4891, 0
  %v5034 = vsel %vm4991, %v4893, 0
  %v5036 = vsel %vm4991, %v4895, 0
  %v5038 = vsel %vm4991, %v4897, 0
  %v5040 = vsel %vm4991, %v4899, 0
  %v5042 = vsel %vm4991, %v4901, 0
  %v5044 = vsel %vm4991, %v4903, 0
  %v5046 = vsel %vm4991, %v4905, 0
  %v5048 = vsel %vm4991, %v4906, 0
  %vm5050 = vcmask 1043456
  %v5052 = vsel %vm5050, %v4980, 0
  %5054 = vmatpush.bf16.msra.mxu0 %v4977
  %5055 = vmatpush.bf16.msra.mxu0 %v4976
  %5056 = vmatpush.bf16.msra.mxu0 %v4975
  %5057 = vmatpush.bf16.msra.mxu0 %v4974
  %5058 = vmatpush.bf16.msra.mxu0 %v4973
  %5059 = vmatpush.bf16.msra.mxu0 %v4972
  %5060 = vmatpush.bf16.msra.mxu0 %v4971
  %5061 = vmatpush.bf16.msra.mxu0 %v4970
  %5062 = vmatmul.bf16.gmra.mxu0 %v4759
  %v5063 = vpop.f32.mrf.mxu0
  %v5064 = vadd.f32 0.0, %v5063
  %v5065 = vpop.f32.mrf.mxu0
  %v5066 = vadd.f32 0.0, %v5065
  %5067 = vmatmul.bf16.gmra.mxu0 %v4762
  %v5068 = vpop.f32.mrf.mxu0
  %v5069 = vadd.f32 0.0, %v5068
  %v5070 = vpop.f32.mrf.mxu0
  %v5071 = vadd.f32 0.0, %v5070
  %5072 = vmatmul.bf16.gmra.mxu0 %v4765
  %v5073 = vpop.f32.mrf.mxu0
  %v5074 = vadd.f32 0.0, %v5073
  %v5075 = vpop.f32.mrf.mxu0
  %v5076 = vadd.f32 0.0, %v5075
  %5077 = vmatmul.bf16.gmra.mxu0 %v4768
  %v5078 = vpop.f32.mrf.mxu0
  %v5079 = vadd.f32 0.0, %v5078
  %v5080 = vpop.f32.mrf.mxu0
  %v5081 = vadd.f32 0.0, %v5080
  %5082 = vmatmul.bf16.gmra.mxu0 %v4771
  %v5083 = vpop.f32.mrf.mxu0
  %v5084 = vadd.f32 0.0, %v5083
  %v5085 = vpop.f32.mrf.mxu0
  %v5086 = vadd.f32 0.0, %v5085
  %5087 = vmatmul.bf16.gmra.mxu0 %v4774
  %v5088 = vpop.f32.mrf.mxu0
  %v5089 = vadd.f32 0.0, %v5088
  %v5090 = vpop.f32.mrf.mxu0
  %v5091 = vadd.f32 0.0, %v5090
  %5092 = vmatmul.bf16.gmra.mxu0 %v4777
  %v5093 = vpop.f32.mrf.mxu0
  %v5094 = vadd.f32 0.0, %v5093
  %v5095 = vpop.f32.mrf.mxu0
  %v5096 = vadd.f32 0.0, %v5095
  %5097 = vmatmul.bf16.gmra.mxu0 %v4780
  %v5098 = vpop.f32.mrf.mxu0
  %v5099 = vadd.f32 0.0, %v5098
  %v5100 = vpop.f32.mrf.mxu0
  %v5101 = vadd.f32 0.0, %v5100
  %5102 = vmatmul.bf16.gmra.mxu0 %v4783
  %v5103 = vpop.f32.mrf.mxu0
  %v5104 = vadd.f32 0.0, %v5103
  %v5105 = vpop.f32.mrf.mxu0
  %v5106 = vadd.f32 0.0, %v5105
  %5107 = vmatmul.bf16.gmra.mxu0 %v4786
  %v5108 = vpop.f32.mrf.mxu0
  %v5109 = vadd.f32 0.0, %v5108
  %v5110 = vpop.f32.mrf.mxu0
  %v5111 = vadd.f32 0.0, %v5110
  %5112 = vmatmul.bf16.gmra.mxu0 %v4789
  %v5113 = vpop.f32.mrf.mxu0
  %v5114 = vadd.f32 0.0, %v5113
  %v5115 = vpop.f32.mrf.mxu0
  %v5116 = vadd.f32 0.0, %v5115
  %5117 = vmatmul.bf16.gmra.mxu0 %v4792
  %v5118 = vpop.f32.mrf.mxu0
  %v5119 = vadd.f32 0.0, %v5118
  %v5120 = vpop.f32.mrf.mxu0
  %v5121 = vadd.f32 0.0, %v5120
  %5122 = vmatmul.bf16.gmra.mxu0 %v4795
  %v5123 = vpop.f32.mrf.mxu0
  %v5124 = vadd.f32 0.0, %v5123
  %v5125 = vpop.f32.mrf.mxu0
  %v5126 = vadd.f32 0.0, %v5125
  %5127 = vmatmul.bf16.gmra.mxu0 %v4798
  %v5128 = vpop.f32.mrf.mxu0
  %v5129 = vadd.f32 0.0, %v5128
  %v5130 = vpop.f32.mrf.mxu0
  %v5131 = vadd.f32 0.0, %v5130
  %5132 = vmatmul.bf16.gmra.mxu0 %v4801
  %v5133 = vpop.f32.mrf.mxu0
  %v5134 = vadd.f32 0.0, %v5133
  %v5135 = vpop.f32.mrf.mxu0
  %v5136 = vadd.f32 0.0, %v5135
  %5137 = vmatmul.bf16.gmra.mxu0 %v4803
  %v5138 = vpop.f32.mrf.mxu0
  %v5139 = vadd.f32 0.0, %v5138
  %v5140 = vpop.f32.mrf.mxu0
  %v5141 = vadd.f32 0.0, %v5140
  %5142 = vmatmul.bf16.gmra.mxu0 %v4806
  %v5143 = vpop.f32.mrf.mxu0
  %v5144 = vadd.f32 0.0, %v5143
  %v5145 = vpop.f32.mrf.mxu0
  %v5146 = vadd.f32 0.0, %v5145
  %5147 = vmatmul.bf16.gmra.mxu0 %v4809
  %v5148 = vpop.f32.mrf.mxu0
  %v5149 = vadd.f32 0.0, %v5148
  %v5150 = vpop.f32.mrf.mxu0
  %v5151 = vadd.f32 0.0, %v5150
  %5152 = vmatmul.bf16.gmra.mxu0 %v4812
  %v5153 = vpop.f32.mrf.mxu0
  %v5154 = vadd.f32 0.0, %v5153
  %v5155 = vpop.f32.mrf.mxu0
  %v5156 = vadd.f32 0.0, %v5155
  %5157 = vmatmul.bf16.gmra.mxu0 %v4815
  %v5158 = vpop.f32.mrf.mxu0
  %v5159 = vadd.f32 0.0, %v5158
  %v5160 = vpop.f32.mrf.mxu0
  %v5161 = vadd.f32 0.0, %v5160
  %5162 = vmatmul.bf16.gmra.mxu0 %v4818
  %v5163 = vpop.f32.mrf.mxu0
  %v5164 = vadd.f32 0.0, %v5163
  %v5165 = vpop.f32.mrf.mxu0
  %v5166 = vadd.f32 0.0, %v5165
  %5167 = vmatmul.bf16.gmra.mxu0 %v4821
  %v5168 = vpop.f32.mrf.mxu0
  %v5169 = vadd.f32 0.0, %v5168
  %v5170 = vpop.f32.mrf.mxu0
  %v5171 = vadd.f32 0.0, %v5170
  %5172 = vmatmul.bf16.gmra.mxu0 %v4824
  %v5173 = vpop.f32.mrf.mxu0
  %v5174 = vadd.f32 0.0, %v5173
  %v5175 = vpop.f32.mrf.mxu0
  %v5176 = vadd.f32 0.0, %v5175
  %5177 = vmatmul.bf16.gmra.mxu0 %v4827
  %v5178 = vpop.f32.mrf.mxu0
  %v5179 = vadd.f32 0.0, %v5178
  %v5180 = vpop.f32.mrf.mxu0
  %v5181 = vadd.f32 0.0, %v5180
  %5182 = vmatmul.bf16.gmra.mxu0 %v4830
  %v5183 = vpop.f32.mrf.mxu0
  %v5184 = vadd.f32 0.0, %v5183
  %v5185 = vpop.f32.mrf.mxu0
  %v5186 = vadd.f32 0.0, %v5185
  %5187 = vmatmul.bf16.gmra.mxu0 %v4833
  %v5188 = vpop.f32.mrf.mxu0
  %v5189 = vadd.f32 0.0, %v5188
  %v5190 = vpop.f32.mrf.mxu0
  %v5191 = vadd.f32 0.0, %v5190
  %5192 = vmatmul.bf16.gmra.mxu0 %v4836
  %v5193 = vpop.f32.mrf.mxu0
  %v5194 = vadd.f32 0.0, %v5193
  %v5195 = vpop.f32.mrf.mxu0
  %v5196 = vadd.f32 0.0, %v5195
  %5197 = vmatmul.bf16.gmra.mxu0 %v4839
  %v5198 = vpop.f32.mrf.mxu0
  %v5199 = vadd.f32 0.0, %v5198
  %v5200 = vpop.f32.mrf.mxu0
  %v5201 = vadd.f32 0.0, %v5200
  %5202 = vmatmul.bf16.gmra.mxu0 %v4842
  %v5203 = vpop.f32.mrf.mxu0
  %v5204 = vadd.f32 0.0, %v5203
  %v5205 = vpop.f32.mrf.mxu0
  %v5206 = vadd.f32 0.0, %v5205
  %5207 = vmatmul.bf16.gmra.mxu0 %v4845
  %v5208 = vpop.f32.mrf.mxu0
  %v5209 = vadd.f32 0.0, %v5208
  %v5210 = vpop.f32.mrf.mxu0
  %v5211 = vadd.f32 0.0, %v5210
  %5212 = vmatmul.bf16.gmra.mxu0 %v4847
  %v5213 = vpop.f32.mrf.mxu0
  %v5214 = vadd.f32 0.0, %v5213
  %v5215 = vpop.f32.mrf.mxu0
  %v5216 = vadd.f32 0.0, %v5215
  %5217 = vmatmul.bf16.gmra.mxu0 %v4849
  %v5218 = vpop.f32.mrf.mxu0
  %v5219 = vadd.f32 0.0, %v5218
  %v5220 = vpop.f32.mrf.mxu0
  %v5221 = vadd.f32 0.0, %v5220
  %5222 = vdwg.mxu0
  %5223 = vmatpush.bf16.msra.mxu0 0
  %5224 = vmatpush.bf16.msra.mxu0 0
  %5225 = vmatpush.bf16.msra.mxu0 0
  %5226 = vmatpush.bf16.msra.mxu0 0
  %5227 = vmatpush.bf16.msra.mxu0 0
  %5228 = vmatpush.bf16.msra.mxu0 %v5052
  %5229 = vmatpush.bf16.msra.mxu0 %v4979
  %5230 = vmatpush.bf16.msra.mxu0 %v4978
  %5231 = vmatmul.bf16.gmra.mxu0 %v4992
  %v5232 = vpop.f32.mrf.mxu0
  %v5233 = vadd.f32 %v5064, %v5232
  %v5234 = vpop.f32.mrf.mxu0
  %v5235 = vadd.f32 %v5066, %v5234
  %5236 = vmatmul.bf16.gmra.mxu0 %v4994
  %v5237 = vpop.f32.mrf.mxu0
  %v5238 = vadd.f32 %v5069, %v5237
  %v5239 = vpop.f32.mrf.mxu0
  %v5240 = vadd.f32 %v5071, %v5239
  %5241 = vmatmul.bf16.gmra.mxu0 %v4996
  %v5242 = vpop.f32.mrf.mxu0
  %v5243 = vadd.f32 %v5074, %v5242
  %v5244 = vpop.f32.mrf.mxu0
  %v5245 = vadd.f32 %v5076, %v5244
  %5246 = vmatmul.bf16.gmra.mxu0 %v4998
  %v5247 = vpop.f32.mrf.mxu0
  %v5248 = vadd.f32 %v5079, %v5247
  %v5249 = vpop.f32.mrf.mxu0
  %v5250 = vadd.f32 %v5081, %v5249
  %5251 = vmatmul.bf16.gmra.mxu0 %v5000
  %v5252 = vpop.f32.mrf.mxu0
  %v5253 = vadd.f32 %v5084, %v5252
  %v5254 = vpop.f32.mrf.mxu0
  %v5255 = vadd.f32 %v5086, %v5254
  %5256 = vmatmul.bf16.gmra.mxu0 %v5002
  %v5257 = vpop.f32.mrf.mxu0
  %v5258 = vadd.f32 %v5089, %v5257
  %v5259 = vpop.f32.mrf.mxu0
  %v5260 = vadd.f32 %v5091, %v5259
  %5261 = vmatmul.bf16.gmra.mxu0 %v5004
  %v5262 = vpop.f32.mrf.mxu0
  %v5263 = vadd.f32 %v5094, %v5262
  %v5264 = vpop.f32.mrf.mxu0
  %v5265 = vadd.f32 %v5096, %v5264
  %5266 = vmatmul.bf16.gmra.mxu0 %v5006
  %v5267 = vpop.f32.mrf.mxu0
  %v5268 = vadd.f32 %v5099, %v5267
  %v5269 = vpop.f32.mrf.mxu0
  %v5270 = vadd.f32 %v5101, %v5269
  %5271 = vmatmul.bf16.gmra.mxu0 %v5008
  %v5272 = vpop.f32.mrf.mxu0
  %v5273 = vadd.f32 %v5104, %v5272
  %v5274 = vpop.f32.mrf.mxu0
  %v5275 = vadd.f32 %v5106, %v5274
  %5276 = vmatmul.bf16.gmra.mxu0 %v5010
  %v5277 = vpop.f32.mrf.mxu0
  %v5278 = vadd.f32 %v5109, %v5277
  %v5279 = vpop.f32.mrf.mxu0
  %v5280 = vadd.f32 %v5111, %v5279
  %5281 = vmatmul.bf16.gmra.mxu0 %v5012
  %v5282 = vpop.f32.mrf.mxu0
  %v5283 = vadd.f32 %v5114, %v5282
  %v5284 = vpop.f32.mrf.mxu0
  %v5285 = vadd.f32 %v5116, %v5284
  %5286 = vmatmul.bf16.gmra.mxu0 %v5014
  %v5287 = vpop.f32.mrf.mxu0
  %v5288 = vadd.f32 %v5119, %v5287
  %v5289 = vpop.f32.mrf.mxu0
  %v5290 = vadd.f32 %v5121, %v5289
  %5291 = vmatmul.bf16.gmra.mxu0 %v5016
  %v5292 = vpop.f32.mrf.mxu0
  %v5293 = vadd.f32 %v5124, %v5292
  %v5294 = vpop.f32.mrf.mxu0
  %v5295 = vadd.f32 %v5126, %v5294
  %5296 = vmatmul.bf16.gmra.mxu0 %v5018
  %v5297 = vpop.f32.mrf.mxu0
  %v5298 = vadd.f32 %v5129, %v5297
  %v5299 = vpop.f32.mrf.mxu0
  %v5300 = vadd.f32 %v5131, %v5299
  %5301 = vmatmul.bf16.gmra.mxu0 %v5020
  %v5302 = vpop.f32.mrf.mxu0
  %v5303 = vadd.f32 %v5134, %v5302
  %v5304 = vpop.f32.mrf.mxu0
  %v5305 = vadd.f32 %v5136, %v5304
  %5306 = vmatmul.bf16.gmra.mxu0 %v5020
  %v5307 = vpop.f32.mrf.mxu0
  %v5308 = vadd.f32 %v5139, %v5307
  %v5309 = vpop.f32.mrf.mxu0
  %v5310 = vadd.f32 %v5141, %v5309
  %5311 = vmatmul.bf16.gmra.mxu0 %v5022
  %v5312 = vpop.f32.mrf.mxu0
  %v5313 = vadd.f32 %v5144, %v5312
  %v5314 = vpop.f32.mrf.mxu0
  %v5315 = vadd.f32 %v5146, %v5314
  %5316 = vmatmul.bf16.gmra.mxu0 %v5024
  %v5317 = vpop.f32.mrf.mxu0
  %v5318 = vadd.f32 %v5149, %v5317
  %v5319 = vpop.f32.mrf.mxu0
  %v5320 = vadd.f32 %v5151, %v5319
  %5321 = vmatmul.bf16.gmra.mxu0 %v5026
  %v5322 = vpop.f32.mrf.mxu0
  %v5323 = vadd.f32 %v5154, %v5322
  %v5324 = vpop.f32.mrf.mxu0
  %v5325 = vadd.f32 %v5156, %v5324
  %5326 = vmatmul.bf16.gmra.mxu0 %v5028
  %v5327 = vpop.f32.mrf.mxu0
  %v5328 = vadd.f32 %v5159, %v5327
  %v5329 = vpop.f32.mrf.mxu0
  %v5330 = vadd.f32 %v5161, %v5329
  %5331 = vmatmul.bf16.gmra.mxu0 %v5030
  %v5332 = vpop.f32.mrf.mxu0
  %v5333 = vadd.f32 %v5164, %v5332
  %v5334 = vpop.f32.mrf.mxu0
  %v5335 = vadd.f32 %v5166, %v5334
  %5336 = vmatmul.bf16.gmra.mxu0 %v5032
  %v5337 = vpop.f32.mrf.mxu0
  %v5338 = vadd.f32 %v5169, %v5337
  %v5339 = vpop.f32.mrf.mxu0
  %v5340 = vadd.f32 %v5171, %v5339
  %5341 = vmatmul.bf16.gmra.mxu0 %v5034
  %v5342 = vpop.f32.mrf.mxu0
  %v5343 = vadd.f32 %v5174, %v5342
  %v5344 = vpop.f32.mrf.mxu0
  %v5345 = vadd.f32 %v5176, %v5344
  %5346 = vmatmul.bf16.gmra.mxu0 %v5036
  %v5347 = vpop.f32.mrf.mxu0
  %v5348 = vadd.f32 %v5179, %v5347
  %v5349 = vpop.f32.mrf.mxu0
  %v5350 = vadd.f32 %v5181, %v5349
  %5351 = vmatmul.bf16.gmra.mxu0 %v5038
  %v5352 = vpop.f32.mrf.mxu0
  %v5353 = vadd.f32 %v5184, %v5352
  %v5354 = vpop.f32.mrf.mxu0
  %v5355 = vadd.f32 %v5186, %v5354
  %5356 = vmatmul.bf16.gmra.mxu0 %v5040
  %v5357 = vpop.f32.mrf.mxu0
  %v5358 = vadd.f32 %v5189, %v5357
  %v5359 = vpop.f32.mrf.mxu0
  %v5360 = vadd.f32 %v5191, %v5359
  %5361 = vmatmul.bf16.gmra.mxu0 %v5042
  %v5362 = vpop.f32.mrf.mxu0
  %v5363 = vadd.f32 %v5194, %v5362
  %v5364 = vpop.f32.mrf.mxu0
  %v5365 = vadd.f32 %v5196, %v5364
  %5366 = vmatmul.bf16.gmra.mxu0 %v5044
  %v5367 = vpop.f32.mrf.mxu0
  %v5368 = vadd.f32 %v5199, %v5367
  %v5369 = vpop.f32.mrf.mxu0
  %v5370 = vadd.f32 %v5201, %v5369
  %5371 = vmatmul.bf16.gmra.mxu0 %v5046
  %v5372 = vpop.f32.mrf.mxu0
  %v5373 = vadd.f32 %v5204, %v5372
  %v5374 = vpop.f32.mrf.mxu0
  %v5375 = vadd.f32 %v5206, %v5374
  %5376 = vmatmul.bf16.gmra.mxu0 %v5048
  %v5377 = vpop.f32.mrf.mxu0
  %v5378 = vadd.f32 %v5209, %v5377
  %v5379 = vpop.f32.mrf.mxu0
  %v5380 = vadd.f32 %v5211, %v5379
  %5381 = vmatmul.bf16.gmra.mxu0 %v5020
  %v5382 = vpop.f32.mrf.mxu0
  %v5383 = vadd.f32 %v5214, %v5382
  %v5384 = vpop.f32.mrf.mxu0
  %v5385 = vadd.f32 %v5216, %v5384
  %5386 = vmatmul.bf16.gmra.mxu0 %v5020
  %v5387 = vpop.f32.mrf.mxu0
  %v5388 = vadd.f32 %v5219, %v5387
  %v5389 = vpop.f32.mrf.mxu0
  %v5390 = vadd.f32 %v5221, %v5389
  %5391 = vdwg.mxu0
  %v5392 = vld [vmem:[%s10] sm:$0x1]
  %v5394 = vperm.slane %v5392, 0
  %v5396 = vmul.f32 %v5233, %v5394
  %v5397 = vmul.f32 %v5235, %v5394
  %v5398 = vmul.f32 %v5238, %v5394
  %v5399 = vmul.f32 %v5240, %v5394
  %v5400 = vmul.f32 %v5243, %v5394
  %v5401 = vmul.f32 %v5245, %v5394
  %v5402 = vmul.f32 %v5248, %v5394
  %v5403 = vmul.f32 %v5250, %v5394
  %v5404 = vmul.f32 %v5253, %v5394
  %v5405 = vmul.f32 %v5255, %v5394
  %v5406 = vmul.f32 %v5258, %v5394
  %v5407 = vmul.f32 %v5260, %v5394
  %v5408 = vmul.f32 %v5263, %v5394
  %v5409 = vmul.f32 %v5265, %v5394
  %v5410 = vmul.f32 %v5268, %v5394
  %v5411 = vmul.f32 %v5270, %v5394
  %v5412 = vmul.f32 %v5273, %v5394
  %v5413 = vmul.f32 %v5275, %v5394
  %v5414 = vmul.f32 %v5278, %v5394
  %v5415 = vmul.f32 %v5280, %v5394
  %v5416 = vmul.f32 %v5283, %v5394
  %v5417 = vmul.f32 %v5285, %v5394
  %v5418 = vmul.f32 %v5288, %v5394
  %v5419 = vmul.f32 %v5290, %v5394
  %v5420 = vmul.f32 %v5293, %v5394
  %v5421 = vmul.f32 %v5295, %v5394
  %v5422 = vmul.f32 %v5298, %v5394
  %v5423 = vmul.f32 %v5300, %v5394
  %v5424 = vmul.f32 %v5303, %v5394
  %v5425 = vmul.f32 %v5305, %v5394
  %v5426 = vmul.f32 %v5308, %v5394
  %v5427 = vmul.f32 %v5310, %v5394
  %v5428 = vmul.f32 %v5313, %v5394
  %v5429 = vmul.f32 %v5315, %v5394
  %v5430 = vmul.f32 %v5318, %v5394
  %v5431 = vmul.f32 %v5320, %v5394
  %v5432 = vmul.f32 %v5323, %v5394
  %v5433 = vmul.f32 %v5325, %v5394
  %v5434 = vmul.f32 %v5328, %v5394
  %v5435 = vmul.f32 %v5330, %v5394
  %v5436 = vmul.f32 %v5333, %v5394
  %v5437 = vmul.f32 %v5335, %v5394
  %v5438 = vmul.f32 %v5338, %v5394
  %v5439 = vmul.f32 %v5340, %v5394
  %v5440 = vmul.f32 %v5343, %v5394
  %v5441 = vmul.f32 %v5345, %v5394
  %v5442 = vmul.f32 %v5348, %v5394
  %v5443 = vmul.f32 %v5350, %v5394
  %v5444 = vmul.f32 %v5353, %v5394
  %v5445 = vmul.f32 %v5355, %v5394
  %v5446 = vmul.f32 %v5358, %v5394
  %v5447 = vmul.f32 %v5360, %v5394
  %v5448 = vmul.f32 %v5363, %v5394
  %v5449 = vmul.f32 %v5365, %v5394
  %v5450 = vmul.f32 %v5368, %v5394
  %v5451 = vmul.f32 %v5370, %v5394
  %v5452 = vmul.f32 %v5373, %v5394
  %v5453 = vmul.f32 %v5375, %v5394
  %v5454 = vmul.f32 %v5378, %v5394
  %v5455 = vmul.f32 %v5380, %v5394
  %v5456 = vmul.f32 %v5383, %v5394
  %v5457 = vmul.f32 %v5385, %v5394
  %v5458 = vmul.f32 %v5388, %v5394
  %v5459 = vmul.f32 %v5390, %v5394
  %v5460 = vld [vmem:[%s11] sm:$0x1]
  %v5462 = vperm.slane %v5460, 0
  %v5464 = vadd.f32 %v5396, %v5462
  %v5465 = vadd.f32 %v5397, %v5462
  %v5466 = vadd.f32 %v5398, %v5462
  %v5467 = vadd.f32 %v5399, %v5462
  %v5468 = vadd.f32 %v5400, %v5462
  %v5469 = vadd.f32 %v5401, %v5462
  %v5470 = vadd.f32 %v5402, %v5462
  %v5471 = vadd.f32 %v5403, %v5462
  %v5472 = vadd.f32 %v5404, %v5462
  %v5473 = vadd.f32 %v5405, %v5462
  %v5474 = vadd.f32 %v5406, %v5462
  %v5475 = vadd.f32 %v5407, %v5462
  %v5476 = vadd.f32 %v5408, %v5462
  %v5477 = vadd.f32 %v5409, %v5462
  %v5478 = vadd.f32 %v5410, %v5462
  %v5479 = vadd.f32 %v5411, %v5462
  %v5480 = vadd.f32 %v5412, %v5462
  %v5481 = vadd.f32 %v5413, %v5462
  %v5482 = vadd.f32 %v5414, %v5462
  %v5483 = vadd.f32 %v5415, %v5462
  %v5484 = vadd.f32 %v5416, %v5462
  %v5485 = vadd.f32 %v5417, %v5462
  %v5486 = vadd.f32 %v5418, %v5462
  %v5487 = vadd.f32 %v5419, %v5462
  %v5488 = vadd.f32 %v5420, %v5462
  %v5489 = vadd.f32 %v5421, %v5462
  %v5490 = vadd.f32 %v5422, %v5462
  %v5491 = vadd.f32 %v5423, %v5462
  %v5492 = vadd.f32 %v5424, %v5462
  %v5493 = vadd.f32 %v5425, %v5462
  %v5494 = vadd.f32 %v5426, %v5462
  %v5495 = vadd.f32 %v5427, %v5462
  %v5496 = vadd.f32 %v5428, %v5462
  %v5497 = vadd.f32 %v5429, %v5462
  %v5498 = vadd.f32 %v5430, %v5462
  %v5499 = vadd.f32 %v5431, %v5462
  %v5500 = vadd.f32 %v5432, %v5462
  %v5501 = vadd.f32 %v5433, %v5462
  %v5502 = vadd.f32 %v5434, %v5462
  %v5503 = vadd.f32 %v5435, %v5462
  %v5504 = vadd.f32 %v5436, %v5462
  %v5505 = vadd.f32 %v5437, %v5462
  %v5506 = vadd.f32 %v5438, %v5462
  %v5507 = vadd.f32 %v5439, %v5462
  %v5508 = vadd.f32 %v5440, %v5462
  %v5509 = vadd.f32 %v5441, %v5462
  %v5510 = vadd.f32 %v5442, %v5462
  %v5511 = vadd.f32 %v5443, %v5462
  %v5512 = vadd.f32 %v5444, %v5462
  %v5513 = vadd.f32 %v5445, %v5462
  %v5514 = vadd.f32 %v5446, %v5462
  %v5515 = vadd.f32 %v5447, %v5462
  %v5516 = vadd.f32 %v5448, %v5462
  %v5517 = vadd.f32 %v5449, %v5462
  %v5518 = vadd.f32 %v5450, %v5462
  %v5519 = vadd.f32 %v5451, %v5462
  %v5520 = vadd.f32 %v5452, %v5462
  %v5521 = vadd.f32 %v5453, %v5462
  %v5522 = vadd.f32 %v5454, %v5462
  %v5523 = vadd.f32 %v5455, %v5462
  %v5524 = vadd.f32 %v5456, %v5462
  %v5525 = vadd.f32 %v5457, %v5462
  %v5526 = vadd.f32 %v5458, %v5462
  %v5527 = vadd.f32 %v5459, %v5462
  %v5528 = vmax.f32 %v5464, 0.0
  %v5529 = vmax.f32 %v5465, 0.0
  %v5530 = vmax.f32 %v5466, 0.0
  %v5531 = vmax.f32 %v5467, 0.0
  %v5532 = vmax.f32 %v5468, 0.0
  %v5533 = vmax.f32 %v5469, 0.0
  %v5534 = vmax.f32 %v5470, 0.0
  %v5535 = vmax.f32 %v5471, 0.0
  %v5536 = vmax.f32 %v5472, 0.0
  %v5537 = vmax.f32 %v5473, 0.0
  %v5538 = vmax.f32 %v5474, 0.0
  %v5539 = vmax.f32 %v5475, 0.0
  %v5540 = vmax.f32 %v5476, 0.0
  %v5541 = vmax.f32 %v5477, 0.0
  %v5542 = vmax.f32 %v5478, 0.0
  %v5543 = vmax.f32 %v5479, 0.0
  %v5544 = vmax.f32 %v5480, 0.0
  %v5545 = vmax.f32 %v5481, 0.0
  %v5546 = vmax.f32 %v5482, 0.0
  %v5547 = vmax.f32 %v5483, 0.0
  %v5548 = vmax.f32 %v5484, 0.0
  %v5549 = vmax.f32 %v5485, 0.0
  %v5550 = vmax.f32 %v5486, 0.0
  %v5551 = vmax.f32 %v5487, 0.0
  %v5552 = vmax.f32 %v5488, 0.0
  %v5553 = vmax.f32 %v5489, 0.0
  %v5554 = vmax.f32 %v5490, 0.0
  %v5555 = vmax.f32 %v5491, 0.0
  %v5556 = vmax.f32 %v5492, 0.0
  %v5557 = vmax.f32 %v5493, 0.0
  %v5558 = vmax.f32 %v5494, 0.0
  %v5559 = vmax.f32 %v5495, 0.0
  %v5560 = vmax.f32 %v5496, 0.0
  %v5561 = vmax.f32 %v5497, 0.0
  %v5562 = vmax.f32 %v5498, 0.0
  %v5563 = vmax.f32 %v5499, 0.0
  %v5564 = vmax.f32 %v5500, 0.0
  %v5565 = vmax.f32 %v5501, 0.0
  %v5566 = vmax.f32 %v5502, 0.0
  %v5567 = vmax.f32 %v5503, 0.0
  %v5568 = vmax.f32 %v5504, 0.0
  %v5569 = vmax.f32 %v5505, 0.0
  %v5570 = vmax.f32 %v5506, 0.0
  %v5571 = vmax.f32 %v5507, 0.0
  %v5572 = vmax.f32 %v5508, 0.0
  %v5573 = vmax.f32 %v5509, 0.0
  %v5574 = vmax.f32 %v5510, 0.0
  %v5575 = vmax.f32 %v5511, 0.0
  %v5576 = vmax.f32 %v5512, 0.0
  %v5577 = vmax.f32 %v5513, 0.0
  %v5578 = vmax.f32 %v5514, 0.0
  %v5579 = vmax.f32 %v5515, 0.0
  %v5580 = vmax.f32 %v5516, 0.0
  %v5581 = vmax.f32 %v5517, 0.0
  %v5582 = vmax.f32 %v5518, 0.0
  %v5583 = vmax.f32 %v5519, 0.0
  %v5584 = vmax.f32 %v5520, 0.0
  %v5585 = vmax.f32 %v5521, 0.0
  %v5586 = vmax.f32 %v5522, 0.0
  %v5587 = vmax.f32 %v5523, 0.0
  %v5588 = vmax.f32 %v5524, 0.0
  %v5589 = vmax.f32 %v5525, 0.0
  %v5590 = vmax.f32 %v5526, 0.0
  %v5591 = vmax.f32 %v5527, 0.0
  %v5592 = vpack.c.bf16 %v5528, %v5528
  %v5593 = vpack.c.bf16 %v5529, %v5529
  %v5594 = vpack.c.bf16 %v5530, %v5530
  %v5595 = vpack.c.bf16 %v5531, %v5531
  %v5596 = vpack.c.bf16 %v5532, %v5532
  %v5597 = vpack.c.bf16 %v5533, %v5533
  %v5598 = vpack.c.bf16 %v5534, %v5534
  %v5599 = vpack.c.bf16 %v5535, %v5535
  %v5600 = vpack.c.bf16 %v5536, %v5536
  %v5601 = vpack.c.bf16 %v5537, %v5537
  %v5602 = vpack.c.bf16 %v5538, %v5538
  %v5603 = vpack.c.bf16 %v5539, %v5539
  %v5604 = vpack.c.bf16 %v5540, %v5540
  %v5605 = vpack.c.bf16 %v5541, %v5541
  %v5606 = vpack.c.bf16 %v5542, %v5542
  %v5607 = vpack.c.bf16 %v5543, %v5543
  %v5608 = vpack.c.bf16 %v5544, %v5544
  %v5609 = vpack.c.bf16 %v5545, %v5545
  %v5610 = vpack.c.bf16 %v5546, %v5546
  %v5611 = vpack.c.bf16 %v5547, %v5547
  %v5612 = vpack.c.bf16 %v5548, %v5548
  %v5613 = vpack.c.bf16 %v5549, %v5549
  %v5614 = vpack.c.bf16 %v5550, %v5550
  %v5615 = vpack.c.bf16 %v5551, %v5551
  %v5616 = vpack.c.bf16 %v5552, %v5552
  %v5617 = vpack.c.bf16 %v5553, %v5553
  %v5618 = vpack.c.bf16 %v5554, %v5554
  %v5619 = vpack.c.bf16 %v5555, %v5555
  %v5620 = vpack.c.bf16 %v5556, %v5556
  %v5621 = vpack.c.bf16 %v5557, %v5557
  %v5622 = vpack.c.bf16 %v5558, %v5558
  %v5623 = vpack.c.bf16 %v5559, %v5559
  %v5624 = vpack.c.bf16 %v5560, %v5560
  %v5625 = vpack.c.bf16 %v5561, %v5561
  %v5626 = vpack.c.bf16 %v5562, %v5562
  %v5627 = vpack.c.bf16 %v5563, %v5563
  %v5628 = vpack.c.bf16 %v5564, %v5564
  %v5629 = vpack.c.bf16 %v5565, %v5565
  %v5630 = vpack.c.bf16 %v5566, %v5566
  %v5631 = vpack.c.bf16 %v5567, %v5567
  %v5632 = vpack.c.bf16 %v5568, %v5568
  %v5633 = vpack.c.bf16 %v5569, %v5569
  %v5634 = vpack.c.bf16 %v5570, %v5570
  %v5635 = vpack.c.bf16 %v5571, %v5571
  %v5636 = vpack.c.bf16 %v5572, %v5572
  %v5637 = vpack.c.bf16 %v5573, %v5573
  %v5638 = vpack.c.bf16 %v5574, %v5574
  %v5639 = vpack.c.bf16 %v5575, %v5575
  %v5640 = vpack.c.bf16 %v5576, %v5576
  %v5641 = vpack.c.bf16 %v5577, %v5577
  %v5642 = vpack.c.bf16 %v5578, %v5578
  %v5643 = vpack.c.bf16 %v5579, %v5579
  %v5644 = vpack.c.bf16 %v5580, %v5580
  %v5645 = vpack.c.bf16 %v5581, %v5581
  %v5646 = vpack.c.bf16 %v5582, %v5582
  %v5647 = vpack.c.bf16 %v5583, %v5583
  %v5648 = vpack.c.bf16 %v5584, %v5584
  %v5649 = vpack.c.bf16 %v5585, %v5585
  %v5650 = vpack.c.bf16 %v5586, %v5586
  %v5651 = vpack.c.bf16 %v5587, %v5587
  %v5652 = vpack.c.bf16 %v5588, %v5588
  %v5653 = vpack.c.bf16 %v5589, %v5589
  %v5654 = vpack.c.bf16 %v5590, %v5590
  %v5655 = vpack.c.bf16 %v5591, %v5591
  %vm5656 = vcmask 257024
  %5657 = vst.msk [vmem:[%s13] sm:$0xf] %vm5656, %v5592
  %5658 = vst.msk [vmem:[%s13 + $0x4] sm:$0xf] %vm5656, %v5593
  %5659 = vst.msk [vmem:[%s13 + $0x8] sm:$0xf] %vm5656, %v5594
  %5660 = vst.msk [vmem:[%s13 + $0xc] sm:$0xf] %vm5656, %v5595
  %5661 = vst.msk [vmem:[%s13 + $0x10] sm:$0xf] %vm5656, %v5596
  %5662 = vst.msk [vmem:[%s13 + $0x14] sm:$0xf] %vm5656, %v5597
  %5663 = vst.msk [vmem:[%s13 + $0x18] sm:$0xf] %vm5656, %v5598
  %5664 = vst.msk [vmem:[%s13 + $0x1c] sm:$0xf] %vm5656, %v5599
  %5665 = vst.msk [vmem:[%s13 + $0x20] sm:$0xf] %vm5656, %v5600
  %5666 = vst.msk [vmem:[%s13 + $0x24] sm:$0xf] %vm5656, %v5601
  %5667 = vst.msk [vmem:[%s13 + $0x28] sm:$0xf] %vm5656, %v5602
  %5668 = vst.msk [vmem:[%s13 + $0x2c] sm:$0xf] %vm5656, %v5603
  %5669 = vst.msk [vmem:[%s13 + $0x30] sm:$0xf] %vm5656, %v5604
  %5670 = vst.msk [vmem:[%s13 + $0x34] sm:$0xf] %vm5656, %v5605
  %5671 = vst.msk [vmem:[%s13 + $0x38] sm:$0xf] %vm5656, %v5606
  %5672 = vst.msk [vmem:[%s13 + $0x3c] sm:$0xf] %vm5656, %v5607
  %5673 = vst.msk [vmem:[%s13 + $0x40] sm:$0xf] %vm5656, %v5608
  %5674 = vst.msk [vmem:[%s13 + $0x44] sm:$0xf] %vm5656, %v5609
  %5675 = vst.msk [vmem:[%s13 + $0x48] sm:$0xf] %vm5656, %v5610
  %5676 = vst.msk [vmem:[%s13 + $0x4c] sm:$0xf] %vm5656, %v5611
  %5677 = vst.msk [vmem:[%s13 + $0x50] sm:$0xf] %vm5656, %v5612
  %5678 = vst.msk [vmem:[%s13 + $0x54] sm:$0xf] %vm5656, %v5613
  %5679 = vst.msk [vmem:[%s13 + $0x58] sm:$0xf] %vm5656, %v5614
  %5680 = vst.msk [vmem:[%s13 + $0x5c] sm:$0xf] %vm5656, %v5615
  %5681 = vst.msk [vmem:[%s13 + $0x60] sm:$0xf] %vm5656, %v5616
  %5682 = vst.msk [vmem:[%s13 + $0x64] sm:$0xf] %vm5656, %v5617
  %5683 = vst.msk [vmem:[%s13 + $0x68] sm:$0xf] %vm5656, %v5618
  %5684 = vst.msk [vmem:[%s13 + $0x6c] sm:$0xf] %vm5656, %v5619
  %5685 = vst.msk [vmem:[%s13 + $0x70] sm:$0xf] %vm5656, %v5620
  %5686 = vst.msk [vmem:[%s13 + $0x74] sm:$0xf] %vm5656, %v5621
  %5687 = vst.msk [vmem:[%s13 + $0x78] sm:$0xf] %vm5656, %v5622
  %5688 = vst.msk [vmem:[%s13 + $0x7c] sm:$0xf] %vm5656, %v5623
  %5689 = vst.msk [vmem:[%s13 + $0x80] sm:$0xf] %vm5656, %v5624
  %5690 = vst.msk [vmem:[%s13 + $0x84] sm:$0xf] %vm5656, %v5625
  %5691 = vst.msk [vmem:[%s13 + $0x88] sm:$0xf] %vm5656, %v5626
  %5692 = vst.msk [vmem:[%s13 + $0x8c] sm:$0xf] %vm5656, %v5627
  %5693 = vst.msk [vmem:[%s13 + $0x90] sm:$0xf] %vm5656, %v5628
  %5694 = vst.msk [vmem:[%s13 + $0x94] sm:$0xf] %vm5656, %v5629
  %5695 = vst.msk [vmem:[%s13 + $0x98] sm:$0xf] %vm5656, %v5630
  %5696 = vst.msk [vmem:[%s13 + $0x9c] sm:$0xf] %vm5656, %v5631
  %5697 = vst.msk [vmem:[%s13 + $0xa0] sm:$0xf] %vm5656, %v5632
  %5698 = vst.msk [vmem:[%s13 + $0xa4] sm:$0xf] %vm5656, %v5633
  %5699 = vst.msk [vmem:[%s13 + $0xa8] sm:$0xf] %vm5656, %v5634
  %5700 = vst.msk [vmem:[%s13 + $0xac] sm:$0xf] %vm5656, %v5635
  %5701 = vst.msk [vmem:[%s13 + $0xb0] sm:$0xf] %vm5656, %v5636
  %5702 = vst.msk [vmem:[%s13 + $0xb4] sm:$0xf] %vm5656, %v5637
  %5703 = vst.msk [vmem:[%s13 + $0xb8] sm:$0xf] %vm5656, %v5638
  %5704 = vst.msk [vmem:[%s13 + $0xbc] sm:$0xf] %vm5656, %v5639
  %5705 = vst.msk [vmem:[%s13 + $0xc0] sm:$0xf] %vm5656, %v5640
  %5706 = vst.msk [vmem:[%s13 + $0xc4] sm:$0xf] %vm5656, %v5641
  %5707 = vst.msk [vmem:[%s13 + $0xc8] sm:$0xf] %vm5656, %v5642
  %5708 = vst.msk [vmem:[%s13 + $0xcc] sm:$0xf] %vm5656, %v5643
  %5709 = vst.msk [vmem:[%s13 + $0xd0] sm:$0xf] %vm5656, %v5644
  %5710 = vst.msk [vmem:[%s13 + $0xd4] sm:$0xf] %vm5656, %v5645
  %5711 = vst.msk [vmem:[%s13 + $0xd8] sm:$0xf] %vm5656, %v5646
  %5712 = vst.msk [vmem:[%s13 + $0xdc] sm:$0xf] %vm5656, %v5647
  %5713 = vst.msk [vmem:[%s13 + $0xe0] sm:$0xf] %vm5656, %v5648
  %5714 = vst.msk [vmem:[%s13 + $0xe4] sm:$0xf] %vm5656, %v5649
  %5715 = vst.msk [vmem:[%s13 + $0xe8] sm:$0xf] %vm5656, %v5650
  %5716 = vst.msk [vmem:[%s13 + $0xec] sm:$0xf] %vm5656, %v5651
  %5717 = vst.msk [vmem:[%s13 + $0xf0] sm:$0xf] %vm5656, %v5652
  %5718 = vst.msk [vmem:[%s13 + $0xf4] sm:$0xf] %vm5656, %v5653
  %5719 = vst.msk [vmem:[%s13 + $0xf8] sm:$0xf] %vm5656, %v5654
  %5720 = vst.msk [vmem:[%s13 + $0xfc] sm:$0xf] %vm5656, %v5655
  // Predicated region
  $region50: #{reduction_b_v4.2} parent=0 // pred_check
    _
  $region51: #{reduction_b_v4.2} parent=0 // pred_check_branch
    %5722 = sbr.rel (0) target = $region53
  $region52: #{reduction_b_v4.2} parent=0 // pred_region
    _
  $region53: #{reduction_b_v4.2} parent=0 // pred_fallthru
    _
  // Predicated region
  $region54: #{reduction_b_v4.2} parent=0 // pred_check
    _
  $region55: #{reduction_b_v4.2} parent=0 // pred_check_branch
    %5724 = sbr.rel (0) target = $region57
  $region56: #{reduction_b_v4.2} parent=0 // pred_region
    _
  $region57: #{reduction_b_v4.2} parent=0 // pred_fallthru
    _
  // Predicated region
  $region58: #{reduction_b_v4.2} parent=0 // pred_check
    _
  $region59: #{reduction_b_v4.2} parent=0 // pred_check_branch
    %5726 = sbr.rel (0) target = $region61
  $region60: #{reduction_b_v4.2} parent=0 // pred_region
    _
  $region61: #{reduction_b_v4.2} parent=0 // pred_fallthru
    _
  // Predicated region
  $region62: #{reduction_b_v4.2} parent=0 // pred_check
    _
  $region63: #{reduction_b_v4.2} parent=0 // pred_check_branch
    %5728 = sbr.rel (0) target = $region65
  $region64: #{reduction_b_v4.2} parent=0 // pred_region
    _
  $region65: #{reduction_b_v4.2} parent=0 // pred_fallthru
    _

</llo_original>
